<compile_context>
chip_gen: v7x
topology: tpu7x:2x2x1
jax: 0.10.0
libtpu: 0.0.40
codegen_flags: <defaults>
</compile_context>

<pallas_src>
import functools
import math

import jax
import jax.numpy as jnp
from jax.experimental import pallas as pl
from jax.experimental.pallas import tpu as pltpu


def make_sinusoidal_pe(max_seq_len: int, d_model: int) -> jnp.ndarray:
    """The module's cached PE buffer (1, max_seq_len, d_model) — reference only."""
    position = jnp.arange(max_seq_len, dtype=jnp.float32)[:, None]           # (L, 1)
    div_term = jnp.exp(
        jnp.arange(0, d_model, 2, dtype=jnp.float32)
        * -(math.log(10000.0) / d_model)
    )                                                                         # (ceil(D/2),)
    angles = position * div_term                                              # (L, D/2)
    pe = jnp.zeros((max_seq_len, d_model), dtype=jnp.float32)
    pe = pe.at[:, 0::2].set(jnp.sin(angles))
    pe = pe.at[:, 1::2].set(jnp.cos(angles))
    return pe[None, :, :]                                                     # (1, L, D)


def _choose_block_rows(n_rows: int, d_padded: int, itemsize: int) -> int:
    """Row tile for the flattened (B*T, Dp) view, sized by a VMEM byte budget."""
    pack = 8 * max(1, 4 // itemsize)                 # f32: 8, bf16: 16, int8: 32
    total_bytes = n_rows * d_padded * itemsize
    if total_bytes <= (256 << 10) or n_rows <= 2 * pack:
        # Tiny streaming shapes: one full-extent block; grid overhead dominates
        # anything a split could buy on any chip generation.
        return n_rows
    target_tile_bytes = 3 << 20                      # ~3 MiB/x-tile; 4 bufs ~ 12 MiB
    budget_rows = (target_tile_bytes // (d_padded * itemsize)) // pack * pack
    budget_rows = max(pack, budget_rows)
    # Keep at least 2 grid steps so v7x's two TensorCores both get work.
    half_rows = (n_rows + 1) // 2
    half_rows = ((half_rows + pack - 1) // pack) * pack
    return int(max(pack, min(budget_rows, half_rows)))


def _pe_add_kernel(start_ref, x_ref, fp_ref, o_ref, *,
                   xscale: float, block_rows: int, seq_len: int):
    # start_ref : SMEM (1,) int32 scalar-prefetch — streaming start index
    # x_ref     : (R, Dp) VMEM tile of the flattened input
    # fp_ref    : (2, Dp) VMEM; row 0 = inv_freq[d] = div_term[d // 2],
    #                          row 1 = phase[d]    = (d % 2) * pi/2
    # o_ref     : (R, Dp) VMEM output tile
    r0 = pl.program_id(0) * block_rows
    rows = r0 + jax.lax.broadcasted_iota(jnp.int32, (x_ref.shape[0], 1), 0)   # (R,1)
    t = rows % seq_len                                                        # time index
    pos = (start_ref[0] + t).astype(jnp.float32)                              # (R,1) f32
    # Single sin covers both even (sin) and odd (cos == sin(.+pi/2)) columns.
    angle = pos * fp_ref[0:1, :] + fp_ref[1:2, :]                             # (R,Dp) f32
    pe = jnp.sin(angle)
    xv = x_ref[...].astype(jnp.float32)                                       # f32 accumulate
    o_ref[...] = (xv * jnp.float32(xscale) + pe).astype(o_ref.dtype)


def stream_positional_encoding(x: jnp.ndarray,
                               start_idx,
                               xscale: float,
                               *,
                               max_seq_len: int | None = None,
                               block_rows: int | None = None) -> jnp.ndarray:
    """x: (B, T, D); returns x * xscale + pe[:, start_idx:start_idx + T]."""
    B, T, D = x.shape
    if max_seq_len is not None and isinstance(start_idx, int):
        if not (0 <= start_idx and start_idx + T <= max_seq_len):
            raise ValueError(
                f"start_idx + T = {start_idx + T} exceeds max_seq_len = {max_seq_len}"
            )

    n_rows = B * T
    itemsize = jnp.dtype(x.dtype).itemsize

    # Pad d_model up to a lane-dense multiple of 128 (unmasked vst stores).
    Dp = ((D + 127) // 128) * 128
    x2d = x.reshape(n_rows, D)
    if Dp != D:
        x2d = jnp.pad(x2d, ((0, 0), (0, Dp - D)))

    if block_rows is None:
        block_rows = _choose_block_rows(n_rows, Dp, itemsize)

    # (2, Dp) constant rows: inverse frequency (pe-table compatible) and phase.
    div_term = jnp.exp(
        jnp.arange(0, D, 2, dtype=jnp.float32) * -(math.log(10000.0) / D)
    )
    inv_freq = jnp.repeat(div_term, 2)[:D]                                    # (D,)
    phase = (jnp.arange(D, dtype=jnp.int32) % 2).astype(jnp.float32) * (math.pi / 2)
    fp = jnp.stack([inv_freq, phase], axis=0)                                 # (2, D)
    if Dp != D:
        fp = jnp.pad(fp, ((0, 0), (0, Dp - D)))                               # pad -> pe=0

    start_arr = jnp.asarray(start_idx, jnp.int32).reshape(1)

    kernel = functools.partial(
        _pe_add_kernel, xscale=float(xscale), block_rows=int(block_rows), seq_len=int(T)
    )

    grid_spec = pltpu.PrefetchScalarGridSpec(
        num_scalar_prefetch=1,                       # start_idx -> SMEM
        grid=(pl.cdiv(n_rows, block_rows),),
        in_specs=[
            pl.BlockSpec((block_rows, Dp), lambda i, s: (i, 0)),   # x rows
            pl.BlockSpec((2, Dp), lambda i, s: (0, 0)),            # inv_freq / phase
        ],
        out_specs=pl.BlockSpec((block_rows, Dp), lambda i, s: (i, 0)),
    )

    out2d = pl.pallas_call(
        kernel,
        out_shape=jax.ShapeDtypeStruct((n_rows, Dp), x.dtype),
        grid_spec=grid_spec,
        compiler_params=pltpu.CompilerParams(
            dimension_semantics=("parallel",),
            vmem_limit_bytes=32 * 1024 * 1024,       # keep 2-deep pipeline on v5e too
        ),
        cost_estimate=pl.CostEstimate(
            flops=2 * n_rows * D,
            transcendentals=n_rows * D,
            bytes_accessed=2 * n_rows * D * itemsize,
        ),
    )(start_arr, x2d, fp)

    if Dp != D:
        out2d = out2d[:, :D]
    return out2d.reshape(B, T, D)


if __name__ == "__main__":
    key = jax.random.PRNGKey(0)

    # Case 1: lane-dense d_model (multiple of 128), small streaming-ASR-ish shape.
    B, T, D = 4, 48, 256
    MAX_SEQ_LEN = 256
    XSCALE = math.sqrt(D)                      # espnet xscale = sqrt(d_model)
    START_IDX = 7                              # arbitrary streaming offset
    k1, k2 = jax.random.split(key)
    x = jax.random.normal(k1, (B, T, D), dtype=jnp.float32)

    out = stream_positional_encoding(x, START_IDX, XSCALE, max_seq_len=MAX_SEQ_LEN)
    out = jax.block_until_ready(out)

    pe = make_sinusoidal_pe(MAX_SEQ_LEN, D)
    ref = x * XSCALE + pe[:, START_IDX:START_IDX + T]
    assert out.shape == (B, T, D) and out.dtype == jnp.float32
    assert jnp.allclose(out, ref, atol=1e-4, rtol=1e-5)

    # Case 2: d_model NOT a multiple of 128 (exercises the pad-to-128 path).
    B2, T2, D2 = 2, 10, 80
    XSCALE2 = math.sqrt(D2)
    START2 = 3
    x2 = jax.random.normal(k2, (B2, T2, D2), dtype=jnp.float32)
    out2 = jax.block_until_ready(
        stream_positional_encoding(x2, START2, XSCALE2, max_seq_len=MAX_SEQ_LEN)
    )
    pe2 = make_sinusoidal_pe(MAX_SEQ_LEN, D2)
    ref2 = x2 * XSCALE2 + pe2[:, START2:START2 + T2]
    assert out2.shape == (B2, T2, D2)
    assert jnp.allclose(out2, ref2, atol=1e-4, rtol=1e-5)

    print("KERNEL_OK")
</pallas_src>

<mosaic_0001>
module attributes {stable_mosaic.version = 11 : i64} {
  func.func @_pe_add_kernel(%arg0: i32, %arg1: memref<1xi32, #tpu.memory_space<smem>>, %arg2: memref<192x256xf32, #tpu.memory_space<vmem>>, %arg3: memref<2x256xf32, #tpu.memory_space<vmem>>, %arg4: memref<192x256xf32, #tpu.memory_space<vmem>>) attributes {dimension_semantics = [#tpu.dimension_semantics<parallel>], iteration_bounds = array<i64: 1>, scalar_prefetch = 1 : i64, scratch_operands = 0 : i64, tpu.core_type = #tpu.core_type<tc>, window_params = [{transform_indices = @transform_0, window_bounds = array<i64: 192, 256>}, {pipeline_mode = #tpu.pipeline_mode<synchronous>, transform_indices = @transform_1, window_bounds = array<i64: 2, 256>}, {transform_indices = @transform_2, window_bounds = array<i64: 192, 256>}]} {
    %c192_i32 = arith.constant 192 : i32
    %0 = arith.muli %arg0, %c192_i32 : i32
    %1 = tpu.iota {dimensions = array<i32: 0>} : vector<192x1xi32>
    %2 = vector.broadcast %0 : i32 to vector<192x1xi32>
    %3 = arith.addi %2, %1 : vector<192x1xi32>
    %c48_i32 = arith.constant 48 : i32
    %c0_i32 = arith.constant 0 : i32
    %4 = arith.cmpi eq, %c48_i32, %c0_i32 : i32
    %c1_i32 = arith.constant 1 : i32
    %5 = arith.select %4, %c1_i32, %c48_i32 : i32
    %6 = vector.broadcast %5 : i32 to vector<192x1xi32>
    %7 = arith.remsi %3, %6 : vector<192x1xi32>
    %c0_i32_0 = arith.constant 0 : i32
    %8 = vector.broadcast %c0_i32_0 : i32 to vector<192x1xi32>
    %9 = arith.cmpi ne, %7, %8 : vector<192x1xi32>
    %c0_i32_1 = arith.constant 0 : i32
    %10 = vector.broadcast %c0_i32_1 : i32 to vector<192x1xi32>
    %11 = arith.cmpi slt, %7, %10 : vector<192x1xi32>
    %c0_i32_2 = arith.constant 0 : i32
    %12 = arith.cmpi slt, %5, %c0_i32_2 : i32
    %13 = vector.broadcast %12 : i1 to vector<192x1xi1>
    %14 = vector.broadcast %13 : vector<192x1xi1> to vector<192x1xi1>
    %15 = arith.xori %11, %14 : vector<192x1xi1>
    %16 = arith.andi %15, %9 : vector<192x1xi1>
    %17 = vector.broadcast %5 : i32 to vector<192x1xi32>
    %18 = arith.addi %7, %17 : vector<192x1xi32>
    %19 = arith.select %16, %18, %7 : vector<192x1xi1>, vector<192x1xi32>
    %c0 = arith.constant 0 : index
    %20 = memref.load %arg1[%c0] : memref<1xi32, #tpu.memory_space<smem>>
    %21 = vector.broadcast %20 : i32 to vector<192x1xi32>
    %22 = arith.addi %21, %19 : vector<192x1xi32>
    %23 = arith.sitofp %22 : vector<192x1xi32> to vector<192x1xf32>
    %c0_3 = arith.constant 0 : index
    %c0_4 = arith.constant 0 : index
    %24 = vector.load %arg3[%c0_3, %c0_4] : memref<2x256xf32, #tpu.memory_space<vmem>>, vector<1x256xf32>
    %25 = vector.broadcast %23 : vector<192x1xf32> to vector<192x256xf32>
    %26 = vector.broadcast %24 : vector<1x256xf32> to vector<192x256xf32>
    %27 = arith.mulf %25, %26 : vector<192x256xf32>
    %c1 = arith.constant 1 : index
    %c0_5 = arith.constant 0 : index
    %28 = vector.load %arg3[%c1, %c0_5] : memref<2x256xf32, #tpu.memory_space<vmem>>, vector<1x256xf32>
    %29 = vector.broadcast %28 : vector<1x256xf32> to vector<192x256xf32>
    %30 = arith.addf %27, %29 : vector<192x256xf32>
    %31 = math.sin %30 : vector<192x256xf32>
    %c0_6 = arith.constant 0 : index
    %c0_7 = arith.constant 0 : index
    %32 = vector.load %arg2[%c0_6, %c0_7] : memref<192x256xf32, #tpu.memory_space<vmem>>, vector<192x256xf32>
    %cst = arith.constant 1.600000e+01 : f32
    %33 = vector.broadcast %cst : f32 to vector<192x256xf32>
    %34 = arith.mulf %32, %33 : vector<192x256xf32>
    %35 = arith.addf %34, %31 : vector<192x256xf32>
    %c0_8 = arith.constant 0 : index
    %c0_9 = arith.constant 0 : index
    %36 = vector.load %arg4[%c0_8, %c0_9] : memref<192x256xf32, #tpu.memory_space<vmem>>, vector<192x256xf32>
    tpu.vector_store %arg4[%c0_8, %c0_9], %35 {strides = array<i32>} : memref<192x256xf32, #tpu.memory_space<vmem>>, vector<192x256xf32>,
    return
  }
  func.func @transform_0(%arg0: i32, %arg1: memref<1xi32, #tpu.memory_space<smem>>) -> (i32, i32) {
    %c0_i32 = arith.constant 0 : i32
    %c0_i32_0 = arith.constant 0 : i32
    return %arg0, %c0_i32 : i32, i32
  }
  func.func @transform_1(%arg0: i32, %arg1: memref<1xi32, #tpu.memory_space<smem>>) -> (i32, i32) {
    %c0_i32 = arith.constant 0 : i32
    %c0_i32_0 = arith.constant 0 : i32
    %c0_i32_1 = arith.constant 0 : i32
    return %c0_i32, %c0_i32_0 : i32, i32
  }
  func.func @transform_2(%arg0: i32, %arg1: memref<1xi32, #tpu.memory_space<smem>>) -> (i32, i32) {
    %c0_i32 = arith.constant 0 : i32
    %c0_i32_0 = arith.constant 0 : i32
    return %arg0, %c0_i32 : i32, i32
  }
}

</mosaic_0001>

<llo_original>
// kernel: tpu_custom_call.1
$region0: #{tpu_custom_call.1}
  #allocation0 [shape = 'u32[]', space=smem, size = 0x4, offset = 0x4, fixed_abs, tag = 'smem constant byte address 0x4 - core index']
  #allocation1 [shape = 'u32[144,128]{1,0:T(1,128)}', space=vmem, size = 0x12000, scoped, tag = 'internal scratch']
  #allocation2 [shape = 's32[1]{0}', space=sflag, size = 0x4, scoped, tag = 'scoped memory for tpu_custom_call.1']
  #allocation3 [shape = 's32[1]{0:T(128)S(6)}', space=smem, size = 0x200, scoped, tag = 'prefetched SMEM operand 0']
  %s0 = inlined_call_operand.<no memory space> [shape: s32[1], index: 0, kind: input, shape index: {}]
  %s1 = inlined_call_operand.hbm [shape: f32[192,256], index: 1, kind: input, shape index: {}]
  %s2 = inlined_call_operand.vmem [shape: f32[2,256], index: 2, kind: input, shape index: {}]
  %s3 = inlined_call_operand.hbm [shape: f32[192,256], index: 3, kind: output, shape index: {}]
  %s4 = sld [smem:[#allocation0]]
  $region22: #{tpu_custom_call.1} parent=0
    _
  %s6 = ssub.s32 1, %s4
  %s7 = scalar_select 0, %s6, %s4
  %8 = sst [smem:[#allocation3]] %s0
  $region1: #{tpu_custom_call.1} parent=0
    #allocation4 [shape = 'u8[196608]{0}', space=vmem, size = 0x30000, scoped, tag = 'input window, operand 1, single buffered']
    #allocation5 [shape = 's32[1]{0}', space=sflag, size = 0x4, scoped, tag = 'scoped memory for tpu_custom_call.1']
    #allocation6 [shape = 's32[1]{0}', space=sflag, size = 0x4, scoped, tag = 'scoped memory for tpu_custom_call.1']
    #allocation7 [shape = 'u8[196608]{0}', space=vmem, size = 0x30000, scoped, tag = 'output window, operand 0, single buffered']
    %9 = vsyncpa [#allocation5], 0
    %10 = vsyncpa [#allocation6], 0
    // Predicated region
    $region2: #{tpu_custom_call.1} parent=1 // pred_check
      _
    $region3: #{tpu_custom_call.1} parent=1 // pred_check_branch
      %12 = sbr.rel (0) target = $region5
    $region4: #{tpu_custom_call.1} parent=1 // pred_region
      %s14 = ssub.s32 6144, 6144
      %15 = vsyncadd [#allocation5], %s14
      %s16 = sshll.u32 [#allocation4], 4
      %s17 = int_to_ptr.vmem [resolvable:$true] %s16
      %22 = dma.hbm_to_vmem [thread:$0]  %s1, 6144, %s17, [#allocation5], 256, 256, 16
    $region5: #{tpu_custom_call.1} parent=1 // pred_fallthru
      _
    // Predicated region
    $region6: #{tpu_custom_call.1} parent=1 // pred_check
      _
    $region7: #{tpu_custom_call.1} parent=1 // pred_check_branch
      %24 = sbr.rel (0) target = $region9
    $region8: #{tpu_custom_call.1} parent=1 // pred_region
      _
    $region9: #{tpu_custom_call.1} parent=1 // pred_fallthru
      _
    // Predicated region
    $region10: #{tpu_custom_call.1} parent=1 // pred_check
      _
    $region11: #{tpu_custom_call.1} parent=1 // pred_check_branch
      %26 = sbr.rel (0) target = $region13
    $region12: #{tpu_custom_call.1} parent=1 // pred_region
      %27 = dma.done [#allocation5], 6144
    $region13: #{tpu_custom_call.1} parent=1 // pred_fallthru
      _
    %s28 = smul.u32 0, 192
    %v29 = vlaneseq
    %v30 = vshrl.u32 %v29, 7
    %v31 = vadd.s32 %v30, 8
    %v32 = vadd.s32 %v30, 16
    %v33 = vadd.s32 %v30, 24
    %v34 = vadd.s32 %v30, 32
    %v35 = vadd.s32 %v30, 40
    %v36 = vadd.s32 %v30, 48
    %v37 = vadd.s32 %v30, 56
    %v38 = vadd.s32 %v30, 64
    %v39 = vadd.s32 %v30, 72
    %v40 = vadd.s32 %v30, 80
    %v41 = vadd.s32 %v30, 88
    %v42 = vadd.s32 %v30, 96
    %v43 = vadd.s32 %v30, 104
    %v44 = vadd.s32 %v30, 112
    %v45 = vadd.s32 %v30, 120
    %v46 = vadd.s32 %v30, 128
    %v47 = vadd.s32 %v30, 136
    %v48 = vadd.s32 %v30, 144
    %v49 = vadd.s32 %v30, 152
    %v50 = vadd.s32 %v30, 160
    %v51 = vadd.s32 %v30, 168
    %v52 = vadd.s32 %v30, 176
    %v53 = vadd.s32 %v30, 184
    %v54 = vstv %s28
    %v55 = vadd.s32 %v54, %v30
    %v56 = vadd.s32 %v54, %v31
    %v57 = vadd.s32 %v54, %v32
    %v58 = vadd.s32 %v54, %v33
    %v59 = vadd.s32 %v54, %v34
    %v60 = vadd.s32 %v54, %v35
    %v61 = vadd.s32 %v54, %v36
    %v62 = vadd.s32 %v54, %v37
    %v63 = vadd.s32 %v54, %v38
    %v64 = vadd.s32 %v54, %v39
    %v65 = vadd.s32 %v54, %v40
    %v66 = vadd.s32 %v54, %v41
    %v67 = vadd.s32 %v54, %v42
    %v68 = vadd.s32 %v54, %v43
    %v69 = vadd.s32 %v54, %v44
    %v70 = vadd.s32 %v54, %v45
    %v71 = vadd.s32 %v54, %v46
    %v72 = vadd.s32 %v54, %v47
    %v73 = vadd.s32 %v54, %v48
    %v74 = vadd.s32 %v54, %v49
    %v75 = vadd.s32 %v54, %v50
    %v76 = vadd.s32 %v54, %v51
    %v77 = vadd.s32 %v54, %v52
    %v78 = vadd.s32 %v54, %v53
    %vm79 = vcmp.lt.s32.totalorder %v55, 0
    %v80 = vsub.s32 0, %v55
    %v81 = vsel %vm79, %v80, %v55
    %v82 = vmul.u32.u64.compose %v81, 2863311531
    %v83 = vextract.low.u32 %v82
    %v84 = vextract.high.u32 %v82
    %v85 = vshrl.u32 %v84, 5
    %v86 = vmul.u32 %v85, 48
    %v87 = vsub.s32 %v81, %v86
    %v88 = vsub.s32 0, %v87
    %v89 = vsel %vm79, %v88, %v87
    %vm90 = vcmp.lt.s32.totalorder %v56, 0
    %v91 = vsub.s32 0, %v56
    %v92 = vsel %vm90, %v91, %v56
    %v93 = vmul.u32.u64.compose %v92, 2863311531
    %v94 = vextract.low.u32 %v93
    %v95 = vextract.high.u32 %v93
    %v96 = vshrl.u32 %v95, 5
    %v97 = vmul.u32 %v96, 48
    %v98 = vsub.s32 %v92, %v97
    %v99 = vsub.s32 0, %v98
    %v100 = vsel %vm90, %v99, %v98
    %vm101 = vcmp.lt.s32.totalorder %v57, 0
    %v102 = vsub.s32 0, %v57
    %v103 = vsel %vm101, %v102, %v57
    %v104 = vmul.u32.u64.compose %v103, 2863311531
    %v105 = vextract.low.u32 %v104
    %v106 = vextract.high.u32 %v104
    %v107 = vshrl.u32 %v106, 5
    %v108 = vmul.u32 %v107, 48
    %v109 = vsub.s32 %v103, %v108
    %v110 = vsub.s32 0, %v109
    %v111 = vsel %vm101, %v110, %v109
    %vm112 = vcmp.lt.s32.totalorder %v58, 0
    %v113 = vsub.s32 0, %v58
    %v114 = vsel %vm112, %v113, %v58
    %v115 = vmul.u32.u64.compose %v114, 2863311531
    %v116 = vextract.low.u32 %v115
    %v117 = vextract.high.u32 %v115
    %v118 = vshrl.u32 %v117, 5
    %v119 = vmul.u32 %v118, 48
    %v120 = vsub.s32 %v114, %v119
    %v121 = vsub.s32 0, %v120
    %v122 = vsel %vm112, %v121, %v120
    %vm123 = vcmp.lt.s32.totalorder %v59, 0
    %v124 = vsub.s32 0, %v59
    %v125 = vsel %vm123, %v124, %v59
    %v126 = vmul.u32.u64.compose %v125, 2863311531
    %v127 = vextract.low.u32 %v126
    %v128 = vextract.high.u32 %v126
    %v129 = vshrl.u32 %v128, 5
    %v130 = vmul.u32 %v129, 48
    %v131 = vsub.s32 %v125, %v130
    %v132 = vsub.s32 0, %v131
    %v133 = vsel %vm123, %v132, %v131
    %vm134 = vcmp.lt.s32.totalorder %v60, 0
    %v135 = vsub.s32 0, %v60
    %v136 = vsel %vm134, %v135, %v60
    %v137 = vmul.u32.u64.compose %v136, 2863311531
    %v138 = vextract.low.u32 %v137
    %v139 = vextract.high.u32 %v137
    %v140 = vshrl.u32 %v139, 5
    %v141 = vmul.u32 %v140, 48
    %v142 = vsub.s32 %v136, %v141
    %v143 = vsub.s32 0, %v142
    %v144 = vsel %vm134, %v143, %v142
    %vm145 = vcmp.lt.s32.totalorder %v61, 0
    %v146 = vsub.s32 0, %v61
    %v147 = vsel %vm145, %v146, %v61
    %v148 = vmul.u32.u64.compose %v147, 2863311531
    %v149 = vextract.low.u32 %v148
    %v150 = vextract.high.u32 %v148
    %v151 = vshrl.u32 %v150, 5
    %v152 = vmul.u32 %v151, 48
    %v153 = vsub.s32 %v147, %v152
    %v154 = vsub.s32 0, %v153
    %v155 = vsel %vm145, %v154, %v153
    %vm156 = vcmp.lt.s32.totalorder %v62, 0
    %v157 = vsub.s32 0, %v62
    %v158 = vsel %vm156, %v157, %v62
    %v159 = vmul.u32.u64.compose %v158, 2863311531
    %v160 = vextract.low.u32 %v159
    %v161 = vextract.high.u32 %v159
    %v162 = vshrl.u32 %v161, 5
    %v163 = vmul.u32 %v162, 48
    %v164 = vsub.s32 %v158, %v163
    %v165 = vsub.s32 0, %v164
    %v166 = vsel %vm156, %v165, %v164
    %vm167 = vcmp.lt.s32.totalorder %v63, 0
    %v168 = vsub.s32 0, %v63
    %v169 = vsel %vm167, %v168, %v63
    %v170 = vmul.u32.u64.compose %v169, 2863311531
    %v171 = vextract.low.u32 %v170
    %v172 = vextract.high.u32 %v170
    %v173 = vshrl.u32 %v172, 5
    %v174 = vmul.u32 %v173, 48
    %v175 = vsub.s32 %v169, %v174
    %v176 = vsub.s32 0, %v175
    %v177 = vsel %vm167, %v176, %v175
    %vm178 = vcmp.lt.s32.totalorder %v64, 0
    %v179 = vsub.s32 0, %v64
    %v180 = vsel %vm178, %v179, %v64
    %v181 = vmul.u32.u64.compose %v180, 2863311531
    %v182 = vextract.low.u32 %v181
    %v183 = vextract.high.u32 %v181
    %v184 = vshrl.u32 %v183, 5
    %v185 = vmul.u32 %v184, 48
    %v186 = vsub.s32 %v180, %v185
    %v187 = vsub.s32 0, %v186
    %v188 = vsel %vm178, %v187, %v186
    %vm189 = vcmp.lt.s32.totalorder %v65, 0
    %v190 = vsub.s32 0, %v65
    %v191 = vsel %vm189, %v190, %v65
    %v192 = vmul.u32.u64.compose %v191, 2863311531
    %v193 = vextract.low.u32 %v192
    %v194 = vextract.high.u32 %v192
    %v195 = vshrl.u32 %v194, 5
    %v196 = vmul.u32 %v195, 48
    %v197 = vsub.s32 %v191, %v196
    %v198 = vsub.s32 0, %v197
    %v199 = vsel %vm189, %v198, %v197
    %vm200 = vcmp.lt.s32.totalorder %v66, 0
    %v201 = vsub.s32 0, %v66
    %v202 = vsel %vm200, %v201, %v66
    %v203 = vmul.u32.u64.compose %v202, 2863311531
    %v204 = vextract.low.u32 %v203
    %v205 = vextract.high.u32 %v203
    %v206 = vshrl.u32 %v205, 5
    %v207 = vmul.u32 %v206, 48
    %v208 = vsub.s32 %v202, %v207
    %v209 = vsub.s32 0, %v208
    %v210 = vsel %vm200, %v209, %v208
    %vm211 = vcmp.lt.s32.totalorder %v67, 0
    %v212 = vsub.s32 0, %v67
    %v213 = vsel %vm211, %v212, %v67
    %v214 = vmul.u32.u64.compose %v213, 2863311531
    %v215 = vextract.low.u32 %v214
    %v216 = vextract.high.u32 %v214
    %v217 = vshrl.u32 %v216, 5
    %v218 = vmul.u32 %v217, 48
    %v219 = vsub.s32 %v213, %v218
    %v220 = vsub.s32 0, %v219
    %v221 = vsel %vm211, %v220, %v219
    %vm222 = vcmp.lt.s32.totalorder %v68, 0
    %v223 = vsub.s32 0, %v68
    %v224 = vsel %vm222, %v223, %v68
    %v225 = vmul.u32.u64.compose %v224, 2863311531
    %v226 = vextract.low.u32 %v225
    %v227 = vextract.high.u32 %v225
    %v228 = vshrl.u32 %v227, 5
    %v229 = vmul.u32 %v228, 48
    %v230 = vsub.s32 %v224, %v229
    %v231 = vsub.s32 0, %v230
    %v232 = vsel %vm222, %v231, %v230
    %vm233 = vcmp.lt.s32.totalorder %v69, 0
    %v234 = vsub.s32 0, %v69
    %v235 = vsel %vm233, %v234, %v69
    %v236 = vmul.u32.u64.compose %v235, 2863311531
    %v237 = vextract.low.u32 %v236
    %v238 = vextract.high.u32 %v236
    %v239 = vshrl.u32 %v238, 5
    %v240 = vmul.u32 %v239, 48
    %v241 = vsub.s32 %v235, %v240
    %v242 = vsub.s32 0, %v241
    %v243 = vsel %vm233, %v242, %v241
    %vm244 = vcmp.lt.s32.totalorder %v70, 0
    %v245 = vsub.s32 0, %v70
    %v246 = vsel %vm244, %v245, %v70
    %v247 = vmul.u32.u64.compose %v246, 2863311531
    %v248 = vextract.low.u32 %v247
    %v249 = vextract.high.u32 %v247
    %v250 = vshrl.u32 %v249, 5
    %v251 = vmul.u32 %v250, 48
    %v252 = vsub.s32 %v246, %v251
    %v253 = vsub.s32 0, %v252
    %v254 = vsel %vm244, %v253, %v252
    %vm255 = vcmp.lt.s32.totalorder %v71, 0
    %v256 = vsub.s32 0, %v71
    %v257 = vsel %vm255, %v256, %v71
    %v258 = vmul.u32.u64.compose %v257, 2863311531
    %v259 = vextract.low.u32 %v258
    %v260 = vextract.high.u32 %v258
    %v261 = vshrl.u32 %v260, 5
    %v262 = vmul.u32 %v261, 48
    %v263 = vsub.s32 %v257, %v262
    %v264 = vsub.s32 0, %v263
    %v265 = vsel %vm255, %v264, %v263
    %vm266 = vcmp.lt.s32.totalorder %v72, 0
    %v267 = vsub.s32 0, %v72
    %v268 = vsel %vm266, %v267, %v72
    %v269 = vmul.u32.u64.compose %v268, 2863311531
    %v270 = vextract.low.u32 %v269
    %v271 = vextract.high.u32 %v269
    %v272 = vshrl.u32 %v271, 5
    %v273 = vmul.u32 %v272, 48
    %v274 = vsub.s32 %v268, %v273
    %v275 = vsub.s32 0, %v274
    %v276 = vsel %vm266, %v275, %v274
    %vm277 = vcmp.lt.s32.totalorder %v73, 0
    %v278 = vsub.s32 0, %v73
    %v279 = vsel %vm277, %v278, %v73
    %v280 = vmul.u32.u64.compose %v279, 2863311531
    %v281 = vextract.low.u32 %v280
    %v282 = vextract.high.u32 %v280
    %v283 = vshrl.u32 %v282, 5
    %v284 = vmul.u32 %v283, 48
    %v285 = vsub.s32 %v279, %v284
    %v286 = vsub.s32 0, %v285
    %v287 = vsel %vm277, %v286, %v285
    %vm288 = vcmp.lt.s32.totalorder %v74, 0
    %v289 = vsub.s32 0, %v74
    %v290 = vsel %vm288, %v289, %v74
    %v291 = vmul.u32.u64.compose %v290, 2863311531
    %v292 = vextract.low.u32 %v291
    %v293 = vextract.high.u32 %v291
    %v294 = vshrl.u32 %v293, 5
    %v295 = vmul.u32 %v294, 48
    %v296 = vsub.s32 %v290, %v295
    %v297 = vsub.s32 0, %v296
    %v298 = vsel %vm288, %v297, %v296
    %vm299 = vcmp.lt.s32.totalorder %v75, 0
    %v300 = vsub.s32 0, %v75
    %v301 = vsel %vm299, %v300, %v75
    %v302 = vmul.u32.u64.compose %v301, 2863311531
    %v303 = vextract.low.u32 %v302
    %v304 = vextract.high.u32 %v302
    %v305 = vshrl.u32 %v304, 5
    %v306 = vmul.u32 %v305, 48
    %v307 = vsub.s32 %v301, %v306
    %v308 = vsub.s32 0, %v307
    %v309 = vsel %vm299, %v308, %v307
    %vm310 = vcmp.lt.s32.totalorder %v76, 0
    %v311 = vsub.s32 0, %v76
    %v312 = vsel %vm310, %v311, %v76
    %v313 = vmul.u32.u64.compose %v312, 2863311531
    %v314 = vextract.low.u32 %v313
    %v315 = vextract.high.u32 %v313
    %v316 = vshrl.u32 %v315, 5
    %v317 = vmul.u32 %v316, 48
    %v318 = vsub.s32 %v312, %v317
    %v319 = vsub.s32 0, %v318
    %v320 = vsel %vm310, %v319, %v318
    %vm321 = vcmp.lt.s32.totalorder %v77, 0
    %v322 = vsub.s32 0, %v77
    %v323 = vsel %vm321, %v322, %v77
    %v324 = vmul.u32.u64.compose %v323, 2863311531
    %v325 = vextract.low.u32 %v324
    %v326 = vextract.high.u32 %v324
    %v327 = vshrl.u32 %v326, 5
    %v328 = vmul.u32 %v327, 48
    %v329 = vsub.s32 %v323, %v328
    %v330 = vsub.s32 0, %v329
    %v331 = vsel %vm321, %v330, %v329
    %vm332 = vcmp.lt.s32.totalorder %v78, 0
    %v333 = vsub.s32 0, %v78
    %v334 = vsel %vm332, %v333, %v78
    %v335 = vmul.u32.u64.compose %v334, 2863311531
    %v336 = vextract.low.u32 %v335
    %v337 = vextract.high.u32 %v335
    %v338 = vshrl.u32 %v337, 5
    %v339 = vmul.u32 %v338, 48
    %v340 = vsub.s32 %v334, %v339
    %v341 = vsub.s32 0, %v340
    %v342 = vsel %vm332, %v341, %v340
    %vm343 = vcmp.ne.s32.totalorder %v89, 0
    %vm344 = vcmp.ne.s32.totalorder %v100, 0
    %vm345 = vcmp.ne.s32.totalorder %v111, 0
    %vm346 = vcmp.ne.s32.totalorder %v122, 0
    %vm347 = vcmp.ne.s32.totalorder %v133, 0
    %vm348 = vcmp.ne.s32.totalorder %v144, 0
    %vm349 = vcmp.ne.s32.totalorder %v155, 0
    %vm350 = vcmp.ne.s32.totalorder %v166, 0
    %vm351 = vcmp.ne.s32.totalorder %v177, 0
    %vm352 = vcmp.ne.s32.totalorder %v188, 0
    %vm353 = vcmp.ne.s32.totalorder %v199, 0
    %vm354 = vcmp.ne.s32.totalorder %v210, 0
    %vm355 = vcmp.ne.s32.totalorder %v221, 0
    %vm356 = vcmp.ne.s32.totalorder %v232, 0
    %vm357 = vcmp.ne.s32.totalorder %v243, 0
    %vm358 = vcmp.ne.s32.totalorder %v254, 0
    %vm359 = vcmp.ne.s32.totalorder %v265, 0
    %vm360 = vcmp.ne.s32.totalorder %v276, 0
    %vm361 = vcmp.ne.s32.totalorder %v287, 0
    %vm362 = vcmp.ne.s32.totalorder %v298, 0
    %vm363 = vcmp.ne.s32.totalorder %v309, 0
    %vm364 = vcmp.ne.s32.totalorder %v320, 0
    %vm365 = vcmp.ne.s32.totalorder %v331, 0
    %vm366 = vcmp.ne.s32.totalorder %v342, 0
    %vm367 = vcmp.lt.s32.totalorder %v89, 0
    %vm368 = vcmp.lt.s32.totalorder %v100, 0
    %vm369 = vcmp.lt.s32.totalorder %v111, 0
    %vm370 = vcmp.lt.s32.totalorder %v122, 0
    %vm371 = vcmp.lt.s32.totalorder %v133, 0
    %vm372 = vcmp.lt.s32.totalorder %v144, 0
    %vm373 = vcmp.lt.s32.totalorder %v155, 0
    %vm374 = vcmp.lt.s32.totalorder %v166, 0
    %vm375 = vcmp.lt.s32.totalorder %v177, 0
    %vm376 = vcmp.lt.s32.totalorder %v188, 0
    %vm377 = vcmp.lt.s32.totalorder %v199, 0
    %vm378 = vcmp.lt.s32.totalorder %v210, 0
    %vm379 = vcmp.lt.s32.totalorder %v221, 0
    %vm380 = vcmp.lt.s32.totalorder %v232, 0
    %vm381 = vcmp.lt.s32.totalorder %v243, 0
    %vm382 = vcmp.lt.s32.totalorder %v254, 0
    %vm383 = vcmp.lt.s32.totalorder %v265, 0
    %vm384 = vcmp.lt.s32.totalorder %v276, 0
    %vm385 = vcmp.lt.s32.totalorder %v287, 0
    %vm386 = vcmp.lt.s32.totalorder %v298, 0
    %vm387 = vcmp.lt.s32.totalorder %v309, 0
    %vm388 = vcmp.lt.s32.totalorder %v320, 0
    %vm389 = vcmp.lt.s32.totalorder %v331, 0
    %vm390 = vcmp.lt.s32.totalorder %v342, 0
    %vm391 = vmand %vm367, %vm343
    %vm392 = vmand %vm368, %vm344
    %vm393 = vmand %vm369, %vm345
    %vm394 = vmand %vm370, %vm346
    %vm395 = vmand %vm371, %vm347
    %vm396 = vmand %vm372, %vm348
    %vm397 = vmand %vm373, %vm349
    %vm398 = vmand %vm374, %vm350
    %vm399 = vmand %vm375, %vm351
    %vm400 = vmand %vm376, %vm352
    %vm401 = vmand %vm377, %vm353
    %vm402 = vmand %vm378, %vm354
    %vm403 = vmand %vm379, %vm355
    %vm404 = vmand %vm380, %vm356
    %vm405 = vmand %vm381, %vm357
    %vm406 = vmand %vm382, %vm358
    %vm407 = vmand %vm383, %vm359
    %vm408 = vmand %vm384, %vm360
    %vm409 = vmand %vm385, %vm361
    %vm410 = vmand %vm386, %vm362
    %vm411 = vmand %vm387, %vm363
    %vm412 = vmand %vm388, %vm364
    %vm413 = vmand %vm389, %vm365
    %vm414 = vmand %vm390, %vm366
    %v415 = vadd.s32 %v89, 48
    %v416 = vadd.s32 %v100, 48
    %v417 = vadd.s32 %v111, 48
    %v418 = vadd.s32 %v122, 48
    %v419 = vadd.s32 %v133, 48
    %v420 = vadd.s32 %v144, 48
    %v421 = vadd.s32 %v155, 48
    %v422 = vadd.s32 %v166, 48
    %v423 = vadd.s32 %v177, 48
    %v424 = vadd.s32 %v188, 48
    %v425 = vadd.s32 %v199, 48
    %v426 = vadd.s32 %v210, 48
    %v427 = vadd.s32 %v221, 48
    %v428 = vadd.s32 %v232, 48
    %v429 = vadd.s32 %v243, 48
    %v430 = vadd.s32 %v254, 48
    %v431 = vadd.s32 %v265, 48
    %v432 = vadd.s32 %v276, 48
    %v433 = vadd.s32 %v287, 48
    %v434 = vadd.s32 %v298, 48
    %v435 = vadd.s32 %v309, 48
    %v436 = vadd.s32 %v320, 48
    %v437 = vadd.s32 %v331, 48
    %v438 = vadd.s32 %v342, 48
    %v439 = vsel %vm391, %v415, %v89
    %v440 = vsel %vm392, %v416, %v100
    %v441 = vsel %vm393, %v417, %v111
    %v442 = vsel %vm394, %v418, %v122
    %v443 = vsel %vm395, %v419, %v133
    %v444 = vsel %vm396, %v420, %v144
    %v445 = vsel %vm397, %v421, %v155
    %v446 = vsel %vm398, %v422, %v166
    %v447 = vsel %vm399, %v423, %v177
    %v448 = vsel %vm400, %v424, %v188
    %v449 = vsel %vm401, %v425, %v199
    %v450 = vsel %vm402, %v426, %v210
    %v451 = vsel %vm403, %v427, %v221
    %v452 = vsel %vm404, %v428, %v232
    %v453 = vsel %vm405, %v429, %v243
    %v454 = vsel %vm406, %v430, %v254
    %v455 = vsel %vm407, %v431, %v265
    %v456 = vsel %vm408, %v432, %v276
    %v457 = vsel %vm409, %v433, %v287
    %v458 = vsel %vm410, %v434, %v298
    %v459 = vsel %vm411, %v435, %v309
    %v460 = vsel %vm412, %v436, %v320
    %v461 = vsel %vm413, %v437, %v331
    %v462 = vsel %vm414, %v438, %v342
    %s463 = sld [smem:[#allocation3]]
    %v464 = vstv %s463
    %v465 = vadd.s32 %v464, %v439
    %v466 = vadd.s32 %v464, %v440
    %v467 = vadd.s32 %v464, %v441
    %v468 = vadd.s32 %v464, %v442
    %v469 = vadd.s32 %v464, %v443
    %v470 = vadd.s32 %v464, %v444
    %v471 = vadd.s32 %v464, %v445
    %v472 = vadd.s32 %v464, %v446
    %v473 = vadd.s32 %v464, %v447
    %v474 = vadd.s32 %v464, %v448
    %v475 = vadd.s32 %v464, %v449
    %v476 = vadd.s32 %v464, %v450
    %v477 = vadd.s32 %v464, %v451
    %v478 = vadd.s32 %v464, %v452
    %v479 = vadd.s32 %v464, %v453
    %v480 = vadd.s32 %v464, %v454
    %v481 = vadd.s32 %v464, %v455
    %v482 = vadd.s32 %v464, %v456
    %v483 = vadd.s32 %v464, %v457
    %v484 = vadd.s32 %v464, %v458
    %v485 = vadd.s32 %v464, %v459
    %v486 = vadd.s32 %v464, %v460
    %v487 = vadd.s32 %v464, %v461
    %v488 = vadd.s32 %v464, %v462
    %v489 = vcvt.s32.f32 %v465
    %v490 = vcvt.s32.f32 %v466
    %v491 = vcvt.s32.f32 %v467
    %v492 = vcvt.s32.f32 %v468
    %v493 = vcvt.s32.f32 %v469
    %v494 = vcvt.s32.f32 %v470
    %v495 = vcvt.s32.f32 %v471
    %v496 = vcvt.s32.f32 %v472
    %v497 = vcvt.s32.f32 %v473
    %v498 = vcvt.s32.f32 %v474
    %v499 = vcvt.s32.f32 %v475
    %v500 = vcvt.s32.f32 %v476
    %v501 = vcvt.s32.f32 %v477
    %v502 = vcvt.s32.f32 %v478
    %v503 = vcvt.s32.f32 %v479
    %v504 = vcvt.s32.f32 %v480
    %v505 = vcvt.s32.f32 %v481
    %v506 = vcvt.s32.f32 %v482
    %v507 = vcvt.s32.f32 %v483
    %v508 = vcvt.s32.f32 %v484
    %v509 = vcvt.s32.f32 %v485
    %v510 = vcvt.s32.f32 %v486
    %v511 = vcvt.s32.f32 %v487
    %v512 = vcvt.s32.f32 %v488
    %v513 = vld [vmem:[%s2] ss:$2 sm:$0x3]
    %v515 = vlaneseq
    %v516 = vshrl.u32 %v515, 7
    %v517 = vsub.s32 0, %v516
    %v518 = vrot.slane %v513, %v517
    %v519 = vlaneseq
    %v520 = vshrl.u32 %v519, 7
    %v521 = vsub.s32 1, %v520
    %v522 = vrot.slane %v513, %v521
    %v525 = vmul.f32 %v489, %v518
    %v526 = vmul.f32 %v489, %v522
    %v527 = vmul.f32 %v490, %v518
    %v528 = vmul.f32 %v490, %v522
    %v529 = vmul.f32 %v491, %v518
    %v530 = vmul.f32 %v491, %v522
    %v531 = vmul.f32 %v492, %v518
    %v532 = vmul.f32 %v492, %v522
    %v533 = vmul.f32 %v493, %v518
    %v534 = vmul.f32 %v493, %v522
    %v535 = vmul.f32 %v494, %v518
    %v536 = vmul.f32 %v494, %v522
    %v537 = vmul.f32 %v495, %v518
    %v538 = vmul.f32 %v495, %v522
    %v539 = vmul.f32 %v496, %v518
    %v540 = vmul.f32 %v496, %v522
    %v541 = vmul.f32 %v497, %v518
    %v542 = vmul.f32 %v497, %v522
    %v543 = vmul.f32 %v498, %v518
    %v544 = vmul.f32 %v498, %v522
    %v545 = vmul.f32 %v499, %v518
    %v546 = vmul.f32 %v499, %v522
    %v547 = vmul.f32 %v500, %v518
    %v548 = vmul.f32 %v500, %v522
    %v549 = vmul.f32 %v501, %v518
    %v550 = vmul.f32 %v501, %v522
    %v551 = vmul.f32 %v502, %v518
    %v552 = vmul.f32 %v502, %v522
    %v553 = vmul.f32 %v503, %v518
    %v554 = vmul.f32 %v503, %v522
    %v555 = vmul.f32 %v504, %v518
    %v556 = vmul.f32 %v504, %v522
    %v557 = vmul.f32 %v505, %v518
    %v558 = vmul.f32 %v505, %v522
    %v559 = vmul.f32 %v506, %v518
    %v560 = vmul.f32 %v506, %v522
    %v561 = vmul.f32 %v507, %v518
    %v562 = vmul.f32 %v507, %v522
    %v563 = vmul.f32 %v508, %v518
    %v564 = vmul.f32 %v508, %v522
    %v565 = vmul.f32 %v509, %v518
    %v566 = vmul.f32 %v509, %v522
    %v567 = vmul.f32 %v510, %v518
    %v568 = vmul.f32 %v510, %v522
    %v569 = vmul.f32 %v511, %v518
    %v570 = vmul.f32 %v511, %v522
    %v571 = vmul.f32 %v512, %v518
    %v572 = vmul.f32 %v512, %v522
    %s573 = scalar_lea.vmem %s2, 1
    %v574 = vld [vmem:[%s573] ss:$2 sm:$0x3]
    %v576 = vlaneseq
    %v577 = vshrl.u32 %v576, 7
    %v578 = vsub.s32 0, %v577
    %v579 = vrot.slane %v574, %v578
    %v580 = vlaneseq
    %v581 = vshrl.u32 %v580, 7
    %v582 = vsub.s32 1, %v581
    %v583 = vrot.slane %v574, %v582
    %v586 = vadd.f32 %v525, %v579
    %v587 = vadd.f32 %v526, %v583
    %v588 = vadd.f32 %v527, %v579
    %v589 = vadd.f32 %v528, %v583
    %v590 = vadd.f32 %v529, %v579
    %v591 = vadd.f32 %v530, %v583
    %v592 = vadd.f32 %v531, %v579
    %v593 = vadd.f32 %v532, %v583
    %v594 = vadd.f32 %v533, %v579
    %v595 = vadd.f32 %v534, %v583
    %v596 = vadd.f32 %v535, %v579
    %v597 = vadd.f32 %v536, %v583
    %v598 = vadd.f32 %v537, %v579
    %v599 = vadd.f32 %v538, %v583
    %v600 = vadd.f32 %v539, %v579
    %v601 = vadd.f32 %v540, %v583
    %v602 = vadd.f32 %v541, %v579
    %v603 = vadd.f32 %v542, %v583
    %v604 = vadd.f32 %v543, %v579
    %v605 = vadd.f32 %v544, %v583
    %v606 = vadd.f32 %v545, %v579
    %v607 = vadd.f32 %v546, %v583
    %v608 = vadd.f32 %v547, %v579
    %v609 = vadd.f32 %v548, %v583
    %v610 = vadd.f32 %v549, %v579
    %v611 = vadd.f32 %v550, %v583
    %v612 = vadd.f32 %v551, %v579
    %v613 = vadd.f32 %v552, %v583
    %v614 = vadd.f32 %v553, %v579
    %v615 = vadd.f32 %v554, %v583
    %v616 = vadd.f32 %v555, %v579
    %v617 = vadd.f32 %v556, %v583
    %v618 = vadd.f32 %v557, %v579
    %v619 = vadd.f32 %v558, %v583
    %v620 = vadd.f32 %v559, %v579
    %v621 = vadd.f32 %v560, %v583
    %v622 = vadd.f32 %v561, %v579
    %v623 = vadd.f32 %v562, %v583
    %v624 = vadd.f32 %v563, %v579
    %v625 = vadd.f32 %v564, %v583
    %v626 = vadd.f32 %v565, %v579
    %v627 = vadd.f32 %v566, %v583
    %v628 = vadd.f32 %v567, %v579
    %v629 = vadd.f32 %v568, %v583
    %v630 = vadd.f32 %v569, %v579
    %v631 = vadd.f32 %v570, %v583
    %v632 = vadd.f32 %v571, %v579
    %v633 = vadd.f32 %v572, %v583
    %v634 = vand.u32 2147483647, %v586
    %vm635 = vcmp.le.f32.partialorder %v634, 0.7853982
    %vm636 = vcmp.lt.s32.totalorder %v586, 0
    %v637 = vand.u32 %v586, 2139095040
    %v638 = vshrl.u32 %v637, 23
    %v639 = vsub.s32 %v638, 127
    %v640 = vand.u32 2147483647, %v586
    %v641 = vand.u32 %v640, 8388607
    %v642 = vor.u32 %v641, 8388608
    %v643 = vsub.s32 0, %v642
    %v644 = vadd.s32 %v639, 1
    %vm645 = vcmp.gt.s32.totalorder %v644, 0
    %v646 = vsel %vm645, %v644, 0
    %v647 = vshrl.u32 %v646, 5
    %v648 = vand.u32 %v646, 31
    %v649 = vsub.s32 32, %v648
    %v650 = vshrl.u32 683565275, %v649
    %v651 = vshll.u32 683565275, %v648
    %v652 = vshrl.u32 2475754826, %v649
    %v653 = vor.u32 %v651, %v652
    %v654 = vshll.u32 2475754826, %v648
    %v655 = vshrl.u32 2131351028, %v649
    %v656 = vor.u32 %v654, %v655
    %v657 = vshll.u32 2131351028, %v648
    %v658 = vshrl.u32 2102212464, %v649
    %v659 = vor.u32 %v657, %v658
    %v660 = vshll.u32 2102212464, %v648
    %v661 = vshrl.u32 920167782, %v649
    %v662 = vor.u32 %v660, %v661
    %v663 = vshll.u32 920167782, %v648
    %v664 = vshrl.u32 1326507024, %v649
    %v665 = vor.u32 %v663, %v664
    %vm666 = vcmp.lt.s32.totalorder %v647, 1
    %vm667 = vcmp.lt.s32.totalorder %v647, 2
    %vm668 = vcmp.lt.s32.totalorder %v647, 3
    %vm669 = vcmp.lt.s32.totalorder %v647, 4
    %v670 = vsel %vm666, %v650, %v653
    %v671 = vsel %vm669, %v659, 2102212464
    %v672 = vsel %vm668, %v656, %v671
    %v673 = vsel %vm667, %v670, %v672
    %v674 = vsel %vm666, %v653, %v656
    %v675 = vsel %vm669, %v662, 920167782
    %v676 = vsel %vm668, %v659, %v675
    %v677 = vsel %vm667, %v674, %v676
    %v678 = vsel %vm666, %v656, %v659
    %v679 = vsel %vm669, %v665, 1326507024
    %v680 = vsel %vm668, %v662, %v679
    %v681 = vsel %vm667, %v678, %v680
    %v682 = vshll.u32 %v642, 8
    %v683 = vmul.u32.u64.compose %v682, %v681
    %v684 = vextract.low.u32 %v683
    %v685 = vextract.high.u32 %v683
    %v686 = vmul.u32.u64.compose %v682, %v677
    %v687 = vextract.low.u32 %v686
    %v688 = vextract.high.u32 %v686
    %v689 = vmul.u32 %v682, %v673
    %v690 = vadd.s32 %v685, %v687
    %vm691 = vc.u32 %v685, %v687
    %v692 = vadd.s32 %v688, 1
    %v693 = vsel %vm691, %v692, %v688
    %v694 = vadd.s32 %v689, %v693
    %v695 = vadd.s32 %v694, 536870912
    %v696 = vshrl.u32 %v695, 30
    %v697 = vshll.u32 %v696, 30
    %v698 = vsub.s32 %v694, %v697
    %vm699 = vcmp.lt.s32.totalorder %v698, 0
    %v700 = vsub.s32 0, %v698
    %v701 = vsel %vm699, %v700, %v698
    %v702 = vclz %v701
    %v703 = vsub.s32 %v702, 2
    %vm704 = vcmp.gt.s32.totalorder 0, %v703
    %v705 = vsel %vm704, 0, %v703
    %v706 = vsub.s32 32, %v705
    %v707 = vshll.u32 %v698, %v705
    %v708 = vshrl.u32 %v690, %v706
    %v709 = vor.u32 %v707, %v708
    %v710 = vsub.s32 4294967266, %v705
    %v711 = vadd.s32 %v710, 127
    %v712 = vshll.u32 %v711, 23
    %v713 = vor.u32 4788187, %v712
    %v714 = vand.u32 2147483647, %v713
    %v716 = vcvt.s32.f32 %v709
    %v717 = vmul.f32 %v716, %v714
    %v718 = vxor.u32 %v717, 2147483648
    %v719 = vsel %vm636, %v718, %v717
    %v720 = vsub.s32 4, %v696
    %v721 = vsel %vm636, %v720, %v696
    %v722 = vsel %vm635, %v586, %v719
    %v723 = vsel %vm635, 0, %v721
    %v724 = vcosq.f32.pop %v722
    %v725 = vsinq.f32.pop %v722
    %vm726 = vweird.f32 %v586
    %v727 = vadd.s32 %v723, 3
    %v728 = vand.u32 %v727, 3
    %vm729 = vcmp.lt.s32.totalorder %v728, 2
    %vm730 = vcmp.eq.s32.totalorder %v728, 0
    %v731 = vxor.u32 %v725, 2147483648
    %v732 = vsel %vm730, %v724, %v731
    %vm733 = vcmp.eq.s32.totalorder %v728, 2
    %v734 = vxor.u32 %v724, 2147483648
    %v735 = vsel %vm733, %v734, %v725
    %v736 = vsel %vm729, %v732, %v735
    %v737 = vsel %vm726, nan, %v736
    %v738 = vand.u32 2147483647, %v587
    %vm739 = vcmp.le.f32.partialorder %v738, 0.7853982
    %vm740 = vcmp.lt.s32.totalorder %v587, 0
    %v741 = vand.u32 %v587, 2139095040
    %v742 = vshrl.u32 %v741, 23
    %v743 = vsub.s32 %v742, 127
    %v744 = vand.u32 2147483647, %v587
    %v745 = vand.u32 %v744, 8388607
    %v746 = vor.u32 %v745, 8388608
    %v747 = vsub.s32 0, %v746
    %v748 = vadd.s32 %v743, 1
    %vm749 = vcmp.gt.s32.totalorder %v748, 0
    %v750 = vsel %vm749, %v748, 0
    %v751 = vshrl.u32 %v750, 5
    %v752 = vand.u32 %v750, 31
    %v753 = vsub.s32 32, %v752
    %v754 = vshrl.u32 683565275, %v753
    %v755 = vshll.u32 683565275, %v752
    %v756 = vshrl.u32 2475754826, %v753
    %v757 = vor.u32 %v755, %v756
    %v758 = vshll.u32 2475754826, %v752
    %v759 = vshrl.u32 2131351028, %v753
    %v760 = vor.u32 %v758, %v759
    %v761 = vshll.u32 2131351028, %v752
    %v762 = vshrl.u32 2102212464, %v753
    %v763 = vor.u32 %v761, %v762
    %v764 = vshll.u32 2102212464, %v752
    %v765 = vshrl.u32 920167782, %v753
    %v766 = vor.u32 %v764, %v765
    %v767 = vshll.u32 920167782, %v752
    %v768 = vshrl.u32 1326507024, %v753
    %v769 = vor.u32 %v767, %v768
    %vm770 = vcmp.lt.s32.totalorder %v751, 1
    %vm771 = vcmp.lt.s32.totalorder %v751, 2
    %vm772 = vcmp.lt.s32.totalorder %v751, 3
    %vm773 = vcmp.lt.s32.totalorder %v751, 4
    %v774 = vsel %vm770, %v754, %v757
    %v775 = vsel %vm773, %v763, 2102212464
    %v776 = vsel %vm772, %v760, %v775
    %v777 = vsel %vm771, %v774, %v776
    %v778 = vsel %vm770, %v757, %v760
    %v779 = vsel %vm773, %v766, 920167782
    %v780 = vsel %vm772, %v763, %v779
    %v781 = vsel %vm771, %v778, %v780
    %v782 = vsel %vm770, %v760, %v763
    %v783 = vsel %vm773, %v769, 1326507024
    %v784 = vsel %vm772, %v766, %v783
    %v785 = vsel %vm771, %v782, %v784
    %v786 = vshll.u32 %v746, 8
    %v787 = vmul.u32.u64.compose %v786, %v785
    %v788 = vextract.low.u32 %v787
    %v789 = vextract.high.u32 %v787
    %v790 = vmul.u32.u64.compose %v786, %v781
    %v791 = vextract.low.u32 %v790
    %v792 = vextract.high.u32 %v790
    %v793 = vmul.u32 %v786, %v777
    %v794 = vadd.s32 %v789, %v791
    %vm795 = vc.u32 %v789, %v791
    %v796 = vadd.s32 %v792, 1
    %v797 = vsel %vm795, %v796, %v792
    %v798 = vadd.s32 %v793, %v797
    %v799 = vadd.s32 %v798, 536870912
    %v800 = vshrl.u32 %v799, 30
    %v801 = vshll.u32 %v800, 30
    %v802 = vsub.s32 %v798, %v801
    %vm803 = vcmp.lt.s32.totalorder %v802, 0
    %v804 = vsub.s32 0, %v802
    %v805 = vsel %vm803, %v804, %v802
    %v806 = vclz %v805
    %v807 = vsub.s32 %v806, 2
    %vm808 = vcmp.gt.s32.totalorder 0, %v807
    %v809 = vsel %vm808, 0, %v807
    %v810 = vsub.s32 32, %v809
    %v811 = vshll.u32 %v802, %v809
    %v812 = vshrl.u32 %v794, %v810
    %v813 = vor.u32 %v811, %v812
    %v814 = vsub.s32 4294967266, %v809
    %v815 = vadd.s32 %v814, 127
    %v816 = vshll.u32 %v815, 23
    %v817 = vor.u32 4788187, %v816
    %v818 = vand.u32 2147483647, %v817
    %v820 = vcvt.s32.f32 %v813
    %v821 = vmul.f32 %v820, %v818
    %v822 = vxor.u32 %v821, 2147483648
    %v823 = vsel %vm740, %v822, %v821
    %v824 = vsub.s32 4, %v800
    %v825 = vsel %vm740, %v824, %v800
    %v826 = vsel %vm739, %v587, %v823
    %v827 = vsel %vm739, 0, %v825
    %v828 = vcosq.f32.pop %v826
    %v829 = vsinq.f32.pop %v826
    %vm830 = vweird.f32 %v587
    %v831 = vadd.s32 %v827, 3
    %v832 = vand.u32 %v831, 3
    %vm833 = vcmp.lt.s32.totalorder %v832, 2
    %vm834 = vcmp.eq.s32.totalorder %v832, 0
    %v835 = vxor.u32 %v829, 2147483648
    %v836 = vsel %vm834, %v828, %v835
    %vm837 = vcmp.eq.s32.totalorder %v832, 2
    %v838 = vxor.u32 %v828, 2147483648
    %v839 = vsel %vm837, %v838, %v829
    %v840 = vsel %vm833, %v836, %v839
    %v841 = vsel %vm830, nan, %v840
    %v842 = vand.u32 2147483647, %v588
    %vm843 = vcmp.le.f32.partialorder %v842, 0.7853982
    %vm844 = vcmp.lt.s32.totalorder %v588, 0
    %v845 = vand.u32 %v588, 2139095040
    %v846 = vshrl.u32 %v845, 23
    %v847 = vsub.s32 %v846, 127
    %v848 = vand.u32 2147483647, %v588
    %v849 = vand.u32 %v848, 8388607
    %v850 = vor.u32 %v849, 8388608
    %v851 = vsub.s32 0, %v850
    %v852 = vadd.s32 %v847, 1
    %vm853 = vcmp.gt.s32.totalorder %v852, 0
    %v854 = vsel %vm853, %v852, 0
    %v855 = vshrl.u32 %v854, 5
    %v856 = vand.u32 %v854, 31
    %v857 = vsub.s32 32, %v856
    %v858 = vshrl.u32 683565275, %v857
    %v859 = vshll.u32 683565275, %v856
    %v860 = vshrl.u32 2475754826, %v857
    %v861 = vor.u32 %v859, %v860
    %v862 = vshll.u32 2475754826, %v856
    %v863 = vshrl.u32 2131351028, %v857
    %v864 = vor.u32 %v862, %v863
    %v865 = vshll.u32 2131351028, %v856
    %v866 = vshrl.u32 2102212464, %v857
    %v867 = vor.u32 %v865, %v866
    %v868 = vshll.u32 2102212464, %v856
    %v869 = vshrl.u32 920167782, %v857
    %v870 = vor.u32 %v868, %v869
    %v871 = vshll.u32 920167782, %v856
    %v872 = vshrl.u32 1326507024, %v857
    %v873 = vor.u32 %v871, %v872
    %vm874 = vcmp.lt.s32.totalorder %v855, 1
    %vm875 = vcmp.lt.s32.totalorder %v855, 2
    %vm876 = vcmp.lt.s32.totalorder %v855, 3
    %vm877 = vcmp.lt.s32.totalorder %v855, 4
    %v878 = vsel %vm874, %v858, %v861
    %v879 = vsel %vm877, %v867, 2102212464
    %v880 = vsel %vm876, %v864, %v879
    %v881 = vsel %vm875, %v878, %v880
    %v882 = vsel %vm874, %v861, %v864
    %v883 = vsel %vm877, %v870, 920167782
    %v884 = vsel %vm876, %v867, %v883
    %v885 = vsel %vm875, %v882, %v884
    %v886 = vsel %vm874, %v864, %v867
    %v887 = vsel %vm877, %v873, 1326507024
    %v888 = vsel %vm876, %v870, %v887
    %v889 = vsel %vm875, %v886, %v888
    %v890 = vshll.u32 %v850, 8
    %v891 = vmul.u32.u64.compose %v890, %v889
    %v892 = vextract.low.u32 %v891
    %v893 = vextract.high.u32 %v891
    %v894 = vmul.u32.u64.compose %v890, %v885
    %v895 = vextract.low.u32 %v894
    %v896 = vextract.high.u32 %v894
    %v897 = vmul.u32 %v890, %v881
    %v898 = vadd.s32 %v893, %v895
    %vm899 = vc.u32 %v893, %v895
    %v900 = vadd.s32 %v896, 1
    %v901 = vsel %vm899, %v900, %v896
    %v902 = vadd.s32 %v897, %v901
    %v903 = vadd.s32 %v902, 536870912
    %v904 = vshrl.u32 %v903, 30
    %v905 = vshll.u32 %v904, 30
    %v906 = vsub.s32 %v902, %v905
    %vm907 = vcmp.lt.s32.totalorder %v906, 0
    %v908 = vsub.s32 0, %v906
    %v909 = vsel %vm907, %v908, %v906
    %v910 = vclz %v909
    %v911 = vsub.s32 %v910, 2
    %vm912 = vcmp.gt.s32.totalorder 0, %v911
    %v913 = vsel %vm912, 0, %v911
    %v914 = vsub.s32 32, %v913
    %v915 = vshll.u32 %v906, %v913
    %v916 = vshrl.u32 %v898, %v914
    %v917 = vor.u32 %v915, %v916
    %v918 = vsub.s32 4294967266, %v913
    %v919 = vadd.s32 %v918, 127
    %v920 = vshll.u32 %v919, 23
    %v921 = vor.u32 4788187, %v920
    %v922 = vand.u32 2147483647, %v921
    %v924 = vcvt.s32.f32 %v917
    %v925 = vmul.f32 %v924, %v922
    %v926 = vxor.u32 %v925, 2147483648
    %v927 = vsel %vm844, %v926, %v925
    %v928 = vsub.s32 4, %v904
    %v929 = vsel %vm844, %v928, %v904
    %v930 = vsel %vm843, %v588, %v927
    %v931 = vsel %vm843, 0, %v929
    %v932 = vcosq.f32.pop %v930
    %v933 = vsinq.f32.pop %v930
    %vm934 = vweird.f32 %v588
    %v935 = vadd.s32 %v931, 3
    %v936 = vand.u32 %v935, 3
    %vm937 = vcmp.lt.s32.totalorder %v936, 2
    %vm938 = vcmp.eq.s32.totalorder %v936, 0
    %v939 = vxor.u32 %v933, 2147483648
    %v940 = vsel %vm938, %v932, %v939
    %vm941 = vcmp.eq.s32.totalorder %v936, 2
    %v942 = vxor.u32 %v932, 2147483648
    %v943 = vsel %vm941, %v942, %v933
    %v944 = vsel %vm937, %v940, %v943
    %v945 = vsel %vm934, nan, %v944
    %v946 = vand.u32 2147483647, %v589
    %vm947 = vcmp.le.f32.partialorder %v946, 0.7853982
    %vm948 = vcmp.lt.s32.totalorder %v589, 0
    %v949 = vand.u32 %v589, 2139095040
    %v950 = vshrl.u32 %v949, 23
    %v951 = vsub.s32 %v950, 127
    %v952 = vand.u32 2147483647, %v589
    %v953 = vand.u32 %v952, 8388607
    %v954 = vor.u32 %v953, 8388608
    %v955 = vsub.s32 0, %v954
    %v956 = vadd.s32 %v951, 1
    %vm957 = vcmp.gt.s32.totalorder %v956, 0
    %v958 = vsel %vm957, %v956, 0
    %v959 = vshrl.u32 %v958, 5
    %v960 = vand.u32 %v958, 31
    %v961 = vsub.s32 32, %v960
    %v962 = vshrl.u32 683565275, %v961
    %v963 = vshll.u32 683565275, %v960
    %v964 = vshrl.u32 2475754826, %v961
    %v965 = vor.u32 %v963, %v964
    %v966 = vshll.u32 2475754826, %v960
    %v967 = vshrl.u32 2131351028, %v961
    %v968 = vor.u32 %v966, %v967
    %v969 = vshll.u32 2131351028, %v960
    %v970 = vshrl.u32 2102212464, %v961
    %v971 = vor.u32 %v969, %v970
    %v972 = vshll.u32 2102212464, %v960
    %v973 = vshrl.u32 920167782, %v961
    %v974 = vor.u32 %v972, %v973
    %v975 = vshll.u32 920167782, %v960
    %v976 = vshrl.u32 1326507024, %v961
    %v977 = vor.u32 %v975, %v976
    %vm978 = vcmp.lt.s32.totalorder %v959, 1
    %vm979 = vcmp.lt.s32.totalorder %v959, 2
    %vm980 = vcmp.lt.s32.totalorder %v959, 3
    %vm981 = vcmp.lt.s32.totalorder %v959, 4
    %v982 = vsel %vm978, %v962, %v965
    %v983 = vsel %vm981, %v971, 2102212464
    %v984 = vsel %vm980, %v968, %v983
    %v985 = vsel %vm979, %v982, %v984
    %v986 = vsel %vm978, %v965, %v968
    %v987 = vsel %vm981, %v974, 920167782
    %v988 = vsel %vm980, %v971, %v987
    %v989 = vsel %vm979, %v986, %v988
    %v990 = vsel %vm978, %v968, %v971
    %v991 = vsel %vm981, %v977, 1326507024
    %v992 = vsel %vm980, %v974, %v991
    %v993 = vsel %vm979, %v990, %v992
    %v994 = vshll.u32 %v954, 8
    %v995 = vmul.u32.u64.compose %v994, %v993
    %v996 = vextract.low.u32 %v995
    %v997 = vextract.high.u32 %v995
    %v998 = vmul.u32.u64.compose %v994, %v989
    %v999 = vextract.low.u32 %v998
    %v1000 = vextract.high.u32 %v998
    %v1001 = vmul.u32 %v994, %v985
    %v1002 = vadd.s32 %v997, %v999
    %vm1003 = vc.u32 %v997, %v999
    %v1004 = vadd.s32 %v1000, 1
    %v1005 = vsel %vm1003, %v1004, %v1000
    %v1006 = vadd.s32 %v1001, %v1005
    %v1007 = vadd.s32 %v1006, 536870912
    %v1008 = vshrl.u32 %v1007, 30
    %v1009 = vshll.u32 %v1008, 30
    %v1010 = vsub.s32 %v1006, %v1009
    %vm1011 = vcmp.lt.s32.totalorder %v1010, 0
    %v1012 = vsub.s32 0, %v1010
    %v1013 = vsel %vm1011, %v1012, %v1010
    %v1014 = vclz %v1013
    %v1015 = vsub.s32 %v1014, 2
    %vm1016 = vcmp.gt.s32.totalorder 0, %v1015
    %v1017 = vsel %vm1016, 0, %v1015
    %v1018 = vsub.s32 32, %v1017
    %v1019 = vshll.u32 %v1010, %v1017
    %v1020 = vshrl.u32 %v1002, %v1018
    %v1021 = vor.u32 %v1019, %v1020
    %v1022 = vsub.s32 4294967266, %v1017
    %v1023 = vadd.s32 %v1022, 127
    %v1024 = vshll.u32 %v1023, 23
    %v1025 = vor.u32 4788187, %v1024
    %v1026 = vand.u32 2147483647, %v1025
    %v1028 = vcvt.s32.f32 %v1021
    %v1029 = vmul.f32 %v1028, %v1026
    %v1030 = vxor.u32 %v1029, 2147483648
    %v1031 = vsel %vm948, %v1030, %v1029
    %v1032 = vsub.s32 4, %v1008
    %v1033 = vsel %vm948, %v1032, %v1008
    %v1034 = vsel %vm947, %v589, %v1031
    %v1035 = vsel %vm947, 0, %v1033
    %v1036 = vcosq.f32.pop %v1034
    %v1037 = vsinq.f32.pop %v1034
    %vm1038 = vweird.f32 %v589
    %v1039 = vadd.s32 %v1035, 3
    %v1040 = vand.u32 %v1039, 3
    %vm1041 = vcmp.lt.s32.totalorder %v1040, 2
    %vm1042 = vcmp.eq.s32.totalorder %v1040, 0
    %v1043 = vxor.u32 %v1037, 2147483648
    %v1044 = vsel %vm1042, %v1036, %v1043
    %vm1045 = vcmp.eq.s32.totalorder %v1040, 2
    %v1046 = vxor.u32 %v1036, 2147483648
    %v1047 = vsel %vm1045, %v1046, %v1037
    %v1048 = vsel %vm1041, %v1044, %v1047
    %v1049 = vsel %vm1038, nan, %v1048
    %v1050 = vand.u32 2147483647, %v590
    %vm1051 = vcmp.le.f32.partialorder %v1050, 0.7853982
    %vm1052 = vcmp.lt.s32.totalorder %v590, 0
    %v1053 = vand.u32 %v590, 2139095040
    %v1054 = vshrl.u32 %v1053, 23
    %v1055 = vsub.s32 %v1054, 127
    %v1056 = vand.u32 2147483647, %v590
    %v1057 = vand.u32 %v1056, 8388607
    %v1058 = vor.u32 %v1057, 8388608
    %v1059 = vsub.s32 0, %v1058
    %v1060 = vadd.s32 %v1055, 1
    %vm1061 = vcmp.gt.s32.totalorder %v1060, 0
    %v1062 = vsel %vm1061, %v1060, 0
    %v1063 = vshrl.u32 %v1062, 5
    %v1064 = vand.u32 %v1062, 31
    %v1065 = vsub.s32 32, %v1064
    %v1066 = vshrl.u32 683565275, %v1065
    %v1067 = vshll.u32 683565275, %v1064
    %v1068 = vshrl.u32 2475754826, %v1065
    %v1069 = vor.u32 %v1067, %v1068
    %v1070 = vshll.u32 2475754826, %v1064
    %v1071 = vshrl.u32 2131351028, %v1065
    %v1072 = vor.u32 %v1070, %v1071
    %v1073 = vshll.u32 2131351028, %v1064
    %v1074 = vshrl.u32 2102212464, %v1065
    %v1075 = vor.u32 %v1073, %v1074
    %v1076 = vshll.u32 2102212464, %v1064
    %v1077 = vshrl.u32 920167782, %v1065
    %v1078 = vor.u32 %v1076, %v1077
    %v1079 = vshll.u32 920167782, %v1064
    %v1080 = vshrl.u32 1326507024, %v1065
    %v1081 = vor.u32 %v1079, %v1080
    %vm1082 = vcmp.lt.s32.totalorder %v1063, 1
    %vm1083 = vcmp.lt.s32.totalorder %v1063, 2
    %vm1084 = vcmp.lt.s32.totalorder %v1063, 3
    %vm1085 = vcmp.lt.s32.totalorder %v1063, 4
    %v1086 = vsel %vm1082, %v1066, %v1069
    %v1087 = vsel %vm1085, %v1075, 2102212464
    %v1088 = vsel %vm1084, %v1072, %v1087
    %v1089 = vsel %vm1083, %v1086, %v1088
    %v1090 = vsel %vm1082, %v1069, %v1072
    %v1091 = vsel %vm1085, %v1078, 920167782
    %v1092 = vsel %vm1084, %v1075, %v1091
    %v1093 = vsel %vm1083, %v1090, %v1092
    %v1094 = vsel %vm1082, %v1072, %v1075
    %v1095 = vsel %vm1085, %v1081, 1326507024
    %v1096 = vsel %vm1084, %v1078, %v1095
    %v1097 = vsel %vm1083, %v1094, %v1096
    %v1098 = vshll.u32 %v1058, 8
    %v1099 = vmul.u32.u64.compose %v1098, %v1097
    %v1100 = vextract.low.u32 %v1099
    %v1101 = vextract.high.u32 %v1099
    %v1102 = vmul.u32.u64.compose %v1098, %v1093
    %v1103 = vextract.low.u32 %v1102
    %v1104 = vextract.high.u32 %v1102
    %v1105 = vmul.u32 %v1098, %v1089
    %v1106 = vadd.s32 %v1101, %v1103
    %vm1107 = vc.u32 %v1101, %v1103
    %v1108 = vadd.s32 %v1104, 1
    %v1109 = vsel %vm1107, %v1108, %v1104
    %v1110 = vadd.s32 %v1105, %v1109
    %v1111 = vadd.s32 %v1110, 536870912
    %v1112 = vshrl.u32 %v1111, 30
    %v1113 = vshll.u32 %v1112, 30
    %v1114 = vsub.s32 %v1110, %v1113
    %vm1115 = vcmp.lt.s32.totalorder %v1114, 0
    %v1116 = vsub.s32 0, %v1114
    %v1117 = vsel %vm1115, %v1116, %v1114
    %v1118 = vclz %v1117
    %v1119 = vsub.s32 %v1118, 2
    %vm1120 = vcmp.gt.s32.totalorder 0, %v1119
    %v1121 = vsel %vm1120, 0, %v1119
    %v1122 = vsub.s32 32, %v1121
    %v1123 = vshll.u32 %v1114, %v1121
    %v1124 = vshrl.u32 %v1106, %v1122
    %v1125 = vor.u32 %v1123, %v1124
    %v1126 = vsub.s32 4294967266, %v1121
    %v1127 = vadd.s32 %v1126, 127
    %v1128 = vshll.u32 %v1127, 23
    %v1129 = vor.u32 4788187, %v1128
    %v1130 = vand.u32 2147483647, %v1129
    %v1132 = vcvt.s32.f32 %v1125
    %v1133 = vmul.f32 %v1132, %v1130
    %v1134 = vxor.u32 %v1133, 2147483648
    %v1135 = vsel %vm1052, %v1134, %v1133
    %v1136 = vsub.s32 4, %v1112
    %v1137 = vsel %vm1052, %v1136, %v1112
    %v1138 = vsel %vm1051, %v590, %v1135
    %v1139 = vsel %vm1051, 0, %v1137
    %v1140 = vcosq.f32.pop %v1138
    %v1141 = vsinq.f32.pop %v1138
    %vm1142 = vweird.f32 %v590
    %v1143 = vadd.s32 %v1139, 3
    %v1144 = vand.u32 %v1143, 3
    %vm1145 = vcmp.lt.s32.totalorder %v1144, 2
    %vm1146 = vcmp.eq.s32.totalorder %v1144, 0
    %v1147 = vxor.u32 %v1141, 2147483648
    %v1148 = vsel %vm1146, %v1140, %v1147
    %vm1149 = vcmp.eq.s32.totalorder %v1144, 2
    %v1150 = vxor.u32 %v1140, 2147483648
    %v1151 = vsel %vm1149, %v1150, %v1141
    %v1152 = vsel %vm1145, %v1148, %v1151
    %v1153 = vsel %vm1142, nan, %v1152
    %v1154 = vand.u32 2147483647, %v591
    %vm1155 = vcmp.le.f32.partialorder %v1154, 0.7853982
    %vm1156 = vcmp.lt.s32.totalorder %v591, 0
    %v1157 = vand.u32 %v591, 2139095040
    %v1158 = vshrl.u32 %v1157, 23
    %v1159 = vsub.s32 %v1158, 127
    %v1160 = vand.u32 2147483647, %v591
    %v1161 = vand.u32 %v1160, 8388607
    %v1162 = vor.u32 %v1161, 8388608
    %v1163 = vsub.s32 0, %v1162
    %v1164 = vadd.s32 %v1159, 1
    %vm1165 = vcmp.gt.s32.totalorder %v1164, 0
    %v1166 = vsel %vm1165, %v1164, 0
    %v1167 = vshrl.u32 %v1166, 5
    %v1168 = vand.u32 %v1166, 31
    %v1169 = vsub.s32 32, %v1168
    %v1170 = vshrl.u32 683565275, %v1169
    %v1171 = vshll.u32 683565275, %v1168
    %v1172 = vshrl.u32 2475754826, %v1169
    %v1173 = vor.u32 %v1171, %v1172
    %v1174 = vshll.u32 2475754826, %v1168
    %v1175 = vshrl.u32 2131351028, %v1169
    %v1176 = vor.u32 %v1174, %v1175
    %v1177 = vshll.u32 2131351028, %v1168
    %v1178 = vshrl.u32 2102212464, %v1169
    %v1179 = vor.u32 %v1177, %v1178
    %v1180 = vshll.u32 2102212464, %v1168
    %v1181 = vshrl.u32 920167782, %v1169
    %v1182 = vor.u32 %v1180, %v1181
    %v1183 = vshll.u32 920167782, %v1168
    %v1184 = vshrl.u32 1326507024, %v1169
    %v1185 = vor.u32 %v1183, %v1184
    %vm1186 = vcmp.lt.s32.totalorder %v1167, 1
    %vm1187 = vcmp.lt.s32.totalorder %v1167, 2
    %vm1188 = vcmp.lt.s32.totalorder %v1167, 3
    %vm1189 = vcmp.lt.s32.totalorder %v1167, 4
    %v1190 = vsel %vm1186, %v1170, %v1173
    %v1191 = vsel %vm1189, %v1179, 2102212464
    %v1192 = vsel %vm1188, %v1176, %v1191
    %v1193 = vsel %vm1187, %v1190, %v1192
    %v1194 = vsel %vm1186, %v1173, %v1176
    %v1195 = vsel %vm1189, %v1182, 920167782
    %v1196 = vsel %vm1188, %v1179, %v1195
    %v1197 = vsel %vm1187, %v1194, %v1196
    %v1198 = vsel %vm1186, %v1176, %v1179
    %v1199 = vsel %vm1189, %v1185, 1326507024
    %v1200 = vsel %vm1188, %v1182, %v1199
    %v1201 = vsel %vm1187, %v1198, %v1200
    %v1202 = vshll.u32 %v1162, 8
    %v1203 = vmul.u32.u64.compose %v1202, %v1201
    %v1204 = vextract.low.u32 %v1203
    %v1205 = vextract.high.u32 %v1203
    %v1206 = vmul.u32.u64.compose %v1202, %v1197
    %v1207 = vextract.low.u32 %v1206
    %v1208 = vextract.high.u32 %v1206
    %v1209 = vmul.u32 %v1202, %v1193
    %v1210 = vadd.s32 %v1205, %v1207
    %vm1211 = vc.u32 %v1205, %v1207
    %v1212 = vadd.s32 %v1208, 1
    %v1213 = vsel %vm1211, %v1212, %v1208
    %v1214 = vadd.s32 %v1209, %v1213
    %v1215 = vadd.s32 %v1214, 536870912
    %v1216 = vshrl.u32 %v1215, 30
    %v1217 = vshll.u32 %v1216, 30
    %v1218 = vsub.s32 %v1214, %v1217
    %vm1219 = vcmp.lt.s32.totalorder %v1218, 0
    %v1220 = vsub.s32 0, %v1218
    %v1221 = vsel %vm1219, %v1220, %v1218
    %v1222 = vclz %v1221
    %v1223 = vsub.s32 %v1222, 2
    %vm1224 = vcmp.gt.s32.totalorder 0, %v1223
    %v1225 = vsel %vm1224, 0, %v1223
    %v1226 = vsub.s32 32, %v1225
    %v1227 = vshll.u32 %v1218, %v1225
    %v1228 = vshrl.u32 %v1210, %v1226
    %v1229 = vor.u32 %v1227, %v1228
    %v1230 = vsub.s32 4294967266, %v1225
    %v1231 = vadd.s32 %v1230, 127
    %v1232 = vshll.u32 %v1231, 23
    %v1233 = vor.u32 4788187, %v1232
    %v1234 = vand.u32 2147483647, %v1233
    %v1236 = vcvt.s32.f32 %v1229
    %v1237 = vmul.f32 %v1236, %v1234
    %v1238 = vxor.u32 %v1237, 2147483648
    %v1239 = vsel %vm1156, %v1238, %v1237
    %v1240 = vsub.s32 4, %v1216
    %v1241 = vsel %vm1156, %v1240, %v1216
    %v1242 = vsel %vm1155, %v591, %v1239
    %v1243 = vsel %vm1155, 0, %v1241
    %v1244 = vcosq.f32.pop %v1242
    %v1245 = vsinq.f32.pop %v1242
    %vm1246 = vweird.f32 %v591
    %v1247 = vadd.s32 %v1243, 3
    %v1248 = vand.u32 %v1247, 3
    %vm1249 = vcmp.lt.s32.totalorder %v1248, 2
    %vm1250 = vcmp.eq.s32.totalorder %v1248, 0
    %v1251 = vxor.u32 %v1245, 2147483648
    %v1252 = vsel %vm1250, %v1244, %v1251
    %vm1253 = vcmp.eq.s32.totalorder %v1248, 2
    %v1254 = vxor.u32 %v1244, 2147483648
    %v1255 = vsel %vm1253, %v1254, %v1245
    %v1256 = vsel %vm1249, %v1252, %v1255
    %v1257 = vsel %vm1246, nan, %v1256
    %v1258 = vand.u32 2147483647, %v592
    %vm1259 = vcmp.le.f32.partialorder %v1258, 0.7853982
    %vm1260 = vcmp.lt.s32.totalorder %v592, 0
    %v1261 = vand.u32 %v592, 2139095040
    %v1262 = vshrl.u32 %v1261, 23
    %v1263 = vsub.s32 %v1262, 127
    %v1264 = vand.u32 2147483647, %v592
    %v1265 = vand.u32 %v1264, 8388607
    %v1266 = vor.u32 %v1265, 8388608
    %v1267 = vsub.s32 0, %v1266
    %v1268 = vadd.s32 %v1263, 1
    %vm1269 = vcmp.gt.s32.totalorder %v1268, 0
    %v1270 = vsel %vm1269, %v1268, 0
    %v1271 = vshrl.u32 %v1270, 5
    %v1272 = vand.u32 %v1270, 31
    %v1273 = vsub.s32 32, %v1272
    %v1274 = vshrl.u32 683565275, %v1273
    %v1275 = vshll.u32 683565275, %v1272
    %v1276 = vshrl.u32 2475754826, %v1273
    %v1277 = vor.u32 %v1275, %v1276
    %v1278 = vshll.u32 2475754826, %v1272
    %v1279 = vshrl.u32 2131351028, %v1273
    %v1280 = vor.u32 %v1278, %v1279
    %v1281 = vshll.u32 2131351028, %v1272
    %v1282 = vshrl.u32 2102212464, %v1273
    %v1283 = vor.u32 %v1281, %v1282
    %v1284 = vshll.u32 2102212464, %v1272
    %v1285 = vshrl.u32 920167782, %v1273
    %v1286 = vor.u32 %v1284, %v1285
    %v1287 = vshll.u32 920167782, %v1272
    %v1288 = vshrl.u32 1326507024, %v1273
    %v1289 = vor.u32 %v1287, %v1288
    %vm1290 = vcmp.lt.s32.totalorder %v1271, 1
    %vm1291 = vcmp.lt.s32.totalorder %v1271, 2
    %vm1292 = vcmp.lt.s32.totalorder %v1271, 3
    %vm1293 = vcmp.lt.s32.totalorder %v1271, 4
    %v1294 = vsel %vm1290, %v1274, %v1277
    %v1295 = vsel %vm1293, %v1283, 2102212464
    %v1296 = vsel %vm1292, %v1280, %v1295
    %v1297 = vsel %vm1291, %v1294, %v1296
    %v1298 = vsel %vm1290, %v1277, %v1280
    %v1299 = vsel %vm1293, %v1286, 920167782
    %v1300 = vsel %vm1292, %v1283, %v1299
    %v1301 = vsel %vm1291, %v1298, %v1300
    %v1302 = vsel %vm1290, %v1280, %v1283
    %v1303 = vsel %vm1293, %v1289, 1326507024
    %v1304 = vsel %vm1292, %v1286, %v1303
    %v1305 = vsel %vm1291, %v1302, %v1304
    %v1306 = vshll.u32 %v1266, 8
    %v1307 = vmul.u32.u64.compose %v1306, %v1305
    %v1308 = vextract.low.u32 %v1307
    %v1309 = vextract.high.u32 %v1307
    %v1310 = vmul.u32.u64.compose %v1306, %v1301
    %v1311 = vextract.low.u32 %v1310
    %v1312 = vextract.high.u32 %v1310
    %v1313 = vmul.u32 %v1306, %v1297
    %v1314 = vadd.s32 %v1309, %v1311
    %vm1315 = vc.u32 %v1309, %v1311
    %v1316 = vadd.s32 %v1312, 1
    %v1317 = vsel %vm1315, %v1316, %v1312
    %v1318 = vadd.s32 %v1313, %v1317
    %v1319 = vadd.s32 %v1318, 536870912
    %v1320 = vshrl.u32 %v1319, 30
    %v1321 = vshll.u32 %v1320, 30
    %v1322 = vsub.s32 %v1318, %v1321
    %vm1323 = vcmp.lt.s32.totalorder %v1322, 0
    %v1324 = vsub.s32 0, %v1322
    %v1325 = vsel %vm1323, %v1324, %v1322
    %v1326 = vclz %v1325
    %v1327 = vsub.s32 %v1326, 2
    %vm1328 = vcmp.gt.s32.totalorder 0, %v1327
    %v1329 = vsel %vm1328, 0, %v1327
    %v1330 = vsub.s32 32, %v1329
    %v1331 = vshll.u32 %v1322, %v1329
    %v1332 = vshrl.u32 %v1314, %v1330
    %v1333 = vor.u32 %v1331, %v1332
    %v1334 = vsub.s32 4294967266, %v1329
    %v1335 = vadd.s32 %v1334, 127
    %v1336 = vshll.u32 %v1335, 23
    %v1337 = vor.u32 4788187, %v1336
    %v1338 = vand.u32 2147483647, %v1337
    %v1340 = vcvt.s32.f32 %v1333
    %v1341 = vmul.f32 %v1340, %v1338
    %v1342 = vxor.u32 %v1341, 2147483648
    %v1343 = vsel %vm1260, %v1342, %v1341
    %v1344 = vsub.s32 4, %v1320
    %v1345 = vsel %vm1260, %v1344, %v1320
    %v1346 = vsel %vm1259, %v592, %v1343
    %v1347 = vsel %vm1259, 0, %v1345
    %v1348 = vcosq.f32.pop %v1346
    %v1349 = vsinq.f32.pop %v1346
    %vm1350 = vweird.f32 %v592
    %v1351 = vadd.s32 %v1347, 3
    %v1352 = vand.u32 %v1351, 3
    %vm1353 = vcmp.lt.s32.totalorder %v1352, 2
    %vm1354 = vcmp.eq.s32.totalorder %v1352, 0
    %v1355 = vxor.u32 %v1349, 2147483648
    %v1356 = vsel %vm1354, %v1348, %v1355
    %vm1357 = vcmp.eq.s32.totalorder %v1352, 2
    %v1358 = vxor.u32 %v1348, 2147483648
    %v1359 = vsel %vm1357, %v1358, %v1349
    %v1360 = vsel %vm1353, %v1356, %v1359
    %v1361 = vsel %vm1350, nan, %v1360
    %v1362 = vand.u32 2147483647, %v593
    %vm1363 = vcmp.le.f32.partialorder %v1362, 0.7853982
    %vm1364 = vcmp.lt.s32.totalorder %v593, 0
    %v1365 = vand.u32 %v593, 2139095040
    %v1366 = vshrl.u32 %v1365, 23
    %v1367 = vsub.s32 %v1366, 127
    %v1368 = vand.u32 2147483647, %v593
    %v1369 = vand.u32 %v1368, 8388607
    %v1370 = vor.u32 %v1369, 8388608
    %v1371 = vsub.s32 0, %v1370
    %v1372 = vadd.s32 %v1367, 1
    %vm1373 = vcmp.gt.s32.totalorder %v1372, 0
    %v1374 = vsel %vm1373, %v1372, 0
    %v1375 = vshrl.u32 %v1374, 5
    %v1376 = vand.u32 %v1374, 31
    %v1377 = vsub.s32 32, %v1376
    %v1378 = vshrl.u32 683565275, %v1377
    %v1379 = vshll.u32 683565275, %v1376
    %v1380 = vshrl.u32 2475754826, %v1377
    %v1381 = vor.u32 %v1379, %v1380
    %v1382 = vshll.u32 2475754826, %v1376
    %v1383 = vshrl.u32 2131351028, %v1377
    %v1384 = vor.u32 %v1382, %v1383
    %v1385 = vshll.u32 2131351028, %v1376
    %v1386 = vshrl.u32 2102212464, %v1377
    %v1387 = vor.u32 %v1385, %v1386
    %v1388 = vshll.u32 2102212464, %v1376
    %v1389 = vshrl.u32 920167782, %v1377
    %v1390 = vor.u32 %v1388, %v1389
    %v1391 = vshll.u32 920167782, %v1376
    %v1392 = vshrl.u32 1326507024, %v1377
    %v1393 = vor.u32 %v1391, %v1392
    %vm1394 = vcmp.lt.s32.totalorder %v1375, 1
    %vm1395 = vcmp.lt.s32.totalorder %v1375, 2
    %vm1396 = vcmp.lt.s32.totalorder %v1375, 3
    %vm1397 = vcmp.lt.s32.totalorder %v1375, 4
    %v1398 = vsel %vm1394, %v1378, %v1381
    %v1399 = vsel %vm1397, %v1387, 2102212464
    %v1400 = vsel %vm1396, %v1384, %v1399
    %v1401 = vsel %vm1395, %v1398, %v1400
    %v1402 = vsel %vm1394, %v1381, %v1384
    %v1403 = vsel %vm1397, %v1390, 920167782
    %v1404 = vsel %vm1396, %v1387, %v1403
    %v1405 = vsel %vm1395, %v1402, %v1404
    %v1406 = vsel %vm1394, %v1384, %v1387
    %v1407 = vsel %vm1397, %v1393, 1326507024
    %v1408 = vsel %vm1396, %v1390, %v1407
    %v1409 = vsel %vm1395, %v1406, %v1408
    %v1410 = vshll.u32 %v1370, 8
    %v1411 = vmul.u32.u64.compose %v1410, %v1409
    %v1412 = vextract.low.u32 %v1411
    %v1413 = vextract.high.u32 %v1411
    %v1414 = vmul.u32.u64.compose %v1410, %v1405
    %v1415 = vextract.low.u32 %v1414
    %v1416 = vextract.high.u32 %v1414
    %v1417 = vmul.u32 %v1410, %v1401
    %v1418 = vadd.s32 %v1413, %v1415
    %vm1419 = vc.u32 %v1413, %v1415
    %v1420 = vadd.s32 %v1416, 1
    %v1421 = vsel %vm1419, %v1420, %v1416
    %v1422 = vadd.s32 %v1417, %v1421
    %v1423 = vadd.s32 %v1422, 536870912
    %v1424 = vshrl.u32 %v1423, 30
    %v1425 = vshll.u32 %v1424, 30
    %v1426 = vsub.s32 %v1422, %v1425
    %vm1427 = vcmp.lt.s32.totalorder %v1426, 0
    %v1428 = vsub.s32 0, %v1426
    %v1429 = vsel %vm1427, %v1428, %v1426
    %v1430 = vclz %v1429
    %v1431 = vsub.s32 %v1430, 2
    %vm1432 = vcmp.gt.s32.totalorder 0, %v1431
    %v1433 = vsel %vm1432, 0, %v1431
    %v1434 = vsub.s32 32, %v1433
    %v1435 = vshll.u32 %v1426, %v1433
    %v1436 = vshrl.u32 %v1418, %v1434
    %v1437 = vor.u32 %v1435, %v1436
    %v1438 = vsub.s32 4294967266, %v1433
    %v1439 = vadd.s32 %v1438, 127
    %v1440 = vshll.u32 %v1439, 23
    %v1441 = vor.u32 4788187, %v1440
    %v1442 = vand.u32 2147483647, %v1441
    %v1444 = vcvt.s32.f32 %v1437
    %v1445 = vmul.f32 %v1444, %v1442
    %v1446 = vxor.u32 %v1445, 2147483648
    %v1447 = vsel %vm1364, %v1446, %v1445
    %v1448 = vsub.s32 4, %v1424
    %v1449 = vsel %vm1364, %v1448, %v1424
    %v1450 = vsel %vm1363, %v593, %v1447
    %v1451 = vsel %vm1363, 0, %v1449
    %v1452 = vcosq.f32.pop %v1450
    %v1453 = vsinq.f32.pop %v1450
    %vm1454 = vweird.f32 %v593
    %v1455 = vadd.s32 %v1451, 3
    %v1456 = vand.u32 %v1455, 3
    %vm1457 = vcmp.lt.s32.totalorder %v1456, 2
    %vm1458 = vcmp.eq.s32.totalorder %v1456, 0
    %v1459 = vxor.u32 %v1453, 2147483648
    %v1460 = vsel %vm1458, %v1452, %v1459
    %vm1461 = vcmp.eq.s32.totalorder %v1456, 2
    %v1462 = vxor.u32 %v1452, 2147483648
    %v1463 = vsel %vm1461, %v1462, %v1453
    %v1464 = vsel %vm1457, %v1460, %v1463
    %v1465 = vsel %vm1454, nan, %v1464
    %v1466 = vand.u32 2147483647, %v594
    %vm1467 = vcmp.le.f32.partialorder %v1466, 0.7853982
    %vm1468 = vcmp.lt.s32.totalorder %v594, 0
    %v1469 = vand.u32 %v594, 2139095040
    %v1470 = vshrl.u32 %v1469, 23
    %v1471 = vsub.s32 %v1470, 127
    %v1472 = vand.u32 2147483647, %v594
    %v1473 = vand.u32 %v1472, 8388607
    %v1474 = vor.u32 %v1473, 8388608
    %v1475 = vsub.s32 0, %v1474
    %v1476 = vadd.s32 %v1471, 1
    %vm1477 = vcmp.gt.s32.totalorder %v1476, 0
    %v1478 = vsel %vm1477, %v1476, 0
    %v1479 = vshrl.u32 %v1478, 5
    %v1480 = vand.u32 %v1478, 31
    %v1481 = vsub.s32 32, %v1480
    %v1482 = vshrl.u32 683565275, %v1481
    %v1483 = vshll.u32 683565275, %v1480
    %v1484 = vshrl.u32 2475754826, %v1481
    %v1485 = vor.u32 %v1483, %v1484
    %v1486 = vshll.u32 2475754826, %v1480
    %v1487 = vshrl.u32 2131351028, %v1481
    %v1488 = vor.u32 %v1486, %v1487
    %v1489 = vshll.u32 2131351028, %v1480
    %v1490 = vshrl.u32 2102212464, %v1481
    %v1491 = vor.u32 %v1489, %v1490
    %v1492 = vshll.u32 2102212464, %v1480
    %v1493 = vshrl.u32 920167782, %v1481
    %v1494 = vor.u32 %v1492, %v1493
    %v1495 = vshll.u32 920167782, %v1480
    %v1496 = vshrl.u32 1326507024, %v1481
    %v1497 = vor.u32 %v1495, %v1496
    %vm1498 = vcmp.lt.s32.totalorder %v1479, 1
    %vm1499 = vcmp.lt.s32.totalorder %v1479, 2
    %vm1500 = vcmp.lt.s32.totalorder %v1479, 3
    %vm1501 = vcmp.lt.s32.totalorder %v1479, 4
    %v1502 = vsel %vm1498, %v1482, %v1485
    %v1503 = vsel %vm1501, %v1491, 2102212464
    %v1504 = vsel %vm1500, %v1488, %v1503
    %v1505 = vsel %vm1499, %v1502, %v1504
    %v1506 = vsel %vm1498, %v1485, %v1488
    %v1507 = vsel %vm1501, %v1494, 920167782
    %v1508 = vsel %vm1500, %v1491, %v1507
    %v1509 = vsel %vm1499, %v1506, %v1508
    %v1510 = vsel %vm1498, %v1488, %v1491
    %v1511 = vsel %vm1501, %v1497, 1326507024
    %v1512 = vsel %vm1500, %v1494, %v1511
    %v1513 = vsel %vm1499, %v1510, %v1512
    %v1514 = vshll.u32 %v1474, 8
    %v1515 = vmul.u32.u64.compose %v1514, %v1513
    %v1516 = vextract.low.u32 %v1515
    %v1517 = vextract.high.u32 %v1515
    %v1518 = vmul.u32.u64.compose %v1514, %v1509
    %v1519 = vextract.low.u32 %v1518
    %v1520 = vextract.high.u32 %v1518
    %v1521 = vmul.u32 %v1514, %v1505
    %v1522 = vadd.s32 %v1517, %v1519
    %vm1523 = vc.u32 %v1517, %v1519
    %v1524 = vadd.s32 %v1520, 1
    %v1525 = vsel %vm1523, %v1524, %v1520
    %v1526 = vadd.s32 %v1521, %v1525
    %v1527 = vadd.s32 %v1526, 536870912
    %v1528 = vshrl.u32 %v1527, 30
    %v1529 = vshll.u32 %v1528, 30
    %v1530 = vsub.s32 %v1526, %v1529
    %vm1531 = vcmp.lt.s32.totalorder %v1530, 0
    %v1532 = vsub.s32 0, %v1530
    %v1533 = vsel %vm1531, %v1532, %v1530
    %v1534 = vclz %v1533
    %v1535 = vsub.s32 %v1534, 2
    %vm1536 = vcmp.gt.s32.totalorder 0, %v1535
    %v1537 = vsel %vm1536, 0, %v1535
    %v1538 = vsub.s32 32, %v1537
    %v1539 = vshll.u32 %v1530, %v1537
    %v1540 = vshrl.u32 %v1522, %v1538
    %v1541 = vor.u32 %v1539, %v1540
    %v1542 = vsub.s32 4294967266, %v1537
    %v1543 = vadd.s32 %v1542, 127
    %v1544 = vshll.u32 %v1543, 23
    %v1545 = vor.u32 4788187, %v1544
    %v1546 = vand.u32 2147483647, %v1545
    %v1548 = vcvt.s32.f32 %v1541
    %v1549 = vmul.f32 %v1548, %v1546
    %v1550 = vxor.u32 %v1549, 2147483648
    %v1551 = vsel %vm1468, %v1550, %v1549
    %v1552 = vsub.s32 4, %v1528
    %v1553 = vsel %vm1468, %v1552, %v1528
    %v1554 = vsel %vm1467, %v594, %v1551
    %v1555 = vsel %vm1467, 0, %v1553
    %v1556 = vcosq.f32.pop %v1554
    %v1557 = vsinq.f32.pop %v1554
    %vm1558 = vweird.f32 %v594
    %v1559 = vadd.s32 %v1555, 3
    %v1560 = vand.u32 %v1559, 3
    %vm1561 = vcmp.lt.s32.totalorder %v1560, 2
    %vm1562 = vcmp.eq.s32.totalorder %v1560, 0
    %v1563 = vxor.u32 %v1557, 2147483648
    %v1564 = vsel %vm1562, %v1556, %v1563
    %vm1565 = vcmp.eq.s32.totalorder %v1560, 2
    %v1566 = vxor.u32 %v1556, 2147483648
    %v1567 = vsel %vm1565, %v1566, %v1557
    %v1568 = vsel %vm1561, %v1564, %v1567
    %v1569 = vsel %vm1558, nan, %v1568
    %v1570 = vand.u32 2147483647, %v595
    %vm1571 = vcmp.le.f32.partialorder %v1570, 0.7853982
    %vm1572 = vcmp.lt.s32.totalorder %v595, 0
    %v1573 = vand.u32 %v595, 2139095040
    %v1574 = vshrl.u32 %v1573, 23
    %v1575 = vsub.s32 %v1574, 127
    %v1576 = vand.u32 2147483647, %v595
    %v1577 = vand.u32 %v1576, 8388607
    %v1578 = vor.u32 %v1577, 8388608
    %v1579 = vsub.s32 0, %v1578
    %v1580 = vadd.s32 %v1575, 1
    %vm1581 = vcmp.gt.s32.totalorder %v1580, 0
    %v1582 = vsel %vm1581, %v1580, 0
    %v1583 = vshrl.u32 %v1582, 5
    %v1584 = vand.u32 %v1582, 31
    %v1585 = vsub.s32 32, %v1584
    %v1586 = vshrl.u32 683565275, %v1585
    %v1587 = vshll.u32 683565275, %v1584
    %v1588 = vshrl.u32 2475754826, %v1585
    %v1589 = vor.u32 %v1587, %v1588
    %v1590 = vshll.u32 2475754826, %v1584
    %v1591 = vshrl.u32 2131351028, %v1585
    %v1592 = vor.u32 %v1590, %v1591
    %v1593 = vshll.u32 2131351028, %v1584
    %v1594 = vshrl.u32 2102212464, %v1585
    %v1595 = vor.u32 %v1593, %v1594
    %v1596 = vshll.u32 2102212464, %v1584
    %v1597 = vshrl.u32 920167782, %v1585
    %v1598 = vor.u32 %v1596, %v1597
    %v1599 = vshll.u32 920167782, %v1584
    %v1600 = vshrl.u32 1326507024, %v1585
    %v1601 = vor.u32 %v1599, %v1600
    %vm1602 = vcmp.lt.s32.totalorder %v1583, 1
    %vm1603 = vcmp.lt.s32.totalorder %v1583, 2
    %vm1604 = vcmp.lt.s32.totalorder %v1583, 3
    %vm1605 = vcmp.lt.s32.totalorder %v1583, 4
    %v1606 = vsel %vm1602, %v1586, %v1589
    %v1607 = vsel %vm1605, %v1595, 2102212464
    %v1608 = vsel %vm1604, %v1592, %v1607
    %v1609 = vsel %vm1603, %v1606, %v1608
    %v1610 = vsel %vm1602, %v1589, %v1592
    %v1611 = vsel %vm1605, %v1598, 920167782
    %v1612 = vsel %vm1604, %v1595, %v1611
    %v1613 = vsel %vm1603, %v1610, %v1612
    %v1614 = vsel %vm1602, %v1592, %v1595
    %v1615 = vsel %vm1605, %v1601, 1326507024
    %v1616 = vsel %vm1604, %v1598, %v1615
    %v1617 = vsel %vm1603, %v1614, %v1616
    %v1618 = vshll.u32 %v1578, 8
    %v1619 = vmul.u32.u64.compose %v1618, %v1617
    %v1620 = vextract.low.u32 %v1619
    %v1621 = vextract.high.u32 %v1619
    %v1622 = vmul.u32.u64.compose %v1618, %v1613
    %v1623 = vextract.low.u32 %v1622
    %v1624 = vextract.high.u32 %v1622
    %v1625 = vmul.u32 %v1618, %v1609
    %v1626 = vadd.s32 %v1621, %v1623
    %vm1627 = vc.u32 %v1621, %v1623
    %v1628 = vadd.s32 %v1624, 1
    %v1629 = vsel %vm1627, %v1628, %v1624
    %v1630 = vadd.s32 %v1625, %v1629
    %v1631 = vadd.s32 %v1630, 536870912
    %v1632 = vshrl.u32 %v1631, 30
    %v1633 = vshll.u32 %v1632, 30
    %v1634 = vsub.s32 %v1630, %v1633
    %vm1635 = vcmp.lt.s32.totalorder %v1634, 0
    %v1636 = vsub.s32 0, %v1634
    %v1637 = vsel %vm1635, %v1636, %v1634
    %v1638 = vclz %v1637
    %v1639 = vsub.s32 %v1638, 2
    %vm1640 = vcmp.gt.s32.totalorder 0, %v1639
    %v1641 = vsel %vm1640, 0, %v1639
    %v1642 = vsub.s32 32, %v1641
    %v1643 = vshll.u32 %v1634, %v1641
    %v1644 = vshrl.u32 %v1626, %v1642
    %v1645 = vor.u32 %v1643, %v1644
    %v1646 = vsub.s32 4294967266, %v1641
    %v1647 = vadd.s32 %v1646, 127
    %v1648 = vshll.u32 %v1647, 23
    %v1649 = vor.u32 4788187, %v1648
    %v1650 = vand.u32 2147483647, %v1649
    %v1652 = vcvt.s32.f32 %v1645
    %v1653 = vmul.f32 %v1652, %v1650
    %v1654 = vxor.u32 %v1653, 2147483648
    %v1655 = vsel %vm1572, %v1654, %v1653
    %v1656 = vsub.s32 4, %v1632
    %v1657 = vsel %vm1572, %v1656, %v1632
    %v1658 = vsel %vm1571, %v595, %v1655
    %v1659 = vsel %vm1571, 0, %v1657
    %v1660 = vcosq.f32.pop %v1658
    %v1661 = vsinq.f32.pop %v1658
    %vm1662 = vweird.f32 %v595
    %v1663 = vadd.s32 %v1659, 3
    %v1664 = vand.u32 %v1663, 3
    %vm1665 = vcmp.lt.s32.totalorder %v1664, 2
    %vm1666 = vcmp.eq.s32.totalorder %v1664, 0
    %v1667 = vxor.u32 %v1661, 2147483648
    %v1668 = vsel %vm1666, %v1660, %v1667
    %vm1669 = vcmp.eq.s32.totalorder %v1664, 2
    %v1670 = vxor.u32 %v1660, 2147483648
    %v1671 = vsel %vm1669, %v1670, %v1661
    %v1672 = vsel %vm1665, %v1668, %v1671
    %v1673 = vsel %vm1662, nan, %v1672
    %v1674 = vand.u32 2147483647, %v596
    %vm1675 = vcmp.le.f32.partialorder %v1674, 0.7853982
    %vm1676 = vcmp.lt.s32.totalorder %v596, 0
    %v1677 = vand.u32 %v596, 2139095040
    %v1678 = vshrl.u32 %v1677, 23
    %v1679 = vsub.s32 %v1678, 127
    %v1680 = vand.u32 2147483647, %v596
    %v1681 = vand.u32 %v1680, 8388607
    %v1682 = vor.u32 %v1681, 8388608
    %v1683 = vsub.s32 0, %v1682
    %v1684 = vadd.s32 %v1679, 1
    %vm1685 = vcmp.gt.s32.totalorder %v1684, 0
    %v1686 = vsel %vm1685, %v1684, 0
    %v1687 = vshrl.u32 %v1686, 5
    %v1688 = vand.u32 %v1686, 31
    %v1689 = vsub.s32 32, %v1688
    %v1690 = vshrl.u32 683565275, %v1689
    %v1691 = vshll.u32 683565275, %v1688
    %v1692 = vshrl.u32 2475754826, %v1689
    %v1693 = vor.u32 %v1691, %v1692
    %v1694 = vshll.u32 2475754826, %v1688
    %v1695 = vshrl.u32 2131351028, %v1689
    %v1696 = vor.u32 %v1694, %v1695
    %v1697 = vshll.u32 2131351028, %v1688
    %v1698 = vshrl.u32 2102212464, %v1689
    %v1699 = vor.u32 %v1697, %v1698
    %v1700 = vshll.u32 2102212464, %v1688
    %v1701 = vshrl.u32 920167782, %v1689
    %v1702 = vor.u32 %v1700, %v1701
    %v1703 = vshll.u32 920167782, %v1688
    %v1704 = vshrl.u32 1326507024, %v1689
    %v1705 = vor.u32 %v1703, %v1704
    %vm1706 = vcmp.lt.s32.totalorder %v1687, 1
    %vm1707 = vcmp.lt.s32.totalorder %v1687, 2
    %vm1708 = vcmp.lt.s32.totalorder %v1687, 3
    %vm1709 = vcmp.lt.s32.totalorder %v1687, 4
    %v1710 = vsel %vm1706, %v1690, %v1693
    %v1711 = vsel %vm1709, %v1699, 2102212464
    %v1712 = vsel %vm1708, %v1696, %v1711
    %v1713 = vsel %vm1707, %v1710, %v1712
    %v1714 = vsel %vm1706, %v1693, %v1696
    %v1715 = vsel %vm1709, %v1702, 920167782
    %v1716 = vsel %vm1708, %v1699, %v1715
    %v1717 = vsel %vm1707, %v1714, %v1716
    %v1718 = vsel %vm1706, %v1696, %v1699
    %v1719 = vsel %vm1709, %v1705, 1326507024
    %v1720 = vsel %vm1708, %v1702, %v1719
    %v1721 = vsel %vm1707, %v1718, %v1720
    %v1722 = vshll.u32 %v1682, 8
    %v1723 = vmul.u32.u64.compose %v1722, %v1721
    %v1724 = vextract.low.u32 %v1723
    %v1725 = vextract.high.u32 %v1723
    %v1726 = vmul.u32.u64.compose %v1722, %v1717
    %v1727 = vextract.low.u32 %v1726
    %v1728 = vextract.high.u32 %v1726
    %v1729 = vmul.u32 %v1722, %v1713
    %v1730 = vadd.s32 %v1725, %v1727
    %vm1731 = vc.u32 %v1725, %v1727
    %v1732 = vadd.s32 %v1728, 1
    %v1733 = vsel %vm1731, %v1732, %v1728
    %v1734 = vadd.s32 %v1729, %v1733
    %v1735 = vadd.s32 %v1734, 536870912
    %v1736 = vshrl.u32 %v1735, 30
    %v1737 = vshll.u32 %v1736, 30
    %v1738 = vsub.s32 %v1734, %v1737
    %vm1739 = vcmp.lt.s32.totalorder %v1738, 0
    %v1740 = vsub.s32 0, %v1738
    %v1741 = vsel %vm1739, %v1740, %v1738
    %v1742 = vclz %v1741
    %v1743 = vsub.s32 %v1742, 2
    %vm1744 = vcmp.gt.s32.totalorder 0, %v1743
    %v1745 = vsel %vm1744, 0, %v1743
    %v1746 = vsub.s32 32, %v1745
    %v1747 = vshll.u32 %v1738, %v1745
    %v1748 = vshrl.u32 %v1730, %v1746
    %v1749 = vor.u32 %v1747, %v1748
    %v1750 = vsub.s32 4294967266, %v1745
    %v1751 = vadd.s32 %v1750, 127
    %v1752 = vshll.u32 %v1751, 23
    %v1753 = vor.u32 4788187, %v1752
    %v1754 = vand.u32 2147483647, %v1753
    %v1756 = vcvt.s32.f32 %v1749
    %v1757 = vmul.f32 %v1756, %v1754
    %v1758 = vxor.u32 %v1757, 2147483648
    %v1759 = vsel %vm1676, %v1758, %v1757
    %v1760 = vsub.s32 4, %v1736
    %v1761 = vsel %vm1676, %v1760, %v1736
    %v1762 = vsel %vm1675, %v596, %v1759
    %v1763 = vsel %vm1675, 0, %v1761
    %v1764 = vcosq.f32.pop %v1762
    %v1765 = vsinq.f32.pop %v1762
    %vm1766 = vweird.f32 %v596
    %v1767 = vadd.s32 %v1763, 3
    %v1768 = vand.u32 %v1767, 3
    %vm1769 = vcmp.lt.s32.totalorder %v1768, 2
    %vm1770 = vcmp.eq.s32.totalorder %v1768, 0
    %v1771 = vxor.u32 %v1765, 2147483648
    %v1772 = vsel %vm1770, %v1764, %v1771
    %vm1773 = vcmp.eq.s32.totalorder %v1768, 2
    %v1774 = vxor.u32 %v1764, 2147483648
    %v1775 = vsel %vm1773, %v1774, %v1765
    %v1776 = vsel %vm1769, %v1772, %v1775
    %v1777 = vsel %vm1766, nan, %v1776
    %v1778 = vand.u32 2147483647, %v597
    %vm1779 = vcmp.le.f32.partialorder %v1778, 0.7853982
    %vm1780 = vcmp.lt.s32.totalorder %v597, 0
    %v1781 = vand.u32 %v597, 2139095040
    %v1782 = vshrl.u32 %v1781, 23
    %v1783 = vsub.s32 %v1782, 127
    %v1784 = vand.u32 2147483647, %v597
    %v1785 = vand.u32 %v1784, 8388607
    %v1786 = vor.u32 %v1785, 8388608
    %v1787 = vsub.s32 0, %v1786
    %v1788 = vadd.s32 %v1783, 1
    %vm1789 = vcmp.gt.s32.totalorder %v1788, 0
    %v1790 = vsel %vm1789, %v1788, 0
    %v1791 = vshrl.u32 %v1790, 5
    %v1792 = vand.u32 %v1790, 31
    %v1793 = vsub.s32 32, %v1792
    %v1794 = vshrl.u32 683565275, %v1793
    %v1795 = vshll.u32 683565275, %v1792
    %v1796 = vshrl.u32 2475754826, %v1793
    %v1797 = vor.u32 %v1795, %v1796
    %v1798 = vshll.u32 2475754826, %v1792
    %v1799 = vshrl.u32 2131351028, %v1793
    %v1800 = vor.u32 %v1798, %v1799
    %v1801 = vshll.u32 2131351028, %v1792
    %v1802 = vshrl.u32 2102212464, %v1793
    %v1803 = vor.u32 %v1801, %v1802
    %v1804 = vshll.u32 2102212464, %v1792
    %v1805 = vshrl.u32 920167782, %v1793
    %v1806 = vor.u32 %v1804, %v1805
    %v1807 = vshll.u32 920167782, %v1792
    %v1808 = vshrl.u32 1326507024, %v1793
    %v1809 = vor.u32 %v1807, %v1808
    %vm1810 = vcmp.lt.s32.totalorder %v1791, 1
    %vm1811 = vcmp.lt.s32.totalorder %v1791, 2
    %vm1812 = vcmp.lt.s32.totalorder %v1791, 3
    %vm1813 = vcmp.lt.s32.totalorder %v1791, 4
    %v1814 = vsel %vm1810, %v1794, %v1797
    %v1815 = vsel %vm1813, %v1803, 2102212464
    %v1816 = vsel %vm1812, %v1800, %v1815
    %v1817 = vsel %vm1811, %v1814, %v1816
    %v1818 = vsel %vm1810, %v1797, %v1800
    %v1819 = vsel %vm1813, %v1806, 920167782
    %v1820 = vsel %vm1812, %v1803, %v1819
    %v1821 = vsel %vm1811, %v1818, %v1820
    %v1822 = vsel %vm1810, %v1800, %v1803
    %v1823 = vsel %vm1813, %v1809, 1326507024
    %v1824 = vsel %vm1812, %v1806, %v1823
    %v1825 = vsel %vm1811, %v1822, %v1824
    %v1826 = vshll.u32 %v1786, 8
    %v1827 = vmul.u32.u64.compose %v1826, %v1825
    %v1828 = vextract.low.u32 %v1827
    %v1829 = vextract.high.u32 %v1827
    %v1830 = vmul.u32.u64.compose %v1826, %v1821
    %v1831 = vextract.low.u32 %v1830
    %v1832 = vextract.high.u32 %v1830
    %v1833 = vmul.u32 %v1826, %v1817
    %v1834 = vadd.s32 %v1829, %v1831
    %vm1835 = vc.u32 %v1829, %v1831
    %v1836 = vadd.s32 %v1832, 1
    %v1837 = vsel %vm1835, %v1836, %v1832
    %v1838 = vadd.s32 %v1833, %v1837
    %v1839 = vadd.s32 %v1838, 536870912
    %v1840 = vshrl.u32 %v1839, 30
    %v1841 = vshll.u32 %v1840, 30
    %v1842 = vsub.s32 %v1838, %v1841
    %vm1843 = vcmp.lt.s32.totalorder %v1842, 0
    %v1844 = vsub.s32 0, %v1842
    %v1845 = vsel %vm1843, %v1844, %v1842
    %v1846 = vclz %v1845
    %v1847 = vsub.s32 %v1846, 2
    %vm1848 = vcmp.gt.s32.totalorder 0, %v1847
    %v1849 = vsel %vm1848, 0, %v1847
    %v1850 = vsub.s32 32, %v1849
    %v1851 = vshll.u32 %v1842, %v1849
    %v1852 = vshrl.u32 %v1834, %v1850
    %v1853 = vor.u32 %v1851, %v1852
    %v1854 = vsub.s32 4294967266, %v1849
    %v1855 = vadd.s32 %v1854, 127
    %v1856 = vshll.u32 %v1855, 23
    %v1857 = vor.u32 4788187, %v1856
    %v1858 = vand.u32 2147483647, %v1857
    %v1860 = vcvt.s32.f32 %v1853
    %v1861 = vmul.f32 %v1860, %v1858
    %v1862 = vxor.u32 %v1861, 2147483648
    %v1863 = vsel %vm1780, %v1862, %v1861
    %v1864 = vsub.s32 4, %v1840
    %v1865 = vsel %vm1780, %v1864, %v1840
    %v1866 = vsel %vm1779, %v597, %v1863
    %v1867 = vsel %vm1779, 0, %v1865
    %v1868 = vcosq.f32.pop %v1866
    %v1869 = vsinq.f32.pop %v1866
    %vm1870 = vweird.f32 %v597
    %v1871 = vadd.s32 %v1867, 3
    %v1872 = vand.u32 %v1871, 3
    %vm1873 = vcmp.lt.s32.totalorder %v1872, 2
    %vm1874 = vcmp.eq.s32.totalorder %v1872, 0
    %v1875 = vxor.u32 %v1869, 2147483648
    %v1876 = vsel %vm1874, %v1868, %v1875
    %vm1877 = vcmp.eq.s32.totalorder %v1872, 2
    %v1878 = vxor.u32 %v1868, 2147483648
    %v1879 = vsel %vm1877, %v1878, %v1869
    %v1880 = vsel %vm1873, %v1876, %v1879
    %v1881 = vsel %vm1870, nan, %v1880
    %v1882 = vand.u32 2147483647, %v598
    %vm1883 = vcmp.le.f32.partialorder %v1882, 0.7853982
    %vm1884 = vcmp.lt.s32.totalorder %v598, 0
    %v1885 = vand.u32 %v598, 2139095040
    %v1886 = vshrl.u32 %v1885, 23
    %v1887 = vsub.s32 %v1886, 127
    %v1888 = vand.u32 2147483647, %v598
    %v1889 = vand.u32 %v1888, 8388607
    %v1890 = vor.u32 %v1889, 8388608
    %v1891 = vsub.s32 0, %v1890
    %v1892 = vadd.s32 %v1887, 1
    %vm1893 = vcmp.gt.s32.totalorder %v1892, 0
    %v1894 = vsel %vm1893, %v1892, 0
    %v1895 = vshrl.u32 %v1894, 5
    %v1896 = vand.u32 %v1894, 31
    %v1897 = vsub.s32 32, %v1896
    %v1898 = vshrl.u32 683565275, %v1897
    %v1899 = vshll.u32 683565275, %v1896
    %v1900 = vshrl.u32 2475754826, %v1897
    %v1901 = vor.u32 %v1899, %v1900
    %v1902 = vshll.u32 2475754826, %v1896
    %v1903 = vshrl.u32 2131351028, %v1897
    %v1904 = vor.u32 %v1902, %v1903
    %v1905 = vshll.u32 2131351028, %v1896
    %v1906 = vshrl.u32 2102212464, %v1897
    %v1907 = vor.u32 %v1905, %v1906
    %v1908 = vshll.u32 2102212464, %v1896
    %v1909 = vshrl.u32 920167782, %v1897
    %v1910 = vor.u32 %v1908, %v1909
    %v1911 = vshll.u32 920167782, %v1896
    %v1912 = vshrl.u32 1326507024, %v1897
    %v1913 = vor.u32 %v1911, %v1912
    %vm1914 = vcmp.lt.s32.totalorder %v1895, 1
    %vm1915 = vcmp.lt.s32.totalorder %v1895, 2
    %vm1916 = vcmp.lt.s32.totalorder %v1895, 3
    %vm1917 = vcmp.lt.s32.totalorder %v1895, 4
    %v1918 = vsel %vm1914, %v1898, %v1901
    %v1919 = vsel %vm1917, %v1907, 2102212464
    %v1920 = vsel %vm1916, %v1904, %v1919
    %v1921 = vsel %vm1915, %v1918, %v1920
    %v1922 = vsel %vm1914, %v1901, %v1904
    %v1923 = vsel %vm1917, %v1910, 920167782
    %v1924 = vsel %vm1916, %v1907, %v1923
    %v1925 = vsel %vm1915, %v1922, %v1924
    %v1926 = vsel %vm1914, %v1904, %v1907
    %v1927 = vsel %vm1917, %v1913, 1326507024
    %v1928 = vsel %vm1916, %v1910, %v1927
    %v1929 = vsel %vm1915, %v1926, %v1928
    %v1930 = vshll.u32 %v1890, 8
    %v1931 = vmul.u32.u64.compose %v1930, %v1929
    %v1932 = vextract.low.u32 %v1931
    %v1933 = vextract.high.u32 %v1931
    %v1934 = vmul.u32.u64.compose %v1930, %v1925
    %v1935 = vextract.low.u32 %v1934
    %v1936 = vextract.high.u32 %v1934
    %v1937 = vmul.u32 %v1930, %v1921
    %v1938 = vadd.s32 %v1933, %v1935
    %vm1939 = vc.u32 %v1933, %v1935
    %v1940 = vadd.s32 %v1936, 1
    %v1941 = vsel %vm1939, %v1940, %v1936
    %v1942 = vadd.s32 %v1937, %v1941
    %v1943 = vadd.s32 %v1942, 536870912
    %v1944 = vshrl.u32 %v1943, 30
    %v1945 = vshll.u32 %v1944, 30
    %v1946 = vsub.s32 %v1942, %v1945
    %vm1947 = vcmp.lt.s32.totalorder %v1946, 0
    %v1948 = vsub.s32 0, %v1946
    %v1949 = vsel %vm1947, %v1948, %v1946
    %v1950 = vclz %v1949
    %v1951 = vsub.s32 %v1950, 2
    %vm1952 = vcmp.gt.s32.totalorder 0, %v1951
    %v1953 = vsel %vm1952, 0, %v1951
    %v1954 = vsub.s32 32, %v1953
    %v1955 = vshll.u32 %v1946, %v1953
    %v1956 = vshrl.u32 %v1938, %v1954
    %v1957 = vor.u32 %v1955, %v1956
    %v1958 = vsub.s32 4294967266, %v1953
    %v1959 = vadd.s32 %v1958, 127
    %v1960 = vshll.u32 %v1959, 23
    %v1961 = vor.u32 4788187, %v1960
    %v1962 = vand.u32 2147483647, %v1961
    %v1964 = vcvt.s32.f32 %v1957
    %v1965 = vmul.f32 %v1964, %v1962
    %v1966 = vxor.u32 %v1965, 2147483648
    %v1967 = vsel %vm1884, %v1966, %v1965
    %v1968 = vsub.s32 4, %v1944
    %v1969 = vsel %vm1884, %v1968, %v1944
    %v1970 = vsel %vm1883, %v598, %v1967
    %v1971 = vsel %vm1883, 0, %v1969
    %v1972 = vcosq.f32.pop %v1970
    %v1973 = vsinq.f32.pop %v1970
    %vm1974 = vweird.f32 %v598
    %v1975 = vadd.s32 %v1971, 3
    %v1976 = vand.u32 %v1975, 3
    %vm1977 = vcmp.lt.s32.totalorder %v1976, 2
    %vm1978 = vcmp.eq.s32.totalorder %v1976, 0
    %v1979 = vxor.u32 %v1973, 2147483648
    %v1980 = vsel %vm1978, %v1972, %v1979
    %vm1981 = vcmp.eq.s32.totalorder %v1976, 2
    %v1982 = vxor.u32 %v1972, 2147483648
    %v1983 = vsel %vm1981, %v1982, %v1973
    %v1984 = vsel %vm1977, %v1980, %v1983
    %v1985 = vsel %vm1974, nan, %v1984
    %v1986 = vand.u32 2147483647, %v599
    %vm1987 = vcmp.le.f32.partialorder %v1986, 0.7853982
    %vm1988 = vcmp.lt.s32.totalorder %v599, 0
    %v1989 = vand.u32 %v599, 2139095040
    %v1990 = vshrl.u32 %v1989, 23
    %v1991 = vsub.s32 %v1990, 127
    %v1992 = vand.u32 2147483647, %v599
    %v1993 = vand.u32 %v1992, 8388607
    %v1994 = vor.u32 %v1993, 8388608
    %v1995 = vsub.s32 0, %v1994
    %v1996 = vadd.s32 %v1991, 1
    %vm1997 = vcmp.gt.s32.totalorder %v1996, 0
    %v1998 = vsel %vm1997, %v1996, 0
    %v1999 = vshrl.u32 %v1998, 5
    %v2000 = vand.u32 %v1998, 31
    %v2001 = vsub.s32 32, %v2000
    %v2002 = vshrl.u32 683565275, %v2001
    %v2003 = vshll.u32 683565275, %v2000
    %v2004 = vshrl.u32 2475754826, %v2001
    %v2005 = vor.u32 %v2003, %v2004
    %v2006 = vshll.u32 2475754826, %v2000
    %v2007 = vshrl.u32 2131351028, %v2001
    %v2008 = vor.u32 %v2006, %v2007
    %v2009 = vshll.u32 2131351028, %v2000
    %v2010 = vshrl.u32 2102212464, %v2001
    %v2011 = vor.u32 %v2009, %v2010
    %v2012 = vshll.u32 2102212464, %v2000
    %v2013 = vshrl.u32 920167782, %v2001
    %v2014 = vor.u32 %v2012, %v2013
    %v2015 = vshll.u32 920167782, %v2000
    %v2016 = vshrl.u32 1326507024, %v2001
    %v2017 = vor.u32 %v2015, %v2016
    %vm2018 = vcmp.lt.s32.totalorder %v1999, 1
    %vm2019 = vcmp.lt.s32.totalorder %v1999, 2
    %vm2020 = vcmp.lt.s32.totalorder %v1999, 3
    %vm2021 = vcmp.lt.s32.totalorder %v1999, 4
    %v2022 = vsel %vm2018, %v2002, %v2005
    %v2023 = vsel %vm2021, %v2011, 2102212464
    %v2024 = vsel %vm2020, %v2008, %v2023
    %v2025 = vsel %vm2019, %v2022, %v2024
    %v2026 = vsel %vm2018, %v2005, %v2008
    %v2027 = vsel %vm2021, %v2014, 920167782
    %v2028 = vsel %vm2020, %v2011, %v2027
    %v2029 = vsel %vm2019, %v2026, %v2028
    %v2030 = vsel %vm2018, %v2008, %v2011
    %v2031 = vsel %vm2021, %v2017, 1326507024
    %v2032 = vsel %vm2020, %v2014, %v2031
    %v2033 = vsel %vm2019, %v2030, %v2032
    %v2034 = vshll.u32 %v1994, 8
    %v2035 = vmul.u32.u64.compose %v2034, %v2033
    %v2036 = vextract.low.u32 %v2035
    %v2037 = vextract.high.u32 %v2035
    %v2038 = vmul.u32.u64.compose %v2034, %v2029
    %v2039 = vextract.low.u32 %v2038
    %v2040 = vextract.high.u32 %v2038
    %v2041 = vmul.u32 %v2034, %v2025
    %v2042 = vadd.s32 %v2037, %v2039
    %vm2043 = vc.u32 %v2037, %v2039
    %v2044 = vadd.s32 %v2040, 1
    %v2045 = vsel %vm2043, %v2044, %v2040
    %v2046 = vadd.s32 %v2041, %v2045
    %v2047 = vadd.s32 %v2046, 536870912
    %v2048 = vshrl.u32 %v2047, 30
    %v2049 = vshll.u32 %v2048, 30
    %v2050 = vsub.s32 %v2046, %v2049
    %vm2051 = vcmp.lt.s32.totalorder %v2050, 0
    %v2052 = vsub.s32 0, %v2050
    %v2053 = vsel %vm2051, %v2052, %v2050
    %v2054 = vclz %v2053
    %v2055 = vsub.s32 %v2054, 2
    %vm2056 = vcmp.gt.s32.totalorder 0, %v2055
    %v2057 = vsel %vm2056, 0, %v2055
    %v2058 = vsub.s32 32, %v2057
    %v2059 = vshll.u32 %v2050, %v2057
    %v2060 = vshrl.u32 %v2042, %v2058
    %v2061 = vor.u32 %v2059, %v2060
    %v2062 = vsub.s32 4294967266, %v2057
    %v2063 = vadd.s32 %v2062, 127
    %v2064 = vshll.u32 %v2063, 23
    %v2065 = vor.u32 4788187, %v2064
    %v2066 = vand.u32 2147483647, %v2065
    %v2068 = vcvt.s32.f32 %v2061
    %v2069 = vmul.f32 %v2068, %v2066
    %v2070 = vxor.u32 %v2069, 2147483648
    %v2071 = vsel %vm1988, %v2070, %v2069
    %v2072 = vsub.s32 4, %v2048
    %v2073 = vsel %vm1988, %v2072, %v2048
    %v2074 = vsel %vm1987, %v599, %v2071
    %v2075 = vsel %vm1987, 0, %v2073
    %v2076 = vcosq.f32.pop %v2074
    %v2077 = vsinq.f32.pop %v2074
    %vm2078 = vweird.f32 %v599
    %v2079 = vadd.s32 %v2075, 3
    %v2080 = vand.u32 %v2079, 3
    %vm2081 = vcmp.lt.s32.totalorder %v2080, 2
    %vm2082 = vcmp.eq.s32.totalorder %v2080, 0
    %v2083 = vxor.u32 %v2077, 2147483648
    %v2084 = vsel %vm2082, %v2076, %v2083
    %vm2085 = vcmp.eq.s32.totalorder %v2080, 2
    %v2086 = vxor.u32 %v2076, 2147483648
    %v2087 = vsel %vm2085, %v2086, %v2077
    %v2088 = vsel %vm2081, %v2084, %v2087
    %v2089 = vsel %vm2078, nan, %v2088
    %v2090 = vand.u32 2147483647, %v600
    %vm2091 = vcmp.le.f32.partialorder %v2090, 0.7853982
    %vm2092 = vcmp.lt.s32.totalorder %v600, 0
    %v2093 = vand.u32 %v600, 2139095040
    %v2094 = vshrl.u32 %v2093, 23
    %v2095 = vsub.s32 %v2094, 127
    %v2096 = vand.u32 2147483647, %v600
    %v2097 = vand.u32 %v2096, 8388607
    %v2098 = vor.u32 %v2097, 8388608
    %v2099 = vsub.s32 0, %v2098
    %v2100 = vadd.s32 %v2095, 1
    %vm2101 = vcmp.gt.s32.totalorder %v2100, 0
    %v2102 = vsel %vm2101, %v2100, 0
    %v2103 = vshrl.u32 %v2102, 5
    %v2104 = vand.u32 %v2102, 31
    %v2105 = vsub.s32 32, %v2104
    %v2106 = vshrl.u32 683565275, %v2105
    %v2107 = vshll.u32 683565275, %v2104
    %v2108 = vshrl.u32 2475754826, %v2105
    %v2109 = vor.u32 %v2107, %v2108
    %v2110 = vshll.u32 2475754826, %v2104
    %v2111 = vshrl.u32 2131351028, %v2105
    %v2112 = vor.u32 %v2110, %v2111
    %v2113 = vshll.u32 2131351028, %v2104
    %v2114 = vshrl.u32 2102212464, %v2105
    %v2115 = vor.u32 %v2113, %v2114
    %v2116 = vshll.u32 2102212464, %v2104
    %v2117 = vshrl.u32 920167782, %v2105
    %v2118 = vor.u32 %v2116, %v2117
    %v2119 = vshll.u32 920167782, %v2104
    %v2120 = vshrl.u32 1326507024, %v2105
    %v2121 = vor.u32 %v2119, %v2120
    %vm2122 = vcmp.lt.s32.totalorder %v2103, 1
    %vm2123 = vcmp.lt.s32.totalorder %v2103, 2
    %vm2124 = vcmp.lt.s32.totalorder %v2103, 3
    %vm2125 = vcmp.lt.s32.totalorder %v2103, 4
    %v2126 = vsel %vm2122, %v2106, %v2109
    %v2127 = vsel %vm2125, %v2115, 2102212464
    %v2128 = vsel %vm2124, %v2112, %v2127
    %v2129 = vsel %vm2123, %v2126, %v2128
    %v2130 = vsel %vm2122, %v2109, %v2112
    %v2131 = vsel %vm2125, %v2118, 920167782
    %v2132 = vsel %vm2124, %v2115, %v2131
    %v2133 = vsel %vm2123, %v2130, %v2132
    %v2134 = vsel %vm2122, %v2112, %v2115
    %v2135 = vsel %vm2125, %v2121, 1326507024
    %v2136 = vsel %vm2124, %v2118, %v2135
    %v2137 = vsel %vm2123, %v2134, %v2136
    %v2138 = vshll.u32 %v2098, 8
    %v2139 = vmul.u32.u64.compose %v2138, %v2137
    %v2140 = vextract.low.u32 %v2139
    %v2141 = vextract.high.u32 %v2139
    %v2142 = vmul.u32.u64.compose %v2138, %v2133
    %v2143 = vextract.low.u32 %v2142
    %v2144 = vextract.high.u32 %v2142
    %v2145 = vmul.u32 %v2138, %v2129
    %v2146 = vadd.s32 %v2141, %v2143
    %vm2147 = vc.u32 %v2141, %v2143
    %v2148 = vadd.s32 %v2144, 1
    %v2149 = vsel %vm2147, %v2148, %v2144
    %v2150 = vadd.s32 %v2145, %v2149
    %v2151 = vadd.s32 %v2150, 536870912
    %v2152 = vshrl.u32 %v2151, 30
    %v2153 = vshll.u32 %v2152, 30
    %v2154 = vsub.s32 %v2150, %v2153
    %vm2155 = vcmp.lt.s32.totalorder %v2154, 0
    %v2156 = vsub.s32 0, %v2154
    %v2157 = vsel %vm2155, %v2156, %v2154
    %v2158 = vclz %v2157
    %v2159 = vsub.s32 %v2158, 2
    %vm2160 = vcmp.gt.s32.totalorder 0, %v2159
    %v2161 = vsel %vm2160, 0, %v2159
    %v2162 = vsub.s32 32, %v2161
    %v2163 = vshll.u32 %v2154, %v2161
    %v2164 = vshrl.u32 %v2146, %v2162
    %v2165 = vor.u32 %v2163, %v2164
    %v2166 = vsub.s32 4294967266, %v2161
    %v2167 = vadd.s32 %v2166, 127
    %v2168 = vshll.u32 %v2167, 23
    %v2169 = vor.u32 4788187, %v2168
    %v2170 = vand.u32 2147483647, %v2169
    %v2172 = vcvt.s32.f32 %v2165
    %v2173 = vmul.f32 %v2172, %v2170
    %v2174 = vxor.u32 %v2173, 2147483648
    %v2175 = vsel %vm2092, %v2174, %v2173
    %v2176 = vsub.s32 4, %v2152
    %v2177 = vsel %vm2092, %v2176, %v2152
    %v2178 = vsel %vm2091, %v600, %v2175
    %v2179 = vsel %vm2091, 0, %v2177
    %v2180 = vcosq.f32.pop %v2178
    %v2181 = vsinq.f32.pop %v2178
    %vm2182 = vweird.f32 %v600
    %v2183 = vadd.s32 %v2179, 3
    %v2184 = vand.u32 %v2183, 3
    %vm2185 = vcmp.lt.s32.totalorder %v2184, 2
    %vm2186 = vcmp.eq.s32.totalorder %v2184, 0
    %v2187 = vxor.u32 %v2181, 2147483648
    %v2188 = vsel %vm2186, %v2180, %v2187
    %vm2189 = vcmp.eq.s32.totalorder %v2184, 2
    %v2190 = vxor.u32 %v2180, 2147483648
    %v2191 = vsel %vm2189, %v2190, %v2181
    %v2192 = vsel %vm2185, %v2188, %v2191
    %v2193 = vsel %vm2182, nan, %v2192
    %v2194 = vand.u32 2147483647, %v601
    %vm2195 = vcmp.le.f32.partialorder %v2194, 0.7853982
    %vm2196 = vcmp.lt.s32.totalorder %v601, 0
    %v2197 = vand.u32 %v601, 2139095040
    %v2198 = vshrl.u32 %v2197, 23
    %v2199 = vsub.s32 %v2198, 127
    %v2200 = vand.u32 2147483647, %v601
    %v2201 = vand.u32 %v2200, 8388607
    %v2202 = vor.u32 %v2201, 8388608
    %v2203 = vsub.s32 0, %v2202
    %v2204 = vadd.s32 %v2199, 1
    %vm2205 = vcmp.gt.s32.totalorder %v2204, 0
    %v2206 = vsel %vm2205, %v2204, 0
    %v2207 = vshrl.u32 %v2206, 5
    %v2208 = vand.u32 %v2206, 31
    %v2209 = vsub.s32 32, %v2208
    %v2210 = vshrl.u32 683565275, %v2209
    %v2211 = vshll.u32 683565275, %v2208
    %v2212 = vshrl.u32 2475754826, %v2209
    %v2213 = vor.u32 %v2211, %v2212
    %v2214 = vshll.u32 2475754826, %v2208
    %v2215 = vshrl.u32 2131351028, %v2209
    %v2216 = vor.u32 %v2214, %v2215
    %v2217 = vshll.u32 2131351028, %v2208
    %v2218 = vshrl.u32 2102212464, %v2209
    %v2219 = vor.u32 %v2217, %v2218
    %v2220 = vshll.u32 2102212464, %v2208
    %v2221 = vshrl.u32 920167782, %v2209
    %v2222 = vor.u32 %v2220, %v2221
    %v2223 = vshll.u32 920167782, %v2208
    %v2224 = vshrl.u32 1326507024, %v2209
    %v2225 = vor.u32 %v2223, %v2224
    %vm2226 = vcmp.lt.s32.totalorder %v2207, 1
    %vm2227 = vcmp.lt.s32.totalorder %v2207, 2
    %vm2228 = vcmp.lt.s32.totalorder %v2207, 3
    %vm2229 = vcmp.lt.s32.totalorder %v2207, 4
    %v2230 = vsel %vm2226, %v2210, %v2213
    %v2231 = vsel %vm2229, %v2219, 2102212464
    %v2232 = vsel %vm2228, %v2216, %v2231
    %v2233 = vsel %vm2227, %v2230, %v2232
    %v2234 = vsel %vm2226, %v2213, %v2216
    %v2235 = vsel %vm2229, %v2222, 920167782
    %v2236 = vsel %vm2228, %v2219, %v2235
    %v2237 = vsel %vm2227, %v2234, %v2236
    %v2238 = vsel %vm2226, %v2216, %v2219
    %v2239 = vsel %vm2229, %v2225, 1326507024
    %v2240 = vsel %vm2228, %v2222, %v2239
    %v2241 = vsel %vm2227, %v2238, %v2240
    %v2242 = vshll.u32 %v2202, 8
    %v2243 = vmul.u32.u64.compose %v2242, %v2241
    %v2244 = vextract.low.u32 %v2243
    %v2245 = vextract.high.u32 %v2243
    %v2246 = vmul.u32.u64.compose %v2242, %v2237
    %v2247 = vextract.low.u32 %v2246
    %v2248 = vextract.high.u32 %v2246
    %v2249 = vmul.u32 %v2242, %v2233
    %v2250 = vadd.s32 %v2245, %v2247
    %vm2251 = vc.u32 %v2245, %v2247
    %v2252 = vadd.s32 %v2248, 1
    %v2253 = vsel %vm2251, %v2252, %v2248
    %v2254 = vadd.s32 %v2249, %v2253
    %v2255 = vadd.s32 %v2254, 536870912
    %v2256 = vshrl.u32 %v2255, 30
    %v2257 = vshll.u32 %v2256, 30
    %v2258 = vsub.s32 %v2254, %v2257
    %vm2259 = vcmp.lt.s32.totalorder %v2258, 0
    %v2260 = vsub.s32 0, %v2258
    %v2261 = vsel %vm2259, %v2260, %v2258
    %v2262 = vclz %v2261
    %v2263 = vsub.s32 %v2262, 2
    %vm2264 = vcmp.gt.s32.totalorder 0, %v2263
    %v2265 = vsel %vm2264, 0, %v2263
    %v2266 = vsub.s32 32, %v2265
    %v2267 = vshll.u32 %v2258, %v2265
    %v2268 = vshrl.u32 %v2250, %v2266
    %v2269 = vor.u32 %v2267, %v2268
    %v2270 = vsub.s32 4294967266, %v2265
    %v2271 = vadd.s32 %v2270, 127
    %v2272 = vshll.u32 %v2271, 23
    %v2273 = vor.u32 4788187, %v2272
    %v2274 = vand.u32 2147483647, %v2273
    %v2276 = vcvt.s32.f32 %v2269
    %v2277 = vmul.f32 %v2276, %v2274
    %v2278 = vxor.u32 %v2277, 2147483648
    %v2279 = vsel %vm2196, %v2278, %v2277
    %v2280 = vsub.s32 4, %v2256
    %v2281 = vsel %vm2196, %v2280, %v2256
    %v2282 = vsel %vm2195, %v601, %v2279
    %v2283 = vsel %vm2195, 0, %v2281
    %v2284 = vcosq.f32.pop %v2282
    %v2285 = vsinq.f32.pop %v2282
    %vm2286 = vweird.f32 %v601
    %v2287 = vadd.s32 %v2283, 3
    %v2288 = vand.u32 %v2287, 3
    %vm2289 = vcmp.lt.s32.totalorder %v2288, 2
    %vm2290 = vcmp.eq.s32.totalorder %v2288, 0
    %v2291 = vxor.u32 %v2285, 2147483648
    %v2292 = vsel %vm2290, %v2284, %v2291
    %vm2293 = vcmp.eq.s32.totalorder %v2288, 2
    %v2294 = vxor.u32 %v2284, 2147483648
    %v2295 = vsel %vm2293, %v2294, %v2285
    %v2296 = vsel %vm2289, %v2292, %v2295
    %v2297 = vsel %vm2286, nan, %v2296
    %v2298 = vand.u32 2147483647, %v602
    %vm2299 = vcmp.le.f32.partialorder %v2298, 0.7853982
    %vm2300 = vcmp.lt.s32.totalorder %v602, 0
    %v2301 = vand.u32 %v602, 2139095040
    %v2302 = vshrl.u32 %v2301, 23
    %v2303 = vsub.s32 %v2302, 127
    %v2304 = vand.u32 2147483647, %v602
    %v2305 = vand.u32 %v2304, 8388607
    %v2306 = vor.u32 %v2305, 8388608
    %v2307 = vsub.s32 0, %v2306
    %v2308 = vadd.s32 %v2303, 1
    %vm2309 = vcmp.gt.s32.totalorder %v2308, 0
    %v2310 = vsel %vm2309, %v2308, 0
    %v2311 = vshrl.u32 %v2310, 5
    %v2312 = vand.u32 %v2310, 31
    %v2313 = vsub.s32 32, %v2312
    %v2314 = vshrl.u32 683565275, %v2313
    %v2315 = vshll.u32 683565275, %v2312
    %v2316 = vshrl.u32 2475754826, %v2313
    %v2317 = vor.u32 %v2315, %v2316
    %v2318 = vshll.u32 2475754826, %v2312
    %v2319 = vshrl.u32 2131351028, %v2313
    %v2320 = vor.u32 %v2318, %v2319
    %v2321 = vshll.u32 2131351028, %v2312
    %v2322 = vshrl.u32 2102212464, %v2313
    %v2323 = vor.u32 %v2321, %v2322
    %v2324 = vshll.u32 2102212464, %v2312
    %v2325 = vshrl.u32 920167782, %v2313
    %v2326 = vor.u32 %v2324, %v2325
    %v2327 = vshll.u32 920167782, %v2312
    %v2328 = vshrl.u32 1326507024, %v2313
    %v2329 = vor.u32 %v2327, %v2328
    %vm2330 = vcmp.lt.s32.totalorder %v2311, 1
    %vm2331 = vcmp.lt.s32.totalorder %v2311, 2
    %vm2332 = vcmp.lt.s32.totalorder %v2311, 3
    %vm2333 = vcmp.lt.s32.totalorder %v2311, 4
    %v2334 = vsel %vm2330, %v2314, %v2317
    %v2335 = vsel %vm2333, %v2323, 2102212464
    %v2336 = vsel %vm2332, %v2320, %v2335
    %v2337 = vsel %vm2331, %v2334, %v2336
    %v2338 = vsel %vm2330, %v2317, %v2320
    %v2339 = vsel %vm2333, %v2326, 920167782
    %v2340 = vsel %vm2332, %v2323, %v2339
    %v2341 = vsel %vm2331, %v2338, %v2340
    %v2342 = vsel %vm2330, %v2320, %v2323
    %v2343 = vsel %vm2333, %v2329, 1326507024
    %v2344 = vsel %vm2332, %v2326, %v2343
    %v2345 = vsel %vm2331, %v2342, %v2344
    %v2346 = vshll.u32 %v2306, 8
    %v2347 = vmul.u32.u64.compose %v2346, %v2345
    %v2348 = vextract.low.u32 %v2347
    %v2349 = vextract.high.u32 %v2347
    %v2350 = vmul.u32.u64.compose %v2346, %v2341
    %v2351 = vextract.low.u32 %v2350
    %v2352 = vextract.high.u32 %v2350
    %v2353 = vmul.u32 %v2346, %v2337
    %v2354 = vadd.s32 %v2349, %v2351
    %vm2355 = vc.u32 %v2349, %v2351
    %v2356 = vadd.s32 %v2352, 1
    %v2357 = vsel %vm2355, %v2356, %v2352
    %v2358 = vadd.s32 %v2353, %v2357
    %v2359 = vadd.s32 %v2358, 536870912
    %v2360 = vshrl.u32 %v2359, 30
    %v2361 = vshll.u32 %v2360, 30
    %v2362 = vsub.s32 %v2358, %v2361
    %vm2363 = vcmp.lt.s32.totalorder %v2362, 0
    %v2364 = vsub.s32 0, %v2362
    %v2365 = vsel %vm2363, %v2364, %v2362
    %v2366 = vclz %v2365
    %v2367 = vsub.s32 %v2366, 2
    %vm2368 = vcmp.gt.s32.totalorder 0, %v2367
    %v2369 = vsel %vm2368, 0, %v2367
    %v2370 = vsub.s32 32, %v2369
    %v2371 = vshll.u32 %v2362, %v2369
    %v2372 = vshrl.u32 %v2354, %v2370
    %v2373 = vor.u32 %v2371, %v2372
    %v2374 = vsub.s32 4294967266, %v2369
    %v2375 = vadd.s32 %v2374, 127
    %v2376 = vshll.u32 %v2375, 23
    %v2377 = vor.u32 4788187, %v2376
    %v2378 = vand.u32 2147483647, %v2377
    %v2380 = vcvt.s32.f32 %v2373
    %v2381 = vmul.f32 %v2380, %v2378
    %v2382 = vxor.u32 %v2381, 2147483648
    %v2383 = vsel %vm2300, %v2382, %v2381
    %v2384 = vsub.s32 4, %v2360
    %v2385 = vsel %vm2300, %v2384, %v2360
    %v2386 = vsel %vm2299, %v602, %v2383
    %v2387 = vsel %vm2299, 0, %v2385
    %v2388 = vcosq.f32.pop %v2386
    %v2389 = vsinq.f32.pop %v2386
    %vm2390 = vweird.f32 %v602
    %v2391 = vadd.s32 %v2387, 3
    %v2392 = vand.u32 %v2391, 3
    %vm2393 = vcmp.lt.s32.totalorder %v2392, 2
    %vm2394 = vcmp.eq.s32.totalorder %v2392, 0
    %v2395 = vxor.u32 %v2389, 2147483648
    %v2396 = vsel %vm2394, %v2388, %v2395
    %vm2397 = vcmp.eq.s32.totalorder %v2392, 2
    %v2398 = vxor.u32 %v2388, 2147483648
    %v2399 = vsel %vm2397, %v2398, %v2389
    %v2400 = vsel %vm2393, %v2396, %v2399
    %v2401 = vsel %vm2390, nan, %v2400
    %v2402 = vand.u32 2147483647, %v603
    %vm2403 = vcmp.le.f32.partialorder %v2402, 0.7853982
    %vm2404 = vcmp.lt.s32.totalorder %v603, 0
    %v2405 = vand.u32 %v603, 2139095040
    %v2406 = vshrl.u32 %v2405, 23
    %v2407 = vsub.s32 %v2406, 127
    %v2408 = vand.u32 2147483647, %v603
    %v2409 = vand.u32 %v2408, 8388607
    %v2410 = vor.u32 %v2409, 8388608
    %v2411 = vsub.s32 0, %v2410
    %v2412 = vadd.s32 %v2407, 1
    %vm2413 = vcmp.gt.s32.totalorder %v2412, 0
    %v2414 = vsel %vm2413, %v2412, 0
    %v2415 = vshrl.u32 %v2414, 5
    %v2416 = vand.u32 %v2414, 31
    %v2417 = vsub.s32 32, %v2416
    %v2418 = vshrl.u32 683565275, %v2417
    %v2419 = vshll.u32 683565275, %v2416
    %v2420 = vshrl.u32 2475754826, %v2417
    %v2421 = vor.u32 %v2419, %v2420
    %v2422 = vshll.u32 2475754826, %v2416
    %v2423 = vshrl.u32 2131351028, %v2417
    %v2424 = vor.u32 %v2422, %v2423
    %v2425 = vshll.u32 2131351028, %v2416
    %v2426 = vshrl.u32 2102212464, %v2417
    %v2427 = vor.u32 %v2425, %v2426
    %v2428 = vshll.u32 2102212464, %v2416
    %v2429 = vshrl.u32 920167782, %v2417
    %v2430 = vor.u32 %v2428, %v2429
    %v2431 = vshll.u32 920167782, %v2416
    %v2432 = vshrl.u32 1326507024, %v2417
    %v2433 = vor.u32 %v2431, %v2432
    %vm2434 = vcmp.lt.s32.totalorder %v2415, 1
    %vm2435 = vcmp.lt.s32.totalorder %v2415, 2
    %vm2436 = vcmp.lt.s32.totalorder %v2415, 3
    %vm2437 = vcmp.lt.s32.totalorder %v2415, 4
    %v2438 = vsel %vm2434, %v2418, %v2421
    %v2439 = vsel %vm2437, %v2427, 2102212464
    %v2440 = vsel %vm2436, %v2424, %v2439
    %v2441 = vsel %vm2435, %v2438, %v2440
    %v2442 = vsel %vm2434, %v2421, %v2424
    %v2443 = vsel %vm2437, %v2430, 920167782
    %v2444 = vsel %vm2436, %v2427, %v2443
    %v2445 = vsel %vm2435, %v2442, %v2444
    %v2446 = vsel %vm2434, %v2424, %v2427
    %v2447 = vsel %vm2437, %v2433, 1326507024
    %v2448 = vsel %vm2436, %v2430, %v2447
    %v2449 = vsel %vm2435, %v2446, %v2448
    %v2450 = vshll.u32 %v2410, 8
    %v2451 = vmul.u32.u64.compose %v2450, %v2449
    %v2452 = vextract.low.u32 %v2451
    %v2453 = vextract.high.u32 %v2451
    %v2454 = vmul.u32.u64.compose %v2450, %v2445
    %v2455 = vextract.low.u32 %v2454
    %v2456 = vextract.high.u32 %v2454
    %v2457 = vmul.u32 %v2450, %v2441
    %v2458 = vadd.s32 %v2453, %v2455
    %vm2459 = vc.u32 %v2453, %v2455
    %v2460 = vadd.s32 %v2456, 1
    %v2461 = vsel %vm2459, %v2460, %v2456
    %v2462 = vadd.s32 %v2457, %v2461
    %v2463 = vadd.s32 %v2462, 536870912
    %v2464 = vshrl.u32 %v2463, 30
    %v2465 = vshll.u32 %v2464, 30
    %v2466 = vsub.s32 %v2462, %v2465
    %vm2467 = vcmp.lt.s32.totalorder %v2466, 0
    %v2468 = vsub.s32 0, %v2466
    %v2469 = vsel %vm2467, %v2468, %v2466
    %v2470 = vclz %v2469
    %v2471 = vsub.s32 %v2470, 2
    %vm2472 = vcmp.gt.s32.totalorder 0, %v2471
    %v2473 = vsel %vm2472, 0, %v2471
    %v2474 = vsub.s32 32, %v2473
    %v2475 = vshll.u32 %v2466, %v2473
    %v2476 = vshrl.u32 %v2458, %v2474
    %v2477 = vor.u32 %v2475, %v2476
    %v2478 = vsub.s32 4294967266, %v2473
    %v2479 = vadd.s32 %v2478, 127
    %v2480 = vshll.u32 %v2479, 23
    %v2481 = vor.u32 4788187, %v2480
    %v2482 = vand.u32 2147483647, %v2481
    %v2484 = vcvt.s32.f32 %v2477
    %v2485 = vmul.f32 %v2484, %v2482
    %v2486 = vxor.u32 %v2485, 2147483648
    %v2487 = vsel %vm2404, %v2486, %v2485
    %v2488 = vsub.s32 4, %v2464
    %v2489 = vsel %vm2404, %v2488, %v2464
    %v2490 = vsel %vm2403, %v603, %v2487
    %v2491 = vsel %vm2403, 0, %v2489
    %v2492 = vcosq.f32.pop %v2490
    %v2493 = vsinq.f32.pop %v2490
    %vm2494 = vweird.f32 %v603
    %v2495 = vadd.s32 %v2491, 3
    %v2496 = vand.u32 %v2495, 3
    %vm2497 = vcmp.lt.s32.totalorder %v2496, 2
    %vm2498 = vcmp.eq.s32.totalorder %v2496, 0
    %v2499 = vxor.u32 %v2493, 2147483648
    %v2500 = vsel %vm2498, %v2492, %v2499
    %vm2501 = vcmp.eq.s32.totalorder %v2496, 2
    %v2502 = vxor.u32 %v2492, 2147483648
    %v2503 = vsel %vm2501, %v2502, %v2493
    %v2504 = vsel %vm2497, %v2500, %v2503
    %v2505 = vsel %vm2494, nan, %v2504
    %v2506 = vand.u32 2147483647, %v604
    %vm2507 = vcmp.le.f32.partialorder %v2506, 0.7853982
    %vm2508 = vcmp.lt.s32.totalorder %v604, 0
    %v2509 = vand.u32 %v604, 2139095040
    %v2510 = vshrl.u32 %v2509, 23
    %v2511 = vsub.s32 %v2510, 127
    %v2512 = vand.u32 2147483647, %v604
    %v2513 = vand.u32 %v2512, 8388607
    %v2514 = vor.u32 %v2513, 8388608
    %v2515 = vsub.s32 0, %v2514
    %v2516 = vadd.s32 %v2511, 1
    %vm2517 = vcmp.gt.s32.totalorder %v2516, 0
    %v2518 = vsel %vm2517, %v2516, 0
    %v2519 = vshrl.u32 %v2518, 5
    %v2520 = vand.u32 %v2518, 31
    %v2521 = vsub.s32 32, %v2520
    %v2522 = vshrl.u32 683565275, %v2521
    %v2523 = vshll.u32 683565275, %v2520
    %v2524 = vshrl.u32 2475754826, %v2521
    %v2525 = vor.u32 %v2523, %v2524
    %v2526 = vshll.u32 2475754826, %v2520
    %v2527 = vshrl.u32 2131351028, %v2521
    %v2528 = vor.u32 %v2526, %v2527
    %v2529 = vshll.u32 2131351028, %v2520
    %v2530 = vshrl.u32 2102212464, %v2521
    %v2531 = vor.u32 %v2529, %v2530
    %v2532 = vshll.u32 2102212464, %v2520
    %v2533 = vshrl.u32 920167782, %v2521
    %v2534 = vor.u32 %v2532, %v2533
    %v2535 = vshll.u32 920167782, %v2520
    %v2536 = vshrl.u32 1326507024, %v2521
    %v2537 = vor.u32 %v2535, %v2536
    %vm2538 = vcmp.lt.s32.totalorder %v2519, 1
    %vm2539 = vcmp.lt.s32.totalorder %v2519, 2
    %vm2540 = vcmp.lt.s32.totalorder %v2519, 3
    %vm2541 = vcmp.lt.s32.totalorder %v2519, 4
    %v2542 = vsel %vm2538, %v2522, %v2525
    %v2543 = vsel %vm2541, %v2531, 2102212464
    %v2544 = vsel %vm2540, %v2528, %v2543
    %v2545 = vsel %vm2539, %v2542, %v2544
    %v2546 = vsel %vm2538, %v2525, %v2528
    %v2547 = vsel %vm2541, %v2534, 920167782
    %v2548 = vsel %vm2540, %v2531, %v2547
    %v2549 = vsel %vm2539, %v2546, %v2548
    %v2550 = vsel %vm2538, %v2528, %v2531
    %v2551 = vsel %vm2541, %v2537, 1326507024
    %v2552 = vsel %vm2540, %v2534, %v2551
    %v2553 = vsel %vm2539, %v2550, %v2552
    %v2554 = vshll.u32 %v2514, 8
    %v2555 = vmul.u32.u64.compose %v2554, %v2553
    %v2556 = vextract.low.u32 %v2555
    %v2557 = vextract.high.u32 %v2555
    %v2558 = vmul.u32.u64.compose %v2554, %v2549
    %v2559 = vextract.low.u32 %v2558
    %v2560 = vextract.high.u32 %v2558
    %v2561 = vmul.u32 %v2554, %v2545
    %v2562 = vadd.s32 %v2557, %v2559
    %vm2563 = vc.u32 %v2557, %v2559
    %v2564 = vadd.s32 %v2560, 1
    %v2565 = vsel %vm2563, %v2564, %v2560
    %v2566 = vadd.s32 %v2561, %v2565
    %v2567 = vadd.s32 %v2566, 536870912
    %v2568 = vshrl.u32 %v2567, 30
    %v2569 = vshll.u32 %v2568, 30
    %v2570 = vsub.s32 %v2566, %v2569
    %vm2571 = vcmp.lt.s32.totalorder %v2570, 0
    %v2572 = vsub.s32 0, %v2570
    %v2573 = vsel %vm2571, %v2572, %v2570
    %v2574 = vclz %v2573
    %v2575 = vsub.s32 %v2574, 2
    %vm2576 = vcmp.gt.s32.totalorder 0, %v2575
    %v2577 = vsel %vm2576, 0, %v2575
    %v2578 = vsub.s32 32, %v2577
    %v2579 = vshll.u32 %v2570, %v2577
    %v2580 = vshrl.u32 %v2562, %v2578
    %v2581 = vor.u32 %v2579, %v2580
    %v2582 = vsub.s32 4294967266, %v2577
    %v2583 = vadd.s32 %v2582, 127
    %v2584 = vshll.u32 %v2583, 23
    %v2585 = vor.u32 4788187, %v2584
    %v2586 = vand.u32 2147483647, %v2585
    %v2588 = vcvt.s32.f32 %v2581
    %v2589 = vmul.f32 %v2588, %v2586
    %v2590 = vxor.u32 %v2589, 2147483648
    %v2591 = vsel %vm2508, %v2590, %v2589
    %v2592 = vsub.s32 4, %v2568
    %v2593 = vsel %vm2508, %v2592, %v2568
    %v2594 = vsel %vm2507, %v604, %v2591
    %v2595 = vsel %vm2507, 0, %v2593
    %v2596 = vcosq.f32.pop %v2594
    %v2597 = vsinq.f32.pop %v2594
    %vm2598 = vweird.f32 %v604
    %v2599 = vadd.s32 %v2595, 3
    %v2600 = vand.u32 %v2599, 3
    %vm2601 = vcmp.lt.s32.totalorder %v2600, 2
    %vm2602 = vcmp.eq.s32.totalorder %v2600, 0
    %v2603 = vxor.u32 %v2597, 2147483648
    %v2604 = vsel %vm2602, %v2596, %v2603
    %vm2605 = vcmp.eq.s32.totalorder %v2600, 2
    %v2606 = vxor.u32 %v2596, 2147483648
    %v2607 = vsel %vm2605, %v2606, %v2597
    %v2608 = vsel %vm2601, %v2604, %v2607
    %v2609 = vsel %vm2598, nan, %v2608
    %v2610 = vand.u32 2147483647, %v605
    %vm2611 = vcmp.le.f32.partialorder %v2610, 0.7853982
    %vm2612 = vcmp.lt.s32.totalorder %v605, 0
    %v2613 = vand.u32 %v605, 2139095040
    %v2614 = vshrl.u32 %v2613, 23
    %v2615 = vsub.s32 %v2614, 127
    %v2616 = vand.u32 2147483647, %v605
    %v2617 = vand.u32 %v2616, 8388607
    %v2618 = vor.u32 %v2617, 8388608
    %v2619 = vsub.s32 0, %v2618
    %v2620 = vadd.s32 %v2615, 1
    %vm2621 = vcmp.gt.s32.totalorder %v2620, 0
    %v2622 = vsel %vm2621, %v2620, 0
    %v2623 = vshrl.u32 %v2622, 5
    %v2624 = vand.u32 %v2622, 31
    %v2625 = vsub.s32 32, %v2624
    %v2626 = vshrl.u32 683565275, %v2625
    %v2627 = vshll.u32 683565275, %v2624
    %v2628 = vshrl.u32 2475754826, %v2625
    %v2629 = vor.u32 %v2627, %v2628
    %v2630 = vshll.u32 2475754826, %v2624
    %v2631 = vshrl.u32 2131351028, %v2625
    %v2632 = vor.u32 %v2630, %v2631
    %v2633 = vshll.u32 2131351028, %v2624
    %v2634 = vshrl.u32 2102212464, %v2625
    %v2635 = vor.u32 %v2633, %v2634
    %v2636 = vshll.u32 2102212464, %v2624
    %v2637 = vshrl.u32 920167782, %v2625
    %v2638 = vor.u32 %v2636, %v2637
    %v2639 = vshll.u32 920167782, %v2624
    %v2640 = vshrl.u32 1326507024, %v2625
    %v2641 = vor.u32 %v2639, %v2640
    %vm2642 = vcmp.lt.s32.totalorder %v2623, 1
    %vm2643 = vcmp.lt.s32.totalorder %v2623, 2
    %vm2644 = vcmp.lt.s32.totalorder %v2623, 3
    %vm2645 = vcmp.lt.s32.totalorder %v2623, 4
    %v2646 = vsel %vm2642, %v2626, %v2629
    %v2647 = vsel %vm2645, %v2635, 2102212464
    %v2648 = vsel %vm2644, %v2632, %v2647
    %v2649 = vsel %vm2643, %v2646, %v2648
    %v2650 = vsel %vm2642, %v2629, %v2632
    %v2651 = vsel %vm2645, %v2638, 920167782
    %v2652 = vsel %vm2644, %v2635, %v2651
    %v2653 = vsel %vm2643, %v2650, %v2652
    %v2654 = vsel %vm2642, %v2632, %v2635
    %v2655 = vsel %vm2645, %v2641, 1326507024
    %v2656 = vsel %vm2644, %v2638, %v2655
    %v2657 = vsel %vm2643, %v2654, %v2656
    %v2658 = vshll.u32 %v2618, 8
    %v2659 = vmul.u32.u64.compose %v2658, %v2657
    %v2660 = vextract.low.u32 %v2659
    %v2661 = vextract.high.u32 %v2659
    %v2662 = vmul.u32.u64.compose %v2658, %v2653
    %v2663 = vextract.low.u32 %v2662
    %v2664 = vextract.high.u32 %v2662
    %v2665 = vmul.u32 %v2658, %v2649
    %v2666 = vadd.s32 %v2661, %v2663
    %vm2667 = vc.u32 %v2661, %v2663
    %v2668 = vadd.s32 %v2664, 1
    %v2669 = vsel %vm2667, %v2668, %v2664
    %v2670 = vadd.s32 %v2665, %v2669
    %v2671 = vadd.s32 %v2670, 536870912
    %v2672 = vshrl.u32 %v2671, 30
    %v2673 = vshll.u32 %v2672, 30
    %v2674 = vsub.s32 %v2670, %v2673
    %vm2675 = vcmp.lt.s32.totalorder %v2674, 0
    %v2676 = vsub.s32 0, %v2674
    %v2677 = vsel %vm2675, %v2676, %v2674
    %v2678 = vclz %v2677
    %v2679 = vsub.s32 %v2678, 2
    %vm2680 = vcmp.gt.s32.totalorder 0, %v2679
    %v2681 = vsel %vm2680, 0, %v2679
    %v2682 = vsub.s32 32, %v2681
    %v2683 = vshll.u32 %v2674, %v2681
    %v2684 = vshrl.u32 %v2666, %v2682
    %v2685 = vor.u32 %v2683, %v2684
    %v2686 = vsub.s32 4294967266, %v2681
    %v2687 = vadd.s32 %v2686, 127
    %v2688 = vshll.u32 %v2687, 23
    %v2689 = vor.u32 4788187, %v2688
    %v2690 = vand.u32 2147483647, %v2689
    %v2692 = vcvt.s32.f32 %v2685
    %v2693 = vmul.f32 %v2692, %v2690
    %v2694 = vxor.u32 %v2693, 2147483648
    %v2695 = vsel %vm2612, %v2694, %v2693
    %v2696 = vsub.s32 4, %v2672
    %v2697 = vsel %vm2612, %v2696, %v2672
    %v2698 = vsel %vm2611, %v605, %v2695
    %v2699 = vsel %vm2611, 0, %v2697
    %v2700 = vcosq.f32.pop %v2698
    %v2701 = vsinq.f32.pop %v2698
    %vm2702 = vweird.f32 %v605
    %v2703 = vadd.s32 %v2699, 3
    %v2704 = vand.u32 %v2703, 3
    %vm2705 = vcmp.lt.s32.totalorder %v2704, 2
    %vm2706 = vcmp.eq.s32.totalorder %v2704, 0
    %v2707 = vxor.u32 %v2701, 2147483648
    %v2708 = vsel %vm2706, %v2700, %v2707
    %vm2709 = vcmp.eq.s32.totalorder %v2704, 2
    %v2710 = vxor.u32 %v2700, 2147483648
    %v2711 = vsel %vm2709, %v2710, %v2701
    %v2712 = vsel %vm2705, %v2708, %v2711
    %v2713 = vsel %vm2702, nan, %v2712
    %v2714 = vand.u32 2147483647, %v606
    %vm2715 = vcmp.le.f32.partialorder %v2714, 0.7853982
    %vm2716 = vcmp.lt.s32.totalorder %v606, 0
    %v2717 = vand.u32 %v606, 2139095040
    %v2718 = vshrl.u32 %v2717, 23
    %v2719 = vsub.s32 %v2718, 127
    %v2720 = vand.u32 2147483647, %v606
    %v2721 = vand.u32 %v2720, 8388607
    %v2722 = vor.u32 %v2721, 8388608
    %v2723 = vsub.s32 0, %v2722
    %v2724 = vadd.s32 %v2719, 1
    %vm2725 = vcmp.gt.s32.totalorder %v2724, 0
    %v2726 = vsel %vm2725, %v2724, 0
    %v2727 = vshrl.u32 %v2726, 5
    %v2728 = vand.u32 %v2726, 31
    %v2729 = vsub.s32 32, %v2728
    %v2730 = vshrl.u32 683565275, %v2729
    %v2731 = vshll.u32 683565275, %v2728
    %v2732 = vshrl.u32 2475754826, %v2729
    %v2733 = vor.u32 %v2731, %v2732
    %v2734 = vshll.u32 2475754826, %v2728
    %v2735 = vshrl.u32 2131351028, %v2729
    %v2736 = vor.u32 %v2734, %v2735
    %v2737 = vshll.u32 2131351028, %v2728
    %v2738 = vshrl.u32 2102212464, %v2729
    %v2739 = vor.u32 %v2737, %v2738
    %v2740 = vshll.u32 2102212464, %v2728
    %v2741 = vshrl.u32 920167782, %v2729
    %v2742 = vor.u32 %v2740, %v2741
    %v2743 = vshll.u32 920167782, %v2728
    %v2744 = vshrl.u32 1326507024, %v2729
    %v2745 = vor.u32 %v2743, %v2744
    %vm2746 = vcmp.lt.s32.totalorder %v2727, 1
    %vm2747 = vcmp.lt.s32.totalorder %v2727, 2
    %vm2748 = vcmp.lt.s32.totalorder %v2727, 3
    %vm2749 = vcmp.lt.s32.totalorder %v2727, 4
    %v2750 = vsel %vm2746, %v2730, %v2733
    %v2751 = vsel %vm2749, %v2739, 2102212464
    %v2752 = vsel %vm2748, %v2736, %v2751
    %v2753 = vsel %vm2747, %v2750, %v2752
    %v2754 = vsel %vm2746, %v2733, %v2736
    %v2755 = vsel %vm2749, %v2742, 920167782
    %v2756 = vsel %vm2748, %v2739, %v2755
    %v2757 = vsel %vm2747, %v2754, %v2756
    %v2758 = vsel %vm2746, %v2736, %v2739
    %v2759 = vsel %vm2749, %v2745, 1326507024
    %v2760 = vsel %vm2748, %v2742, %v2759
    %v2761 = vsel %vm2747, %v2758, %v2760
    %v2762 = vshll.u32 %v2722, 8
    %v2763 = vmul.u32.u64.compose %v2762, %v2761
    %v2764 = vextract.low.u32 %v2763
    %v2765 = vextract.high.u32 %v2763
    %v2766 = vmul.u32.u64.compose %v2762, %v2757
    %v2767 = vextract.low.u32 %v2766
    %v2768 = vextract.high.u32 %v2766
    %v2769 = vmul.u32 %v2762, %v2753
    %v2770 = vadd.s32 %v2765, %v2767
    %vm2771 = vc.u32 %v2765, %v2767
    %v2772 = vadd.s32 %v2768, 1
    %v2773 = vsel %vm2771, %v2772, %v2768
    %v2774 = vadd.s32 %v2769, %v2773
    %v2775 = vadd.s32 %v2774, 536870912
    %v2776 = vshrl.u32 %v2775, 30
    %v2777 = vshll.u32 %v2776, 30
    %v2778 = vsub.s32 %v2774, %v2777
    %vm2779 = vcmp.lt.s32.totalorder %v2778, 0
    %v2780 = vsub.s32 0, %v2778
    %v2781 = vsel %vm2779, %v2780, %v2778
    %v2782 = vclz %v2781
    %v2783 = vsub.s32 %v2782, 2
    %vm2784 = vcmp.gt.s32.totalorder 0, %v2783
    %v2785 = vsel %vm2784, 0, %v2783
    %v2786 = vsub.s32 32, %v2785
    %v2787 = vshll.u32 %v2778, %v2785
    %v2788 = vshrl.u32 %v2770, %v2786
    %v2789 = vor.u32 %v2787, %v2788
    %v2790 = vsub.s32 4294967266, %v2785
    %v2791 = vadd.s32 %v2790, 127
    %v2792 = vshll.u32 %v2791, 23
    %v2793 = vor.u32 4788187, %v2792
    %v2794 = vand.u32 2147483647, %v2793
    %v2796 = vcvt.s32.f32 %v2789
    %v2797 = vmul.f32 %v2796, %v2794
    %v2798 = vxor.u32 %v2797, 2147483648
    %v2799 = vsel %vm2716, %v2798, %v2797
    %v2800 = vsub.s32 4, %v2776
    %v2801 = vsel %vm2716, %v2800, %v2776
    %v2802 = vsel %vm2715, %v606, %v2799
    %v2803 = vsel %vm2715, 0, %v2801
    %v2804 = vcosq.f32.pop %v2802
    %v2805 = vsinq.f32.pop %v2802
    %vm2806 = vweird.f32 %v606
    %v2807 = vadd.s32 %v2803, 3
    %v2808 = vand.u32 %v2807, 3
    %vm2809 = vcmp.lt.s32.totalorder %v2808, 2
    %vm2810 = vcmp.eq.s32.totalorder %v2808, 0
    %v2811 = vxor.u32 %v2805, 2147483648
    %v2812 = vsel %vm2810, %v2804, %v2811
    %vm2813 = vcmp.eq.s32.totalorder %v2808, 2
    %v2814 = vxor.u32 %v2804, 2147483648
    %v2815 = vsel %vm2813, %v2814, %v2805
    %v2816 = vsel %vm2809, %v2812, %v2815
    %v2817 = vsel %vm2806, nan, %v2816
    %v2818 = vand.u32 2147483647, %v607
    %vm2819 = vcmp.le.f32.partialorder %v2818, 0.7853982
    %vm2820 = vcmp.lt.s32.totalorder %v607, 0
    %v2821 = vand.u32 %v607, 2139095040
    %v2822 = vshrl.u32 %v2821, 23
    %v2823 = vsub.s32 %v2822, 127
    %v2824 = vand.u32 2147483647, %v607
    %v2825 = vand.u32 %v2824, 8388607
    %v2826 = vor.u32 %v2825, 8388608
    %v2827 = vsub.s32 0, %v2826
    %v2828 = vadd.s32 %v2823, 1
    %vm2829 = vcmp.gt.s32.totalorder %v2828, 0
    %v2830 = vsel %vm2829, %v2828, 0
    %v2831 = vshrl.u32 %v2830, 5
    %v2832 = vand.u32 %v2830, 31
    %v2833 = vsub.s32 32, %v2832
    %v2834 = vshrl.u32 683565275, %v2833
    %v2835 = vshll.u32 683565275, %v2832
    %v2836 = vshrl.u32 2475754826, %v2833
    %v2837 = vor.u32 %v2835, %v2836
    %v2838 = vshll.u32 2475754826, %v2832
    %v2839 = vshrl.u32 2131351028, %v2833
    %v2840 = vor.u32 %v2838, %v2839
    %v2841 = vshll.u32 2131351028, %v2832
    %v2842 = vshrl.u32 2102212464, %v2833
    %v2843 = vor.u32 %v2841, %v2842
    %v2844 = vshll.u32 2102212464, %v2832
    %v2845 = vshrl.u32 920167782, %v2833
    %v2846 = vor.u32 %v2844, %v2845
    %v2847 = vshll.u32 920167782, %v2832
    %v2848 = vshrl.u32 1326507024, %v2833
    %v2849 = vor.u32 %v2847, %v2848
    %vm2850 = vcmp.lt.s32.totalorder %v2831, 1
    %vm2851 = vcmp.lt.s32.totalorder %v2831, 2
    %vm2852 = vcmp.lt.s32.totalorder %v2831, 3
    %vm2853 = vcmp.lt.s32.totalorder %v2831, 4
    %v2854 = vsel %vm2850, %v2834, %v2837
    %v2855 = vsel %vm2853, %v2843, 2102212464
    %v2856 = vsel %vm2852, %v2840, %v2855
    %v2857 = vsel %vm2851, %v2854, %v2856
    %v2858 = vsel %vm2850, %v2837, %v2840
    %v2859 = vsel %vm2853, %v2846, 920167782
    %v2860 = vsel %vm2852, %v2843, %v2859
    %v2861 = vsel %vm2851, %v2858, %v2860
    %v2862 = vsel %vm2850, %v2840, %v2843
    %v2863 = vsel %vm2853, %v2849, 1326507024
    %v2864 = vsel %vm2852, %v2846, %v2863
    %v2865 = vsel %vm2851, %v2862, %v2864
    %v2866 = vshll.u32 %v2826, 8
    %v2867 = vmul.u32.u64.compose %v2866, %v2865
    %v2868 = vextract.low.u32 %v2867
    %v2869 = vextract.high.u32 %v2867
    %v2870 = vmul.u32.u64.compose %v2866, %v2861
    %v2871 = vextract.low.u32 %v2870
    %v2872 = vextract.high.u32 %v2870
    %v2873 = vmul.u32 %v2866, %v2857
    %v2874 = vadd.s32 %v2869, %v2871
    %vm2875 = vc.u32 %v2869, %v2871
    %v2876 = vadd.s32 %v2872, 1
    %v2877 = vsel %vm2875, %v2876, %v2872
    %v2878 = vadd.s32 %v2873, %v2877
    %v2879 = vadd.s32 %v2878, 536870912
    %v2880 = vshrl.u32 %v2879, 30
    %v2881 = vshll.u32 %v2880, 30
    %v2882 = vsub.s32 %v2878, %v2881
    %vm2883 = vcmp.lt.s32.totalorder %v2882, 0
    %v2884 = vsub.s32 0, %v2882
    %v2885 = vsel %vm2883, %v2884, %v2882
    %v2886 = vclz %v2885
    %v2887 = vsub.s32 %v2886, 2
    %vm2888 = vcmp.gt.s32.totalorder 0, %v2887
    %v2889 = vsel %vm2888, 0, %v2887
    %v2890 = vsub.s32 32, %v2889
    %v2891 = vshll.u32 %v2882, %v2889
    %v2892 = vshrl.u32 %v2874, %v2890
    %v2893 = vor.u32 %v2891, %v2892
    %v2894 = vsub.s32 4294967266, %v2889
    %v2895 = vadd.s32 %v2894, 127
    %v2896 = vshll.u32 %v2895, 23
    %v2897 = vor.u32 4788187, %v2896
    %v2898 = vand.u32 2147483647, %v2897
    %v2900 = vcvt.s32.f32 %v2893
    %v2901 = vmul.f32 %v2900, %v2898
    %v2902 = vxor.u32 %v2901, 2147483648
    %v2903 = vsel %vm2820, %v2902, %v2901
    %v2904 = vsub.s32 4, %v2880
    %v2905 = vsel %vm2820, %v2904, %v2880
    %v2906 = vsel %vm2819, %v607, %v2903
    %v2907 = vsel %vm2819, 0, %v2905
    %v2908 = vcosq.f32.pop %v2906
    %v2909 = vsinq.f32.pop %v2906
    %vm2910 = vweird.f32 %v607
    %v2911 = vadd.s32 %v2907, 3
    %v2912 = vand.u32 %v2911, 3
    %vm2913 = vcmp.lt.s32.totalorder %v2912, 2
    %vm2914 = vcmp.eq.s32.totalorder %v2912, 0
    %v2915 = vxor.u32 %v2909, 2147483648
    %v2916 = vsel %vm2914, %v2908, %v2915
    %vm2917 = vcmp.eq.s32.totalorder %v2912, 2
    %v2918 = vxor.u32 %v2908, 2147483648
    %v2919 = vsel %vm2917, %v2918, %v2909
    %v2920 = vsel %vm2913, %v2916, %v2919
    %v2921 = vsel %vm2910, nan, %v2920
    %v2922 = vand.u32 2147483647, %v608
    %vm2923 = vcmp.le.f32.partialorder %v2922, 0.7853982
    %vm2924 = vcmp.lt.s32.totalorder %v608, 0
    %v2925 = vand.u32 %v608, 2139095040
    %v2926 = vshrl.u32 %v2925, 23
    %v2927 = vsub.s32 %v2926, 127
    %v2928 = vand.u32 2147483647, %v608
    %v2929 = vand.u32 %v2928, 8388607
    %v2930 = vor.u32 %v2929, 8388608
    %v2931 = vsub.s32 0, %v2930
    %v2932 = vadd.s32 %v2927, 1
    %vm2933 = vcmp.gt.s32.totalorder %v2932, 0
    %v2934 = vsel %vm2933, %v2932, 0
    %v2935 = vshrl.u32 %v2934, 5
    %v2936 = vand.u32 %v2934, 31
    %v2937 = vsub.s32 32, %v2936
    %v2938 = vshrl.u32 683565275, %v2937
    %v2939 = vshll.u32 683565275, %v2936
    %v2940 = vshrl.u32 2475754826, %v2937
    %v2941 = vor.u32 %v2939, %v2940
    %v2942 = vshll.u32 2475754826, %v2936
    %v2943 = vshrl.u32 2131351028, %v2937
    %v2944 = vor.u32 %v2942, %v2943
    %v2945 = vshll.u32 2131351028, %v2936
    %v2946 = vshrl.u32 2102212464, %v2937
    %v2947 = vor.u32 %v2945, %v2946
    %v2948 = vshll.u32 2102212464, %v2936
    %v2949 = vshrl.u32 920167782, %v2937
    %v2950 = vor.u32 %v2948, %v2949
    %v2951 = vshll.u32 920167782, %v2936
    %v2952 = vshrl.u32 1326507024, %v2937
    %v2953 = vor.u32 %v2951, %v2952
    %vm2954 = vcmp.lt.s32.totalorder %v2935, 1
    %vm2955 = vcmp.lt.s32.totalorder %v2935, 2
    %vm2956 = vcmp.lt.s32.totalorder %v2935, 3
    %vm2957 = vcmp.lt.s32.totalorder %v2935, 4
    %v2958 = vsel %vm2954, %v2938, %v2941
    %v2959 = vsel %vm2957, %v2947, 2102212464
    %v2960 = vsel %vm2956, %v2944, %v2959
    %v2961 = vsel %vm2955, %v2958, %v2960
    %v2962 = vsel %vm2954, %v2941, %v2944
    %v2963 = vsel %vm2957, %v2950, 920167782
    %v2964 = vsel %vm2956, %v2947, %v2963
    %v2965 = vsel %vm2955, %v2962, %v2964
    %v2966 = vsel %vm2954, %v2944, %v2947
    %v2967 = vsel %vm2957, %v2953, 1326507024
    %v2968 = vsel %vm2956, %v2950, %v2967
    %v2969 = vsel %vm2955, %v2966, %v2968
    %v2970 = vshll.u32 %v2930, 8
    %v2971 = vmul.u32.u64.compose %v2970, %v2969
    %v2972 = vextract.low.u32 %v2971
    %v2973 = vextract.high.u32 %v2971
    %v2974 = vmul.u32.u64.compose %v2970, %v2965
    %v2975 = vextract.low.u32 %v2974
    %v2976 = vextract.high.u32 %v2974
    %v2977 = vmul.u32 %v2970, %v2961
    %v2978 = vadd.s32 %v2973, %v2975
    %vm2979 = vc.u32 %v2973, %v2975
    %v2980 = vadd.s32 %v2976, 1
    %v2981 = vsel %vm2979, %v2980, %v2976
    %v2982 = vadd.s32 %v2977, %v2981
    %v2983 = vadd.s32 %v2982, 536870912
    %v2984 = vshrl.u32 %v2983, 30
    %v2985 = vshll.u32 %v2984, 30
    %v2986 = vsub.s32 %v2982, %v2985
    %vm2987 = vcmp.lt.s32.totalorder %v2986, 0
    %v2988 = vsub.s32 0, %v2986
    %v2989 = vsel %vm2987, %v2988, %v2986
    %v2990 = vclz %v2989
    %v2991 = vsub.s32 %v2990, 2
    %vm2992 = vcmp.gt.s32.totalorder 0, %v2991
    %v2993 = vsel %vm2992, 0, %v2991
    %v2994 = vsub.s32 32, %v2993
    %v2995 = vshll.u32 %v2986, %v2993
    %v2996 = vshrl.u32 %v2978, %v2994
    %v2997 = vor.u32 %v2995, %v2996
    %v2998 = vsub.s32 4294967266, %v2993
    %v2999 = vadd.s32 %v2998, 127
    %v3000 = vshll.u32 %v2999, 23
    %v3001 = vor.u32 4788187, %v3000
    %v3002 = vand.u32 2147483647, %v3001
    %v3004 = vcvt.s32.f32 %v2997
    %v3005 = vmul.f32 %v3004, %v3002
    %v3006 = vxor.u32 %v3005, 2147483648
    %v3007 = vsel %vm2924, %v3006, %v3005
    %v3008 = vsub.s32 4, %v2984
    %v3009 = vsel %vm2924, %v3008, %v2984
    %v3010 = vsel %vm2923, %v608, %v3007
    %v3011 = vsel %vm2923, 0, %v3009
    %v3012 = vcosq.f32.pop %v3010
    %v3013 = vsinq.f32.pop %v3010
    %vm3014 = vweird.f32 %v608
    %v3015 = vadd.s32 %v3011, 3
    %v3016 = vand.u32 %v3015, 3
    %vm3017 = vcmp.lt.s32.totalorder %v3016, 2
    %vm3018 = vcmp.eq.s32.totalorder %v3016, 0
    %v3019 = vxor.u32 %v3013, 2147483648
    %v3020 = vsel %vm3018, %v3012, %v3019
    %vm3021 = vcmp.eq.s32.totalorder %v3016, 2
    %v3022 = vxor.u32 %v3012, 2147483648
    %v3023 = vsel %vm3021, %v3022, %v3013
    %v3024 = vsel %vm3017, %v3020, %v3023
    %v3025 = vsel %vm3014, nan, %v3024
    %v3026 = vand.u32 2147483647, %v609
    %vm3027 = vcmp.le.f32.partialorder %v3026, 0.7853982
    %vm3028 = vcmp.lt.s32.totalorder %v609, 0
    %v3029 = vand.u32 %v609, 2139095040
    %v3030 = vshrl.u32 %v3029, 23
    %v3031 = vsub.s32 %v3030, 127
    %v3032 = vand.u32 2147483647, %v609
    %v3033 = vand.u32 %v3032, 8388607
    %v3034 = vor.u32 %v3033, 8388608
    %v3035 = vsub.s32 0, %v3034
    %v3036 = vadd.s32 %v3031, 1
    %vm3037 = vcmp.gt.s32.totalorder %v3036, 0
    %v3038 = vsel %vm3037, %v3036, 0
    %v3039 = vshrl.u32 %v3038, 5
    %v3040 = vand.u32 %v3038, 31
    %v3041 = vsub.s32 32, %v3040
    %v3042 = vshrl.u32 683565275, %v3041
    %v3043 = vshll.u32 683565275, %v3040
    %v3044 = vshrl.u32 2475754826, %v3041
    %v3045 = vor.u32 %v3043, %v3044
    %v3046 = vshll.u32 2475754826, %v3040
    %v3047 = vshrl.u32 2131351028, %v3041
    %v3048 = vor.u32 %v3046, %v3047
    %v3049 = vshll.u32 2131351028, %v3040
    %v3050 = vshrl.u32 2102212464, %v3041
    %v3051 = vor.u32 %v3049, %v3050
    %v3052 = vshll.u32 2102212464, %v3040
    %v3053 = vshrl.u32 920167782, %v3041
    %v3054 = vor.u32 %v3052, %v3053
    %v3055 = vshll.u32 920167782, %v3040
    %v3056 = vshrl.u32 1326507024, %v3041
    %v3057 = vor.u32 %v3055, %v3056
    %vm3058 = vcmp.lt.s32.totalorder %v3039, 1
    %vm3059 = vcmp.lt.s32.totalorder %v3039, 2
    %vm3060 = vcmp.lt.s32.totalorder %v3039, 3
    %vm3061 = vcmp.lt.s32.totalorder %v3039, 4
    %v3062 = vsel %vm3058, %v3042, %v3045
    %v3063 = vsel %vm3061, %v3051, 2102212464
    %v3064 = vsel %vm3060, %v3048, %v3063
    %v3065 = vsel %vm3059, %v3062, %v3064
    %v3066 = vsel %vm3058, %v3045, %v3048
    %v3067 = vsel %vm3061, %v3054, 920167782
    %v3068 = vsel %vm3060, %v3051, %v3067
    %v3069 = vsel %vm3059, %v3066, %v3068
    %v3070 = vsel %vm3058, %v3048, %v3051
    %v3071 = vsel %vm3061, %v3057, 1326507024
    %v3072 = vsel %vm3060, %v3054, %v3071
    %v3073 = vsel %vm3059, %v3070, %v3072
    %v3074 = vshll.u32 %v3034, 8
    %v3075 = vmul.u32.u64.compose %v3074, %v3073
    %v3076 = vextract.low.u32 %v3075
    %v3077 = vextract.high.u32 %v3075
    %v3078 = vmul.u32.u64.compose %v3074, %v3069
    %v3079 = vextract.low.u32 %v3078
    %v3080 = vextract.high.u32 %v3078
    %v3081 = vmul.u32 %v3074, %v3065
    %v3082 = vadd.s32 %v3077, %v3079
    %vm3083 = vc.u32 %v3077, %v3079
    %v3084 = vadd.s32 %v3080, 1
    %v3085 = vsel %vm3083, %v3084, %v3080
    %v3086 = vadd.s32 %v3081, %v3085
    %v3087 = vadd.s32 %v3086, 536870912
    %v3088 = vshrl.u32 %v3087, 30
    %v3089 = vshll.u32 %v3088, 30
    %v3090 = vsub.s32 %v3086, %v3089
    %vm3091 = vcmp.lt.s32.totalorder %v3090, 0
    %v3092 = vsub.s32 0, %v3090
    %v3093 = vsel %vm3091, %v3092, %v3090
    %v3094 = vclz %v3093
    %v3095 = vsub.s32 %v3094, 2
    %vm3096 = vcmp.gt.s32.totalorder 0, %v3095
    %v3097 = vsel %vm3096, 0, %v3095
    %v3098 = vsub.s32 32, %v3097
    %v3099 = vshll.u32 %v3090, %v3097
    %v3100 = vshrl.u32 %v3082, %v3098
    %v3101 = vor.u32 %v3099, %v3100
    %v3102 = vsub.s32 4294967266, %v3097
    %v3103 = vadd.s32 %v3102, 127
    %v3104 = vshll.u32 %v3103, 23
    %v3105 = vor.u32 4788187, %v3104
    %v3106 = vand.u32 2147483647, %v3105
    %v3108 = vcvt.s32.f32 %v3101
    %v3109 = vmul.f32 %v3108, %v3106
    %v3110 = vxor.u32 %v3109, 2147483648
    %v3111 = vsel %vm3028, %v3110, %v3109
    %v3112 = vsub.s32 4, %v3088
    %v3113 = vsel %vm3028, %v3112, %v3088
    %v3114 = vsel %vm3027, %v609, %v3111
    %v3115 = vsel %vm3027, 0, %v3113
    %v3116 = vcosq.f32.pop %v3114
    %v3117 = vsinq.f32.pop %v3114
    %vm3118 = vweird.f32 %v609
    %v3119 = vadd.s32 %v3115, 3
    %v3120 = vand.u32 %v3119, 3
    %vm3121 = vcmp.lt.s32.totalorder %v3120, 2
    %vm3122 = vcmp.eq.s32.totalorder %v3120, 0
    %v3123 = vxor.u32 %v3117, 2147483648
    %v3124 = vsel %vm3122, %v3116, %v3123
    %vm3125 = vcmp.eq.s32.totalorder %v3120, 2
    %v3126 = vxor.u32 %v3116, 2147483648
    %v3127 = vsel %vm3125, %v3126, %v3117
    %v3128 = vsel %vm3121, %v3124, %v3127
    %v3129 = vsel %vm3118, nan, %v3128
    %v3130 = vand.u32 2147483647, %v610
    %vm3131 = vcmp.le.f32.partialorder %v3130, 0.7853982
    %vm3132 = vcmp.lt.s32.totalorder %v610, 0
    %v3133 = vand.u32 %v610, 2139095040
    %v3134 = vshrl.u32 %v3133, 23
    %v3135 = vsub.s32 %v3134, 127
    %v3136 = vand.u32 2147483647, %v610
    %v3137 = vand.u32 %v3136, 8388607
    %v3138 = vor.u32 %v3137, 8388608
    %v3139 = vsub.s32 0, %v3138
    %v3140 = vadd.s32 %v3135, 1
    %vm3141 = vcmp.gt.s32.totalorder %v3140, 0
    %v3142 = vsel %vm3141, %v3140, 0
    %v3143 = vshrl.u32 %v3142, 5
    %v3144 = vand.u32 %v3142, 31
    %v3145 = vsub.s32 32, %v3144
    %v3146 = vshrl.u32 683565275, %v3145
    %v3147 = vshll.u32 683565275, %v3144
    %v3148 = vshrl.u32 2475754826, %v3145
    %v3149 = vor.u32 %v3147, %v3148
    %v3150 = vshll.u32 2475754826, %v3144
    %v3151 = vshrl.u32 2131351028, %v3145
    %v3152 = vor.u32 %v3150, %v3151
    %v3153 = vshll.u32 2131351028, %v3144
    %v3154 = vshrl.u32 2102212464, %v3145
    %v3155 = vor.u32 %v3153, %v3154
    %v3156 = vshll.u32 2102212464, %v3144
    %v3157 = vshrl.u32 920167782, %v3145
    %v3158 = vor.u32 %v3156, %v3157
    %v3159 = vshll.u32 920167782, %v3144
    %v3160 = vshrl.u32 1326507024, %v3145
    %v3161 = vor.u32 %v3159, %v3160
    %vm3162 = vcmp.lt.s32.totalorder %v3143, 1
    %vm3163 = vcmp.lt.s32.totalorder %v3143, 2
    %vm3164 = vcmp.lt.s32.totalorder %v3143, 3
    %vm3165 = vcmp.lt.s32.totalorder %v3143, 4
    %v3166 = vsel %vm3162, %v3146, %v3149
    %v3167 = vsel %vm3165, %v3155, 2102212464
    %v3168 = vsel %vm3164, %v3152, %v3167
    %v3169 = vsel %vm3163, %v3166, %v3168
    %v3170 = vsel %vm3162, %v3149, %v3152
    %v3171 = vsel %vm3165, %v3158, 920167782
    %v3172 = vsel %vm3164, %v3155, %v3171
    %v3173 = vsel %vm3163, %v3170, %v3172
    %v3174 = vsel %vm3162, %v3152, %v3155
    %v3175 = vsel %vm3165, %v3161, 1326507024
    %v3176 = vsel %vm3164, %v3158, %v3175
    %v3177 = vsel %vm3163, %v3174, %v3176
    %v3178 = vshll.u32 %v3138, 8
    %v3179 = vmul.u32.u64.compose %v3178, %v3177
    %v3180 = vextract.low.u32 %v3179
    %v3181 = vextract.high.u32 %v3179
    %v3182 = vmul.u32.u64.compose %v3178, %v3173
    %v3183 = vextract.low.u32 %v3182
    %v3184 = vextract.high.u32 %v3182
    %v3185 = vmul.u32 %v3178, %v3169
    %v3186 = vadd.s32 %v3181, %v3183
    %vm3187 = vc.u32 %v3181, %v3183
    %v3188 = vadd.s32 %v3184, 1
    %v3189 = vsel %vm3187, %v3188, %v3184
    %v3190 = vadd.s32 %v3185, %v3189
    %v3191 = vadd.s32 %v3190, 536870912
    %v3192 = vshrl.u32 %v3191, 30
    %v3193 = vshll.u32 %v3192, 30
    %v3194 = vsub.s32 %v3190, %v3193
    %vm3195 = vcmp.lt.s32.totalorder %v3194, 0
    %v3196 = vsub.s32 0, %v3194
    %v3197 = vsel %vm3195, %v3196, %v3194
    %v3198 = vclz %v3197
    %v3199 = vsub.s32 %v3198, 2
    %vm3200 = vcmp.gt.s32.totalorder 0, %v3199
    %v3201 = vsel %vm3200, 0, %v3199
    %v3202 = vsub.s32 32, %v3201
    %v3203 = vshll.u32 %v3194, %v3201
    %v3204 = vshrl.u32 %v3186, %v3202
    %v3205 = vor.u32 %v3203, %v3204
    %v3206 = vsub.s32 4294967266, %v3201
    %v3207 = vadd.s32 %v3206, 127
    %v3208 = vshll.u32 %v3207, 23
    %v3209 = vor.u32 4788187, %v3208
    %v3210 = vand.u32 2147483647, %v3209
    %v3212 = vcvt.s32.f32 %v3205
    %v3213 = vmul.f32 %v3212, %v3210
    %v3214 = vxor.u32 %v3213, 2147483648
    %v3215 = vsel %vm3132, %v3214, %v3213
    %v3216 = vsub.s32 4, %v3192
    %v3217 = vsel %vm3132, %v3216, %v3192
    %v3218 = vsel %vm3131, %v610, %v3215
    %v3219 = vsel %vm3131, 0, %v3217
    %v3220 = vcosq.f32.pop %v3218
    %v3221 = vsinq.f32.pop %v3218
    %vm3222 = vweird.f32 %v610
    %v3223 = vadd.s32 %v3219, 3
    %v3224 = vand.u32 %v3223, 3
    %vm3225 = vcmp.lt.s32.totalorder %v3224, 2
    %vm3226 = vcmp.eq.s32.totalorder %v3224, 0
    %v3227 = vxor.u32 %v3221, 2147483648
    %v3228 = vsel %vm3226, %v3220, %v3227
    %vm3229 = vcmp.eq.s32.totalorder %v3224, 2
    %v3230 = vxor.u32 %v3220, 2147483648
    %v3231 = vsel %vm3229, %v3230, %v3221
    %v3232 = vsel %vm3225, %v3228, %v3231
    %v3233 = vsel %vm3222, nan, %v3232
    %v3234 = vand.u32 2147483647, %v611
    %vm3235 = vcmp.le.f32.partialorder %v3234, 0.7853982
    %vm3236 = vcmp.lt.s32.totalorder %v611, 0
    %v3237 = vand.u32 %v611, 2139095040
    %v3238 = vshrl.u32 %v3237, 23
    %v3239 = vsub.s32 %v3238, 127
    %v3240 = vand.u32 2147483647, %v611
    %v3241 = vand.u32 %v3240, 8388607
    %v3242 = vor.u32 %v3241, 8388608
    %v3243 = vsub.s32 0, %v3242
    %v3244 = vadd.s32 %v3239, 1
    %vm3245 = vcmp.gt.s32.totalorder %v3244, 0
    %v3246 = vsel %vm3245, %v3244, 0
    %v3247 = vshrl.u32 %v3246, 5
    %v3248 = vand.u32 %v3246, 31
    %v3249 = vsub.s32 32, %v3248
    %v3250 = vshrl.u32 683565275, %v3249
    %v3251 = vshll.u32 683565275, %v3248
    %v3252 = vshrl.u32 2475754826, %v3249
    %v3253 = vor.u32 %v3251, %v3252
    %v3254 = vshll.u32 2475754826, %v3248
    %v3255 = vshrl.u32 2131351028, %v3249
    %v3256 = vor.u32 %v3254, %v3255
    %v3257 = vshll.u32 2131351028, %v3248
    %v3258 = vshrl.u32 2102212464, %v3249
    %v3259 = vor.u32 %v3257, %v3258
    %v3260 = vshll.u32 2102212464, %v3248
    %v3261 = vshrl.u32 920167782, %v3249
    %v3262 = vor.u32 %v3260, %v3261
    %v3263 = vshll.u32 920167782, %v3248
    %v3264 = vshrl.u32 1326507024, %v3249
    %v3265 = vor.u32 %v3263, %v3264
    %vm3266 = vcmp.lt.s32.totalorder %v3247, 1
    %vm3267 = vcmp.lt.s32.totalorder %v3247, 2
    %vm3268 = vcmp.lt.s32.totalorder %v3247, 3
    %vm3269 = vcmp.lt.s32.totalorder %v3247, 4
    %v3270 = vsel %vm3266, %v3250, %v3253
    %v3271 = vsel %vm3269, %v3259, 2102212464
    %v3272 = vsel %vm3268, %v3256, %v3271
    %v3273 = vsel %vm3267, %v3270, %v3272
    %v3274 = vsel %vm3266, %v3253, %v3256
    %v3275 = vsel %vm3269, %v3262, 920167782
    %v3276 = vsel %vm3268, %v3259, %v3275
    %v3277 = vsel %vm3267, %v3274, %v3276
    %v3278 = vsel %vm3266, %v3256, %v3259
    %v3279 = vsel %vm3269, %v3265, 1326507024
    %v3280 = vsel %vm3268, %v3262, %v3279
    %v3281 = vsel %vm3267, %v3278, %v3280
    %v3282 = vshll.u32 %v3242, 8
    %v3283 = vmul.u32.u64.compose %v3282, %v3281
    %v3284 = vextract.low.u32 %v3283
    %v3285 = vextract.high.u32 %v3283
    %v3286 = vmul.u32.u64.compose %v3282, %v3277
    %v3287 = vextract.low.u32 %v3286
    %v3288 = vextract.high.u32 %v3286
    %v3289 = vmul.u32 %v3282, %v3273
    %v3290 = vadd.s32 %v3285, %v3287
    %vm3291 = vc.u32 %v3285, %v3287
    %v3292 = vadd.s32 %v3288, 1
    %v3293 = vsel %vm3291, %v3292, %v3288
    %v3294 = vadd.s32 %v3289, %v3293
    %v3295 = vadd.s32 %v3294, 536870912
    %v3296 = vshrl.u32 %v3295, 30
    %v3297 = vshll.u32 %v3296, 30
    %v3298 = vsub.s32 %v3294, %v3297
    %vm3299 = vcmp.lt.s32.totalorder %v3298, 0
    %v3300 = vsub.s32 0, %v3298
    %v3301 = vsel %vm3299, %v3300, %v3298
    %v3302 = vclz %v3301
    %v3303 = vsub.s32 %v3302, 2
    %vm3304 = vcmp.gt.s32.totalorder 0, %v3303
    %v3305 = vsel %vm3304, 0, %v3303
    %v3306 = vsub.s32 32, %v3305
    %v3307 = vshll.u32 %v3298, %v3305
    %v3308 = vshrl.u32 %v3290, %v3306
    %v3309 = vor.u32 %v3307, %v3308
    %v3310 = vsub.s32 4294967266, %v3305
    %v3311 = vadd.s32 %v3310, 127
    %v3312 = vshll.u32 %v3311, 23
    %v3313 = vor.u32 4788187, %v3312
    %v3314 = vand.u32 2147483647, %v3313
    %v3316 = vcvt.s32.f32 %v3309
    %v3317 = vmul.f32 %v3316, %v3314
    %v3318 = vxor.u32 %v3317, 2147483648
    %v3319 = vsel %vm3236, %v3318, %v3317
    %v3320 = vsub.s32 4, %v3296
    %v3321 = vsel %vm3236, %v3320, %v3296
    %v3322 = vsel %vm3235, %v611, %v3319
    %v3323 = vsel %vm3235, 0, %v3321
    %v3324 = vcosq.f32.pop %v3322
    %v3325 = vsinq.f32.pop %v3322
    %vm3326 = vweird.f32 %v611
    %v3327 = vadd.s32 %v3323, 3
    %v3328 = vand.u32 %v3327, 3
    %vm3329 = vcmp.lt.s32.totalorder %v3328, 2
    %vm3330 = vcmp.eq.s32.totalorder %v3328, 0
    %v3331 = vxor.u32 %v3325, 2147483648
    %v3332 = vsel %vm3330, %v3324, %v3331
    %vm3333 = vcmp.eq.s32.totalorder %v3328, 2
    %v3334 = vxor.u32 %v3324, 2147483648
    %v3335 = vsel %vm3333, %v3334, %v3325
    %v3336 = vsel %vm3329, %v3332, %v3335
    %v3337 = vsel %vm3326, nan, %v3336
    %v3338 = vand.u32 2147483647, %v612
    %vm3339 = vcmp.le.f32.partialorder %v3338, 0.7853982
    %vm3340 = vcmp.lt.s32.totalorder %v612, 0
    %v3341 = vand.u32 %v612, 2139095040
    %v3342 = vshrl.u32 %v3341, 23
    %v3343 = vsub.s32 %v3342, 127
    %v3344 = vand.u32 2147483647, %v612
    %v3345 = vand.u32 %v3344, 8388607
    %v3346 = vor.u32 %v3345, 8388608
    %v3347 = vsub.s32 0, %v3346
    %v3348 = vadd.s32 %v3343, 1
    %vm3349 = vcmp.gt.s32.totalorder %v3348, 0
    %v3350 = vsel %vm3349, %v3348, 0
    %v3351 = vshrl.u32 %v3350, 5
    %v3352 = vand.u32 %v3350, 31
    %v3353 = vsub.s32 32, %v3352
    %v3354 = vshrl.u32 683565275, %v3353
    %v3355 = vshll.u32 683565275, %v3352
    %v3356 = vshrl.u32 2475754826, %v3353
    %v3357 = vor.u32 %v3355, %v3356
    %v3358 = vshll.u32 2475754826, %v3352
    %v3359 = vshrl.u32 2131351028, %v3353
    %v3360 = vor.u32 %v3358, %v3359
    %v3361 = vshll.u32 2131351028, %v3352
    %v3362 = vshrl.u32 2102212464, %v3353
    %v3363 = vor.u32 %v3361, %v3362
    %v3364 = vshll.u32 2102212464, %v3352
    %v3365 = vshrl.u32 920167782, %v3353
    %v3366 = vor.u32 %v3364, %v3365
    %v3367 = vshll.u32 920167782, %v3352
    %v3368 = vshrl.u32 1326507024, %v3353
    %v3369 = vor.u32 %v3367, %v3368
    %vm3370 = vcmp.lt.s32.totalorder %v3351, 1
    %vm3371 = vcmp.lt.s32.totalorder %v3351, 2
    %vm3372 = vcmp.lt.s32.totalorder %v3351, 3
    %vm3373 = vcmp.lt.s32.totalorder %v3351, 4
    %v3374 = vsel %vm3370, %v3354, %v3357
    %v3375 = vsel %vm3373, %v3363, 2102212464
    %v3376 = vsel %vm3372, %v3360, %v3375
    %v3377 = vsel %vm3371, %v3374, %v3376
    %v3378 = vsel %vm3370, %v3357, %v3360
    %v3379 = vsel %vm3373, %v3366, 920167782
    %v3380 = vsel %vm3372, %v3363, %v3379
    %v3381 = vsel %vm3371, %v3378, %v3380
    %v3382 = vsel %vm3370, %v3360, %v3363
    %v3383 = vsel %vm3373, %v3369, 1326507024
    %v3384 = vsel %vm3372, %v3366, %v3383
    %v3385 = vsel %vm3371, %v3382, %v3384
    %v3386 = vshll.u32 %v3346, 8
    %v3387 = vmul.u32.u64.compose %v3386, %v3385
    %v3388 = vextract.low.u32 %v3387
    %v3389 = vextract.high.u32 %v3387
    %v3390 = vmul.u32.u64.compose %v3386, %v3381
    %v3391 = vextract.low.u32 %v3390
    %v3392 = vextract.high.u32 %v3390
    %v3393 = vmul.u32 %v3386, %v3377
    %v3394 = vadd.s32 %v3389, %v3391
    %vm3395 = vc.u32 %v3389, %v3391
    %v3396 = vadd.s32 %v3392, 1
    %v3397 = vsel %vm3395, %v3396, %v3392
    %v3398 = vadd.s32 %v3393, %v3397
    %v3399 = vadd.s32 %v3398, 536870912
    %v3400 = vshrl.u32 %v3399, 30
    %v3401 = vshll.u32 %v3400, 30
    %v3402 = vsub.s32 %v3398, %v3401
    %vm3403 = vcmp.lt.s32.totalorder %v3402, 0
    %v3404 = vsub.s32 0, %v3402
    %v3405 = vsel %vm3403, %v3404, %v3402
    %v3406 = vclz %v3405
    %v3407 = vsub.s32 %v3406, 2
    %vm3408 = vcmp.gt.s32.totalorder 0, %v3407
    %v3409 = vsel %vm3408, 0, %v3407
    %v3410 = vsub.s32 32, %v3409
    %v3411 = vshll.u32 %v3402, %v3409
    %v3412 = vshrl.u32 %v3394, %v3410
    %v3413 = vor.u32 %v3411, %v3412
    %v3414 = vsub.s32 4294967266, %v3409
    %v3415 = vadd.s32 %v3414, 127
    %v3416 = vshll.u32 %v3415, 23
    %v3417 = vor.u32 4788187, %v3416
    %v3418 = vand.u32 2147483647, %v3417
    %v3420 = vcvt.s32.f32 %v3413
    %v3421 = vmul.f32 %v3420, %v3418
    %v3422 = vxor.u32 %v3421, 2147483648
    %v3423 = vsel %vm3340, %v3422, %v3421
    %v3424 = vsub.s32 4, %v3400
    %v3425 = vsel %vm3340, %v3424, %v3400
    %v3426 = vsel %vm3339, %v612, %v3423
    %v3427 = vsel %vm3339, 0, %v3425
    %v3428 = vcosq.f32.pop %v3426
    %v3429 = vsinq.f32.pop %v3426
    %vm3430 = vweird.f32 %v612
    %v3431 = vadd.s32 %v3427, 3
    %v3432 = vand.u32 %v3431, 3
    %vm3433 = vcmp.lt.s32.totalorder %v3432, 2
    %vm3434 = vcmp.eq.s32.totalorder %v3432, 0
    %v3435 = vxor.u32 %v3429, 2147483648
    %v3436 = vsel %vm3434, %v3428, %v3435
    %vm3437 = vcmp.eq.s32.totalorder %v3432, 2
    %v3438 = vxor.u32 %v3428, 2147483648
    %v3439 = vsel %vm3437, %v3438, %v3429
    %v3440 = vsel %vm3433, %v3436, %v3439
    %v3441 = vsel %vm3430, nan, %v3440
    %v3442 = vand.u32 2147483647, %v613
    %vm3443 = vcmp.le.f32.partialorder %v3442, 0.7853982
    %vm3444 = vcmp.lt.s32.totalorder %v613, 0
    %v3445 = vand.u32 %v613, 2139095040
    %v3446 = vshrl.u32 %v3445, 23
    %v3447 = vsub.s32 %v3446, 127
    %v3448 = vand.u32 2147483647, %v613
    %v3449 = vand.u32 %v3448, 8388607
    %v3450 = vor.u32 %v3449, 8388608
    %v3451 = vsub.s32 0, %v3450
    %v3452 = vadd.s32 %v3447, 1
    %vm3453 = vcmp.gt.s32.totalorder %v3452, 0
    %v3454 = vsel %vm3453, %v3452, 0
    %v3455 = vshrl.u32 %v3454, 5
    %v3456 = vand.u32 %v3454, 31
    %v3457 = vsub.s32 32, %v3456
    %v3458 = vshrl.u32 683565275, %v3457
    %v3459 = vshll.u32 683565275, %v3456
    %v3460 = vshrl.u32 2475754826, %v3457
    %v3461 = vor.u32 %v3459, %v3460
    %v3462 = vshll.u32 2475754826, %v3456
    %v3463 = vshrl.u32 2131351028, %v3457
    %v3464 = vor.u32 %v3462, %v3463
    %v3465 = vshll.u32 2131351028, %v3456
    %v3466 = vshrl.u32 2102212464, %v3457
    %v3467 = vor.u32 %v3465, %v3466
    %v3468 = vshll.u32 2102212464, %v3456
    %v3469 = vshrl.u32 920167782, %v3457
    %v3470 = vor.u32 %v3468, %v3469
    %v3471 = vshll.u32 920167782, %v3456
    %v3472 = vshrl.u32 1326507024, %v3457
    %v3473 = vor.u32 %v3471, %v3472
    %vm3474 = vcmp.lt.s32.totalorder %v3455, 1
    %vm3475 = vcmp.lt.s32.totalorder %v3455, 2
    %vm3476 = vcmp.lt.s32.totalorder %v3455, 3
    %vm3477 = vcmp.lt.s32.totalorder %v3455, 4
    %v3478 = vsel %vm3474, %v3458, %v3461
    %v3479 = vsel %vm3477, %v3467, 2102212464
    %v3480 = vsel %vm3476, %v3464, %v3479
    %v3481 = vsel %vm3475, %v3478, %v3480
    %v3482 = vsel %vm3474, %v3461, %v3464
    %v3483 = vsel %vm3477, %v3470, 920167782
    %v3484 = vsel %vm3476, %v3467, %v3483
    %v3485 = vsel %vm3475, %v3482, %v3484
    %v3486 = vsel %vm3474, %v3464, %v3467
    %v3487 = vsel %vm3477, %v3473, 1326507024
    %v3488 = vsel %vm3476, %v3470, %v3487
    %v3489 = vsel %vm3475, %v3486, %v3488
    %v3490 = vshll.u32 %v3450, 8
    %v3491 = vmul.u32.u64.compose %v3490, %v3489
    %v3492 = vextract.low.u32 %v3491
    %v3493 = vextract.high.u32 %v3491
    %v3494 = vmul.u32.u64.compose %v3490, %v3485
    %v3495 = vextract.low.u32 %v3494
    %v3496 = vextract.high.u32 %v3494
    %v3497 = vmul.u32 %v3490, %v3481
    %v3498 = vadd.s32 %v3493, %v3495
    %vm3499 = vc.u32 %v3493, %v3495
    %v3500 = vadd.s32 %v3496, 1
    %v3501 = vsel %vm3499, %v3500, %v3496
    %v3502 = vadd.s32 %v3497, %v3501
    %v3503 = vadd.s32 %v3502, 536870912
    %v3504 = vshrl.u32 %v3503, 30
    %v3505 = vshll.u32 %v3504, 30
    %v3506 = vsub.s32 %v3502, %v3505
    %vm3507 = vcmp.lt.s32.totalorder %v3506, 0
    %v3508 = vsub.s32 0, %v3506
    %v3509 = vsel %vm3507, %v3508, %v3506
    %v3510 = vclz %v3509
    %v3511 = vsub.s32 %v3510, 2
    %vm3512 = vcmp.gt.s32.totalorder 0, %v3511
    %v3513 = vsel %vm3512, 0, %v3511
    %v3514 = vsub.s32 32, %v3513
    %v3515 = vshll.u32 %v3506, %v3513
    %v3516 = vshrl.u32 %v3498, %v3514
    %v3517 = vor.u32 %v3515, %v3516
    %v3518 = vsub.s32 4294967266, %v3513
    %v3519 = vadd.s32 %v3518, 127
    %v3520 = vshll.u32 %v3519, 23
    %v3521 = vor.u32 4788187, %v3520
    %v3522 = vand.u32 2147483647, %v3521
    %v3524 = vcvt.s32.f32 %v3517
    %v3525 = vmul.f32 %v3524, %v3522
    %v3526 = vxor.u32 %v3525, 2147483648
    %v3527 = vsel %vm3444, %v3526, %v3525
    %v3528 = vsub.s32 4, %v3504
    %v3529 = vsel %vm3444, %v3528, %v3504
    %v3530 = vsel %vm3443, %v613, %v3527
    %v3531 = vsel %vm3443, 0, %v3529
    %v3532 = vcosq.f32.pop %v3530
    %v3533 = vsinq.f32.pop %v3530
    %vm3534 = vweird.f32 %v613
    %v3535 = vadd.s32 %v3531, 3
    %v3536 = vand.u32 %v3535, 3
    %vm3537 = vcmp.lt.s32.totalorder %v3536, 2
    %vm3538 = vcmp.eq.s32.totalorder %v3536, 0
    %v3539 = vxor.u32 %v3533, 2147483648
    %v3540 = vsel %vm3538, %v3532, %v3539
    %vm3541 = vcmp.eq.s32.totalorder %v3536, 2
    %v3542 = vxor.u32 %v3532, 2147483648
    %v3543 = vsel %vm3541, %v3542, %v3533
    %v3544 = vsel %vm3537, %v3540, %v3543
    %v3545 = vsel %vm3534, nan, %v3544
    %v3546 = vand.u32 2147483647, %v614
    %vm3547 = vcmp.le.f32.partialorder %v3546, 0.7853982
    %vm3548 = vcmp.lt.s32.totalorder %v614, 0
    %v3549 = vand.u32 %v614, 2139095040
    %v3550 = vshrl.u32 %v3549, 23
    %v3551 = vsub.s32 %v3550, 127
    %v3552 = vand.u32 2147483647, %v614
    %v3553 = vand.u32 %v3552, 8388607
    %v3554 = vor.u32 %v3553, 8388608
    %v3555 = vsub.s32 0, %v3554
    %v3556 = vadd.s32 %v3551, 1
    %vm3557 = vcmp.gt.s32.totalorder %v3556, 0
    %v3558 = vsel %vm3557, %v3556, 0
    %v3559 = vshrl.u32 %v3558, 5
    %v3560 = vand.u32 %v3558, 31
    %v3561 = vsub.s32 32, %v3560
    %v3562 = vshrl.u32 683565275, %v3561
    %v3563 = vshll.u32 683565275, %v3560
    %v3564 = vshrl.u32 2475754826, %v3561
    %v3565 = vor.u32 %v3563, %v3564
    %v3566 = vshll.u32 2475754826, %v3560
    %v3567 = vshrl.u32 2131351028, %v3561
    %v3568 = vor.u32 %v3566, %v3567
    %v3569 = vshll.u32 2131351028, %v3560
    %v3570 = vshrl.u32 2102212464, %v3561
    %v3571 = vor.u32 %v3569, %v3570
    %v3572 = vshll.u32 2102212464, %v3560
    %v3573 = vshrl.u32 920167782, %v3561
    %v3574 = vor.u32 %v3572, %v3573
    %v3575 = vshll.u32 920167782, %v3560
    %v3576 = vshrl.u32 1326507024, %v3561
    %v3577 = vor.u32 %v3575, %v3576
    %vm3578 = vcmp.lt.s32.totalorder %v3559, 1
    %vm3579 = vcmp.lt.s32.totalorder %v3559, 2
    %vm3580 = vcmp.lt.s32.totalorder %v3559, 3
    %vm3581 = vcmp.lt.s32.totalorder %v3559, 4
    %v3582 = vsel %vm3578, %v3562, %v3565
    %v3583 = vsel %vm3581, %v3571, 2102212464
    %v3584 = vsel %vm3580, %v3568, %v3583
    %v3585 = vsel %vm3579, %v3582, %v3584
    %v3586 = vsel %vm3578, %v3565, %v3568
    %v3587 = vsel %vm3581, %v3574, 920167782
    %v3588 = vsel %vm3580, %v3571, %v3587
    %v3589 = vsel %vm3579, %v3586, %v3588
    %v3590 = vsel %vm3578, %v3568, %v3571
    %v3591 = vsel %vm3581, %v3577, 1326507024
    %v3592 = vsel %vm3580, %v3574, %v3591
    %v3593 = vsel %vm3579, %v3590, %v3592
    %v3594 = vshll.u32 %v3554, 8
    %v3595 = vmul.u32.u64.compose %v3594, %v3593
    %v3596 = vextract.low.u32 %v3595
    %v3597 = vextract.high.u32 %v3595
    %v3598 = vmul.u32.u64.compose %v3594, %v3589
    %v3599 = vextract.low.u32 %v3598
    %v3600 = vextract.high.u32 %v3598
    %v3601 = vmul.u32 %v3594, %v3585
    %v3602 = vadd.s32 %v3597, %v3599
    %vm3603 = vc.u32 %v3597, %v3599
    %v3604 = vadd.s32 %v3600, 1
    %v3605 = vsel %vm3603, %v3604, %v3600
    %v3606 = vadd.s32 %v3601, %v3605
    %v3607 = vadd.s32 %v3606, 536870912
    %v3608 = vshrl.u32 %v3607, 30
    %v3609 = vshll.u32 %v3608, 30
    %v3610 = vsub.s32 %v3606, %v3609
    %vm3611 = vcmp.lt.s32.totalorder %v3610, 0
    %v3612 = vsub.s32 0, %v3610
    %v3613 = vsel %vm3611, %v3612, %v3610
    %v3614 = vclz %v3613
    %v3615 = vsub.s32 %v3614, 2
    %vm3616 = vcmp.gt.s32.totalorder 0, %v3615
    %v3617 = vsel %vm3616, 0, %v3615
    %v3618 = vsub.s32 32, %v3617
    %v3619 = vshll.u32 %v3610, %v3617
    %v3620 = vshrl.u32 %v3602, %v3618
    %v3621 = vor.u32 %v3619, %v3620
    %v3622 = vsub.s32 4294967266, %v3617
    %v3623 = vadd.s32 %v3622, 127
    %v3624 = vshll.u32 %v3623, 23
    %v3625 = vor.u32 4788187, %v3624
    %v3626 = vand.u32 2147483647, %v3625
    %v3628 = vcvt.s32.f32 %v3621
    %v3629 = vmul.f32 %v3628, %v3626
    %v3630 = vxor.u32 %v3629, 2147483648
    %v3631 = vsel %vm3548, %v3630, %v3629
    %v3632 = vsub.s32 4, %v3608
    %v3633 = vsel %vm3548, %v3632, %v3608
    %v3634 = vsel %vm3547, %v614, %v3631
    %v3635 = vsel %vm3547, 0, %v3633
    %v3636 = vcosq.f32.pop %v3634
    %v3637 = vsinq.f32.pop %v3634
    %vm3638 = vweird.f32 %v614
    %v3639 = vadd.s32 %v3635, 3
    %v3640 = vand.u32 %v3639, 3
    %vm3641 = vcmp.lt.s32.totalorder %v3640, 2
    %vm3642 = vcmp.eq.s32.totalorder %v3640, 0
    %v3643 = vxor.u32 %v3637, 2147483648
    %v3644 = vsel %vm3642, %v3636, %v3643
    %vm3645 = vcmp.eq.s32.totalorder %v3640, 2
    %v3646 = vxor.u32 %v3636, 2147483648
    %v3647 = vsel %vm3645, %v3646, %v3637
    %v3648 = vsel %vm3641, %v3644, %v3647
    %v3649 = vsel %vm3638, nan, %v3648
    %v3650 = vand.u32 2147483647, %v615
    %vm3651 = vcmp.le.f32.partialorder %v3650, 0.7853982
    %vm3652 = vcmp.lt.s32.totalorder %v615, 0
    %v3653 = vand.u32 %v615, 2139095040
    %v3654 = vshrl.u32 %v3653, 23
    %v3655 = vsub.s32 %v3654, 127
    %v3656 = vand.u32 2147483647, %v615
    %v3657 = vand.u32 %v3656, 8388607
    %v3658 = vor.u32 %v3657, 8388608
    %v3659 = vsub.s32 0, %v3658
    %v3660 = vadd.s32 %v3655, 1
    %vm3661 = vcmp.gt.s32.totalorder %v3660, 0
    %v3662 = vsel %vm3661, %v3660, 0
    %v3663 = vshrl.u32 %v3662, 5
    %v3664 = vand.u32 %v3662, 31
    %v3665 = vsub.s32 32, %v3664
    %v3666 = vshrl.u32 683565275, %v3665
    %v3667 = vshll.u32 683565275, %v3664
    %v3668 = vshrl.u32 2475754826, %v3665
    %v3669 = vor.u32 %v3667, %v3668
    %v3670 = vshll.u32 2475754826, %v3664
    %v3671 = vshrl.u32 2131351028, %v3665
    %v3672 = vor.u32 %v3670, %v3671
    %v3673 = vshll.u32 2131351028, %v3664
    %v3674 = vshrl.u32 2102212464, %v3665
    %v3675 = vor.u32 %v3673, %v3674
    %v3676 = vshll.u32 2102212464, %v3664
    %v3677 = vshrl.u32 920167782, %v3665
    %v3678 = vor.u32 %v3676, %v3677
    %v3679 = vshll.u32 920167782, %v3664
    %v3680 = vshrl.u32 1326507024, %v3665
    %v3681 = vor.u32 %v3679, %v3680
    %vm3682 = vcmp.lt.s32.totalorder %v3663, 1
    %vm3683 = vcmp.lt.s32.totalorder %v3663, 2
    %vm3684 = vcmp.lt.s32.totalorder %v3663, 3
    %vm3685 = vcmp.lt.s32.totalorder %v3663, 4
    %v3686 = vsel %vm3682, %v3666, %v3669
    %v3687 = vsel %vm3685, %v3675, 2102212464
    %v3688 = vsel %vm3684, %v3672, %v3687
    %v3689 = vsel %vm3683, %v3686, %v3688
    %v3690 = vsel %vm3682, %v3669, %v3672
    %v3691 = vsel %vm3685, %v3678, 920167782
    %v3692 = vsel %vm3684, %v3675, %v3691
    %v3693 = vsel %vm3683, %v3690, %v3692
    %v3694 = vsel %vm3682, %v3672, %v3675
    %v3695 = vsel %vm3685, %v3681, 1326507024
    %v3696 = vsel %vm3684, %v3678, %v3695
    %v3697 = vsel %vm3683, %v3694, %v3696
    %v3698 = vshll.u32 %v3658, 8
    %v3699 = vmul.u32.u64.compose %v3698, %v3697
    %v3700 = vextract.low.u32 %v3699
    %v3701 = vextract.high.u32 %v3699
    %v3702 = vmul.u32.u64.compose %v3698, %v3693
    %v3703 = vextract.low.u32 %v3702
    %v3704 = vextract.high.u32 %v3702
    %v3705 = vmul.u32 %v3698, %v3689
    %v3706 = vadd.s32 %v3701, %v3703
    %vm3707 = vc.u32 %v3701, %v3703
    %v3708 = vadd.s32 %v3704, 1
    %v3709 = vsel %vm3707, %v3708, %v3704
    %v3710 = vadd.s32 %v3705, %v3709
    %v3711 = vadd.s32 %v3710, 536870912
    %v3712 = vshrl.u32 %v3711, 30
    %v3713 = vshll.u32 %v3712, 30
    %v3714 = vsub.s32 %v3710, %v3713
    %vm3715 = vcmp.lt.s32.totalorder %v3714, 0
    %v3716 = vsub.s32 0, %v3714
    %v3717 = vsel %vm3715, %v3716, %v3714
    %v3718 = vclz %v3717
    %v3719 = vsub.s32 %v3718, 2
    %vm3720 = vcmp.gt.s32.totalorder 0, %v3719
    %v3721 = vsel %vm3720, 0, %v3719
    %v3722 = vsub.s32 32, %v3721
    %v3723 = vshll.u32 %v3714, %v3721
    %v3724 = vshrl.u32 %v3706, %v3722
    %v3725 = vor.u32 %v3723, %v3724
    %v3726 = vsub.s32 4294967266, %v3721
    %v3727 = vadd.s32 %v3726, 127
    %v3728 = vshll.u32 %v3727, 23
    %v3729 = vor.u32 4788187, %v3728
    %v3730 = vand.u32 2147483647, %v3729
    %v3732 = vcvt.s32.f32 %v3725
    %v3733 = vmul.f32 %v3732, %v3730
    %v3734 = vxor.u32 %v3733, 2147483648
    %v3735 = vsel %vm3652, %v3734, %v3733
    %v3736 = vsub.s32 4, %v3712
    %v3737 = vsel %vm3652, %v3736, %v3712
    %v3738 = vsel %vm3651, %v615, %v3735
    %v3739 = vsel %vm3651, 0, %v3737
    %v3740 = vcosq.f32.pop %v3738
    %v3741 = vsinq.f32.pop %v3738
    %vm3742 = vweird.f32 %v615
    %v3743 = vadd.s32 %v3739, 3
    %v3744 = vand.u32 %v3743, 3
    %vm3745 = vcmp.lt.s32.totalorder %v3744, 2
    %vm3746 = vcmp.eq.s32.totalorder %v3744, 0
    %v3747 = vxor.u32 %v3741, 2147483648
    %v3748 = vsel %vm3746, %v3740, %v3747
    %vm3749 = vcmp.eq.s32.totalorder %v3744, 2
    %v3750 = vxor.u32 %v3740, 2147483648
    %v3751 = vsel %vm3749, %v3750, %v3741
    %v3752 = vsel %vm3745, %v3748, %v3751
    %v3753 = vsel %vm3742, nan, %v3752
    %v3754 = vand.u32 2147483647, %v616
    %vm3755 = vcmp.le.f32.partialorder %v3754, 0.7853982
    %vm3756 = vcmp.lt.s32.totalorder %v616, 0
    %v3757 = vand.u32 %v616, 2139095040
    %v3758 = vshrl.u32 %v3757, 23
    %v3759 = vsub.s32 %v3758, 127
    %v3760 = vand.u32 2147483647, %v616
    %v3761 = vand.u32 %v3760, 8388607
    %v3762 = vor.u32 %v3761, 8388608
    %v3763 = vsub.s32 0, %v3762
    %v3764 = vadd.s32 %v3759, 1
    %vm3765 = vcmp.gt.s32.totalorder %v3764, 0
    %v3766 = vsel %vm3765, %v3764, 0
    %v3767 = vshrl.u32 %v3766, 5
    %v3768 = vand.u32 %v3766, 31
    %v3769 = vsub.s32 32, %v3768
    %v3770 = vshrl.u32 683565275, %v3769
    %v3771 = vshll.u32 683565275, %v3768
    %v3772 = vshrl.u32 2475754826, %v3769
    %v3773 = vor.u32 %v3771, %v3772
    %v3774 = vshll.u32 2475754826, %v3768
    %v3775 = vshrl.u32 2131351028, %v3769
    %v3776 = vor.u32 %v3774, %v3775
    %v3777 = vshll.u32 2131351028, %v3768
    %v3778 = vshrl.u32 2102212464, %v3769
    %v3779 = vor.u32 %v3777, %v3778
    %v3780 = vshll.u32 2102212464, %v3768
    %v3781 = vshrl.u32 920167782, %v3769
    %v3782 = vor.u32 %v3780, %v3781
    %v3783 = vshll.u32 920167782, %v3768
    %v3784 = vshrl.u32 1326507024, %v3769
    %v3785 = vor.u32 %v3783, %v3784
    %vm3786 = vcmp.lt.s32.totalorder %v3767, 1
    %vm3787 = vcmp.lt.s32.totalorder %v3767, 2
    %vm3788 = vcmp.lt.s32.totalorder %v3767, 3
    %vm3789 = vcmp.lt.s32.totalorder %v3767, 4
    %v3790 = vsel %vm3786, %v3770, %v3773
    %v3791 = vsel %vm3789, %v3779, 2102212464
    %v3792 = vsel %vm3788, %v3776, %v3791
    %v3793 = vsel %vm3787, %v3790, %v3792
    %v3794 = vsel %vm3786, %v3773, %v3776
    %v3795 = vsel %vm3789, %v3782, 920167782
    %v3796 = vsel %vm3788, %v3779, %v3795
    %v3797 = vsel %vm3787, %v3794, %v3796
    %v3798 = vsel %vm3786, %v3776, %v3779
    %v3799 = vsel %vm3789, %v3785, 1326507024
    %v3800 = vsel %vm3788, %v3782, %v3799
    %v3801 = vsel %vm3787, %v3798, %v3800
    %v3802 = vshll.u32 %v3762, 8
    %v3803 = vmul.u32.u64.compose %v3802, %v3801
    %v3804 = vextract.low.u32 %v3803
    %v3805 = vextract.high.u32 %v3803
    %v3806 = vmul.u32.u64.compose %v3802, %v3797
    %v3807 = vextract.low.u32 %v3806
    %v3808 = vextract.high.u32 %v3806
    %v3809 = vmul.u32 %v3802, %v3793
    %v3810 = vadd.s32 %v3805, %v3807
    %vm3811 = vc.u32 %v3805, %v3807
    %v3812 = vadd.s32 %v3808, 1
    %v3813 = vsel %vm3811, %v3812, %v3808
    %v3814 = vadd.s32 %v3809, %v3813
    %v3815 = vadd.s32 %v3814, 536870912
    %v3816 = vshrl.u32 %v3815, 30
    %v3817 = vshll.u32 %v3816, 30
    %v3818 = vsub.s32 %v3814, %v3817
    %vm3819 = vcmp.lt.s32.totalorder %v3818, 0
    %v3820 = vsub.s32 0, %v3818
    %v3821 = vsel %vm3819, %v3820, %v3818
    %v3822 = vclz %v3821
    %v3823 = vsub.s32 %v3822, 2
    %vm3824 = vcmp.gt.s32.totalorder 0, %v3823
    %v3825 = vsel %vm3824, 0, %v3823
    %v3826 = vsub.s32 32, %v3825
    %v3827 = vshll.u32 %v3818, %v3825
    %v3828 = vshrl.u32 %v3810, %v3826
    %v3829 = vor.u32 %v3827, %v3828
    %v3830 = vsub.s32 4294967266, %v3825
    %v3831 = vadd.s32 %v3830, 127
    %v3832 = vshll.u32 %v3831, 23
    %v3833 = vor.u32 4788187, %v3832
    %v3834 = vand.u32 2147483647, %v3833
    %v3836 = vcvt.s32.f32 %v3829
    %v3837 = vmul.f32 %v3836, %v3834
    %v3838 = vxor.u32 %v3837, 2147483648
    %v3839 = vsel %vm3756, %v3838, %v3837
    %v3840 = vsub.s32 4, %v3816
    %v3841 = vsel %vm3756, %v3840, %v3816
    %v3842 = vsel %vm3755, %v616, %v3839
    %v3843 = vsel %vm3755, 0, %v3841
    %v3844 = vcosq.f32.pop %v3842
    %v3845 = vsinq.f32.pop %v3842
    %vm3846 = vweird.f32 %v616
    %v3847 = vadd.s32 %v3843, 3
    %v3848 = vand.u32 %v3847, 3
    %vm3849 = vcmp.lt.s32.totalorder %v3848, 2
    %vm3850 = vcmp.eq.s32.totalorder %v3848, 0
    %v3851 = vxor.u32 %v3845, 2147483648
    %v3852 = vsel %vm3850, %v3844, %v3851
    %vm3853 = vcmp.eq.s32.totalorder %v3848, 2
    %v3854 = vxor.u32 %v3844, 2147483648
    %v3855 = vsel %vm3853, %v3854, %v3845
    %v3856 = vsel %vm3849, %v3852, %v3855
    %v3857 = vsel %vm3846, nan, %v3856
    %v3858 = vand.u32 2147483647, %v617
    %vm3859 = vcmp.le.f32.partialorder %v3858, 0.7853982
    %vm3860 = vcmp.lt.s32.totalorder %v617, 0
    %v3861 = vand.u32 %v617, 2139095040
    %v3862 = vshrl.u32 %v3861, 23
    %v3863 = vsub.s32 %v3862, 127
    %v3864 = vand.u32 2147483647, %v617
    %v3865 = vand.u32 %v3864, 8388607
    %v3866 = vor.u32 %v3865, 8388608
    %v3867 = vsub.s32 0, %v3866
    %v3868 = vadd.s32 %v3863, 1
    %vm3869 = vcmp.gt.s32.totalorder %v3868, 0
    %v3870 = vsel %vm3869, %v3868, 0
    %v3871 = vshrl.u32 %v3870, 5
    %v3872 = vand.u32 %v3870, 31
    %v3873 = vsub.s32 32, %v3872
    %v3874 = vshrl.u32 683565275, %v3873
    %v3875 = vshll.u32 683565275, %v3872
    %v3876 = vshrl.u32 2475754826, %v3873
    %v3877 = vor.u32 %v3875, %v3876
    %v3878 = vshll.u32 2475754826, %v3872
    %v3879 = vshrl.u32 2131351028, %v3873
    %v3880 = vor.u32 %v3878, %v3879
    %v3881 = vshll.u32 2131351028, %v3872
    %v3882 = vshrl.u32 2102212464, %v3873
    %v3883 = vor.u32 %v3881, %v3882
    %v3884 = vshll.u32 2102212464, %v3872
    %v3885 = vshrl.u32 920167782, %v3873
    %v3886 = vor.u32 %v3884, %v3885
    %v3887 = vshll.u32 920167782, %v3872
    %v3888 = vshrl.u32 1326507024, %v3873
    %v3889 = vor.u32 %v3887, %v3888
    %vm3890 = vcmp.lt.s32.totalorder %v3871, 1
    %vm3891 = vcmp.lt.s32.totalorder %v3871, 2
    %vm3892 = vcmp.lt.s32.totalorder %v3871, 3
    %vm3893 = vcmp.lt.s32.totalorder %v3871, 4
    %v3894 = vsel %vm3890, %v3874, %v3877
    %v3895 = vsel %vm3893, %v3883, 2102212464
    %v3896 = vsel %vm3892, %v3880, %v3895
    %v3897 = vsel %vm3891, %v3894, %v3896
    %v3898 = vsel %vm3890, %v3877, %v3880
    %v3899 = vsel %vm3893, %v3886, 920167782
    %v3900 = vsel %vm3892, %v3883, %v3899
    %v3901 = vsel %vm3891, %v3898, %v3900
    %v3902 = vsel %vm3890, %v3880, %v3883
    %v3903 = vsel %vm3893, %v3889, 1326507024
    %v3904 = vsel %vm3892, %v3886, %v3903
    %v3905 = vsel %vm3891, %v3902, %v3904
    %v3906 = vshll.u32 %v3866, 8
    %v3907 = vmul.u32.u64.compose %v3906, %v3905
    %v3908 = vextract.low.u32 %v3907
    %v3909 = vextract.high.u32 %v3907
    %v3910 = vmul.u32.u64.compose %v3906, %v3901
    %v3911 = vextract.low.u32 %v3910
    %v3912 = vextract.high.u32 %v3910
    %v3913 = vmul.u32 %v3906, %v3897
    %v3914 = vadd.s32 %v3909, %v3911
    %vm3915 = vc.u32 %v3909, %v3911
    %v3916 = vadd.s32 %v3912, 1
    %v3917 = vsel %vm3915, %v3916, %v3912
    %v3918 = vadd.s32 %v3913, %v3917
    %v3919 = vadd.s32 %v3918, 536870912
    %v3920 = vshrl.u32 %v3919, 30
    %v3921 = vshll.u32 %v3920, 30
    %v3922 = vsub.s32 %v3918, %v3921
    %vm3923 = vcmp.lt.s32.totalorder %v3922, 0
    %v3924 = vsub.s32 0, %v3922
    %v3925 = vsel %vm3923, %v3924, %v3922
    %v3926 = vclz %v3925
    %v3927 = vsub.s32 %v3926, 2
    %vm3928 = vcmp.gt.s32.totalorder 0, %v3927
    %v3929 = vsel %vm3928, 0, %v3927
    %v3930 = vsub.s32 32, %v3929
    %v3931 = vshll.u32 %v3922, %v3929
    %v3932 = vshrl.u32 %v3914, %v3930
    %v3933 = vor.u32 %v3931, %v3932
    %v3934 = vsub.s32 4294967266, %v3929
    %v3935 = vadd.s32 %v3934, 127
    %v3936 = vshll.u32 %v3935, 23
    %v3937 = vor.u32 4788187, %v3936
    %v3938 = vand.u32 2147483647, %v3937
    %v3940 = vcvt.s32.f32 %v3933
    %v3941 = vmul.f32 %v3940, %v3938
    %v3942 = vxor.u32 %v3941, 2147483648
    %v3943 = vsel %vm3860, %v3942, %v3941
    %v3944 = vsub.s32 4, %v3920
    %v3945 = vsel %vm3860, %v3944, %v3920
    %v3946 = vsel %vm3859, %v617, %v3943
    %v3947 = vsel %vm3859, 0, %v3945
    %v3948 = vcosq.f32.pop %v3946
    %v3949 = vsinq.f32.pop %v3946
    %vm3950 = vweird.f32 %v617
    %v3951 = vadd.s32 %v3947, 3
    %v3952 = vand.u32 %v3951, 3
    %vm3953 = vcmp.lt.s32.totalorder %v3952, 2
    %vm3954 = vcmp.eq.s32.totalorder %v3952, 0
    %v3955 = vxor.u32 %v3949, 2147483648
    %v3956 = vsel %vm3954, %v3948, %v3955
    %vm3957 = vcmp.eq.s32.totalorder %v3952, 2
    %v3958 = vxor.u32 %v3948, 2147483648
    %v3959 = vsel %vm3957, %v3958, %v3949
    %v3960 = vsel %vm3953, %v3956, %v3959
    %v3961 = vsel %vm3950, nan, %v3960
    %v3962 = vand.u32 2147483647, %v618
    %vm3963 = vcmp.le.f32.partialorder %v3962, 0.7853982
    %vm3964 = vcmp.lt.s32.totalorder %v618, 0
    %v3965 = vand.u32 %v618, 2139095040
    %v3966 = vshrl.u32 %v3965, 23
    %v3967 = vsub.s32 %v3966, 127
    %v3968 = vand.u32 2147483647, %v618
    %v3969 = vand.u32 %v3968, 8388607
    %v3970 = vor.u32 %v3969, 8388608
    %v3971 = vsub.s32 0, %v3970
    %v3972 = vadd.s32 %v3967, 1
    %vm3973 = vcmp.gt.s32.totalorder %v3972, 0
    %v3974 = vsel %vm3973, %v3972, 0
    %v3975 = vshrl.u32 %v3974, 5
    %v3976 = vand.u32 %v3974, 31
    %v3977 = vsub.s32 32, %v3976
    %v3978 = vshrl.u32 683565275, %v3977
    %v3979 = vshll.u32 683565275, %v3976
    %v3980 = vshrl.u32 2475754826, %v3977
    %v3981 = vor.u32 %v3979, %v3980
    %v3982 = vshll.u32 2475754826, %v3976
    %v3983 = vshrl.u32 2131351028, %v3977
    %v3984 = vor.u32 %v3982, %v3983
    %v3985 = vshll.u32 2131351028, %v3976
    %v3986 = vshrl.u32 2102212464, %v3977
    %v3987 = vor.u32 %v3985, %v3986
    %v3988 = vshll.u32 2102212464, %v3976
    %v3989 = vshrl.u32 920167782, %v3977
    %v3990 = vor.u32 %v3988, %v3989
    %v3991 = vshll.u32 920167782, %v3976
    %v3992 = vshrl.u32 1326507024, %v3977
    %v3993 = vor.u32 %v3991, %v3992
    %vm3994 = vcmp.lt.s32.totalorder %v3975, 1
    %vm3995 = vcmp.lt.s32.totalorder %v3975, 2
    %vm3996 = vcmp.lt.s32.totalorder %v3975, 3
    %vm3997 = vcmp.lt.s32.totalorder %v3975, 4
    %v3998 = vsel %vm3994, %v3978, %v3981
    %v3999 = vsel %vm3997, %v3987, 2102212464
    %v4000 = vsel %vm3996, %v3984, %v3999
    %v4001 = vsel %vm3995, %v3998, %v4000
    %v4002 = vsel %vm3994, %v3981, %v3984
    %v4003 = vsel %vm3997, %v3990, 920167782
    %v4004 = vsel %vm3996, %v3987, %v4003
    %v4005 = vsel %vm3995, %v4002, %v4004
    %v4006 = vsel %vm3994, %v3984, %v3987
    %v4007 = vsel %vm3997, %v3993, 1326507024
    %v4008 = vsel %vm3996, %v3990, %v4007
    %v4009 = vsel %vm3995, %v4006, %v4008
    %v4010 = vshll.u32 %v3970, 8
    %v4011 = vmul.u32.u64.compose %v4010, %v4009
    %v4012 = vextract.low.u32 %v4011
    %v4013 = vextract.high.u32 %v4011
    %v4014 = vmul.u32.u64.compose %v4010, %v4005
    %v4015 = vextract.low.u32 %v4014
    %v4016 = vextract.high.u32 %v4014
    %v4017 = vmul.u32 %v4010, %v4001
    %v4018 = vadd.s32 %v4013, %v4015
    %vm4019 = vc.u32 %v4013, %v4015
    %v4020 = vadd.s32 %v4016, 1
    %v4021 = vsel %vm4019, %v4020, %v4016
    %v4022 = vadd.s32 %v4017, %v4021
    %v4023 = vadd.s32 %v4022, 536870912
    %v4024 = vshrl.u32 %v4023, 30
    %v4025 = vshll.u32 %v4024, 30
    %v4026 = vsub.s32 %v4022, %v4025
    %vm4027 = vcmp.lt.s32.totalorder %v4026, 0
    %v4028 = vsub.s32 0, %v4026
    %v4029 = vsel %vm4027, %v4028, %v4026
    %v4030 = vclz %v4029
    %v4031 = vsub.s32 %v4030, 2
    %vm4032 = vcmp.gt.s32.totalorder 0, %v4031
    %v4033 = vsel %vm4032, 0, %v4031
    %v4034 = vsub.s32 32, %v4033
    %v4035 = vshll.u32 %v4026, %v4033
    %v4036 = vshrl.u32 %v4018, %v4034
    %v4037 = vor.u32 %v4035, %v4036
    %v4038 = vsub.s32 4294967266, %v4033
    %v4039 = vadd.s32 %v4038, 127
    %v4040 = vshll.u32 %v4039, 23
    %v4041 = vor.u32 4788187, %v4040
    %v4042 = vand.u32 2147483647, %v4041
    %v4044 = vcvt.s32.f32 %v4037
    %v4045 = vmul.f32 %v4044, %v4042
    %v4046 = vxor.u32 %v4045, 2147483648
    %v4047 = vsel %vm3964, %v4046, %v4045
    %v4048 = vsub.s32 4, %v4024
    %v4049 = vsel %vm3964, %v4048, %v4024
    %v4050 = vsel %vm3963, %v618, %v4047
    %v4051 = vsel %vm3963, 0, %v4049
    %v4052 = vcosq.f32.pop %v4050
    %v4053 = vsinq.f32.pop %v4050
    %vm4054 = vweird.f32 %v618
    %v4055 = vadd.s32 %v4051, 3
    %v4056 = vand.u32 %v4055, 3
    %vm4057 = vcmp.lt.s32.totalorder %v4056, 2
    %vm4058 = vcmp.eq.s32.totalorder %v4056, 0
    %v4059 = vxor.u32 %v4053, 2147483648
    %v4060 = vsel %vm4058, %v4052, %v4059
    %vm4061 = vcmp.eq.s32.totalorder %v4056, 2
    %v4062 = vxor.u32 %v4052, 2147483648
    %v4063 = vsel %vm4061, %v4062, %v4053
    %v4064 = vsel %vm4057, %v4060, %v4063
    %v4065 = vsel %vm4054, nan, %v4064
    %v4066 = vand.u32 2147483647, %v619
    %vm4067 = vcmp.le.f32.partialorder %v4066, 0.7853982
    %vm4068 = vcmp.lt.s32.totalorder %v619, 0
    %v4069 = vand.u32 %v619, 2139095040
    %v4070 = vshrl.u32 %v4069, 23
    %v4071 = vsub.s32 %v4070, 127
    %v4072 = vand.u32 2147483647, %v619
    %v4073 = vand.u32 %v4072, 8388607
    %v4074 = vor.u32 %v4073, 8388608
    %v4075 = vsub.s32 0, %v4074
    %v4076 = vadd.s32 %v4071, 1
    %vm4077 = vcmp.gt.s32.totalorder %v4076, 0
    %v4078 = vsel %vm4077, %v4076, 0
    %v4079 = vshrl.u32 %v4078, 5
    %v4080 = vand.u32 %v4078, 31
    %v4081 = vsub.s32 32, %v4080
    %v4082 = vshrl.u32 683565275, %v4081
    %v4083 = vshll.u32 683565275, %v4080
    %v4084 = vshrl.u32 2475754826, %v4081
    %v4085 = vor.u32 %v4083, %v4084
    %v4086 = vshll.u32 2475754826, %v4080
    %v4087 = vshrl.u32 2131351028, %v4081
    %v4088 = vor.u32 %v4086, %v4087
    %v4089 = vshll.u32 2131351028, %v4080
    %v4090 = vshrl.u32 2102212464, %v4081
    %v4091 = vor.u32 %v4089, %v4090
    %v4092 = vshll.u32 2102212464, %v4080
    %v4093 = vshrl.u32 920167782, %v4081
    %v4094 = vor.u32 %v4092, %v4093
    %v4095 = vshll.u32 920167782, %v4080
    %v4096 = vshrl.u32 1326507024, %v4081
    %v4097 = vor.u32 %v4095, %v4096
    %vm4098 = vcmp.lt.s32.totalorder %v4079, 1
    %vm4099 = vcmp.lt.s32.totalorder %v4079, 2
    %vm4100 = vcmp.lt.s32.totalorder %v4079, 3
    %vm4101 = vcmp.lt.s32.totalorder %v4079, 4
    %v4102 = vsel %vm4098, %v4082, %v4085
    %v4103 = vsel %vm4101, %v4091, 2102212464
    %v4104 = vsel %vm4100, %v4088, %v4103
    %v4105 = vsel %vm4099, %v4102, %v4104
    %v4106 = vsel %vm4098, %v4085, %v4088
    %v4107 = vsel %vm4101, %v4094, 920167782
    %v4108 = vsel %vm4100, %v4091, %v4107
    %v4109 = vsel %vm4099, %v4106, %v4108
    %v4110 = vsel %vm4098, %v4088, %v4091
    %v4111 = vsel %vm4101, %v4097, 1326507024
    %v4112 = vsel %vm4100, %v4094, %v4111
    %v4113 = vsel %vm4099, %v4110, %v4112
    %v4114 = vshll.u32 %v4074, 8
    %v4115 = vmul.u32.u64.compose %v4114, %v4113
    %v4116 = vextract.low.u32 %v4115
    %v4117 = vextract.high.u32 %v4115
    %v4118 = vmul.u32.u64.compose %v4114, %v4109
    %v4119 = vextract.low.u32 %v4118
    %v4120 = vextract.high.u32 %v4118
    %v4121 = vmul.u32 %v4114, %v4105
    %v4122 = vadd.s32 %v4117, %v4119
    %vm4123 = vc.u32 %v4117, %v4119
    %v4124 = vadd.s32 %v4120, 1
    %v4125 = vsel %vm4123, %v4124, %v4120
    %v4126 = vadd.s32 %v4121, %v4125
    %v4127 = vadd.s32 %v4126, 536870912
    %v4128 = vshrl.u32 %v4127, 30
    %v4129 = vshll.u32 %v4128, 30
    %v4130 = vsub.s32 %v4126, %v4129
    %vm4131 = vcmp.lt.s32.totalorder %v4130, 0
    %v4132 = vsub.s32 0, %v4130
    %v4133 = vsel %vm4131, %v4132, %v4130
    %v4134 = vclz %v4133
    %v4135 = vsub.s32 %v4134, 2
    %vm4136 = vcmp.gt.s32.totalorder 0, %v4135
    %v4137 = vsel %vm4136, 0, %v4135
    %v4138 = vsub.s32 32, %v4137
    %v4139 = vshll.u32 %v4130, %v4137
    %v4140 = vshrl.u32 %v4122, %v4138
    %v4141 = vor.u32 %v4139, %v4140
    %v4142 = vsub.s32 4294967266, %v4137
    %v4143 = vadd.s32 %v4142, 127
    %v4144 = vshll.u32 %v4143, 23
    %v4145 = vor.u32 4788187, %v4144
    %v4146 = vand.u32 2147483647, %v4145
    %v4148 = vcvt.s32.f32 %v4141
    %v4149 = vmul.f32 %v4148, %v4146
    %v4150 = vxor.u32 %v4149, 2147483648
    %v4151 = vsel %vm4068, %v4150, %v4149
    %v4152 = vsub.s32 4, %v4128
    %v4153 = vsel %vm4068, %v4152, %v4128
    %v4154 = vsel %vm4067, %v619, %v4151
    %v4155 = vsel %vm4067, 0, %v4153
    %v4156 = vcosq.f32.pop %v4154
    %v4157 = vsinq.f32.pop %v4154
    %vm4158 = vweird.f32 %v619
    %v4159 = vadd.s32 %v4155, 3
    %v4160 = vand.u32 %v4159, 3
    %vm4161 = vcmp.lt.s32.totalorder %v4160, 2
    %vm4162 = vcmp.eq.s32.totalorder %v4160, 0
    %v4163 = vxor.u32 %v4157, 2147483648
    %v4164 = vsel %vm4162, %v4156, %v4163
    %vm4165 = vcmp.eq.s32.totalorder %v4160, 2
    %v4166 = vxor.u32 %v4156, 2147483648
    %v4167 = vsel %vm4165, %v4166, %v4157
    %v4168 = vsel %vm4161, %v4164, %v4167
    %v4169 = vsel %vm4158, nan, %v4168
    %v4170 = vand.u32 2147483647, %v620
    %vm4171 = vcmp.le.f32.partialorder %v4170, 0.7853982
    %vm4172 = vcmp.lt.s32.totalorder %v620, 0
    %v4173 = vand.u32 %v620, 2139095040
    %v4174 = vshrl.u32 %v4173, 23
    %v4175 = vsub.s32 %v4174, 127
    %v4176 = vand.u32 2147483647, %v620
    %v4177 = vand.u32 %v4176, 8388607
    %v4178 = vor.u32 %v4177, 8388608
    %v4179 = vsub.s32 0, %v4178
    %v4180 = vadd.s32 %v4175, 1
    %vm4181 = vcmp.gt.s32.totalorder %v4180, 0
    %v4182 = vsel %vm4181, %v4180, 0
    %v4183 = vshrl.u32 %v4182, 5
    %v4184 = vand.u32 %v4182, 31
    %v4185 = vsub.s32 32, %v4184
    %v4186 = vshrl.u32 683565275, %v4185
    %v4187 = vshll.u32 683565275, %v4184
    %v4188 = vshrl.u32 2475754826, %v4185
    %v4189 = vor.u32 %v4187, %v4188
    %v4190 = vshll.u32 2475754826, %v4184
    %v4191 = vshrl.u32 2131351028, %v4185
    %v4192 = vor.u32 %v4190, %v4191
    %v4193 = vshll.u32 2131351028, %v4184
    %v4194 = vshrl.u32 2102212464, %v4185
    %v4195 = vor.u32 %v4193, %v4194
    %v4196 = vshll.u32 2102212464, %v4184
    %v4197 = vshrl.u32 920167782, %v4185
    %v4198 = vor.u32 %v4196, %v4197
    %v4199 = vshll.u32 920167782, %v4184
    %v4200 = vshrl.u32 1326507024, %v4185
    %v4201 = vor.u32 %v4199, %v4200
    %vm4202 = vcmp.lt.s32.totalorder %v4183, 1
    %vm4203 = vcmp.lt.s32.totalorder %v4183, 2
    %vm4204 = vcmp.lt.s32.totalorder %v4183, 3
    %vm4205 = vcmp.lt.s32.totalorder %v4183, 4
    %v4206 = vsel %vm4202, %v4186, %v4189
    %v4207 = vsel %vm4205, %v4195, 2102212464
    %v4208 = vsel %vm4204, %v4192, %v4207
    %v4209 = vsel %vm4203, %v4206, %v4208
    %v4210 = vsel %vm4202, %v4189, %v4192
    %v4211 = vsel %vm4205, %v4198, 920167782
    %v4212 = vsel %vm4204, %v4195, %v4211
    %v4213 = vsel %vm4203, %v4210, %v4212
    %v4214 = vsel %vm4202, %v4192, %v4195
    %v4215 = vsel %vm4205, %v4201, 1326507024
    %v4216 = vsel %vm4204, %v4198, %v4215
    %v4217 = vsel %vm4203, %v4214, %v4216
    %v4218 = vshll.u32 %v4178, 8
    %v4219 = vmul.u32.u64.compose %v4218, %v4217
    %v4220 = vextract.low.u32 %v4219
    %v4221 = vextract.high.u32 %v4219
    %v4222 = vmul.u32.u64.compose %v4218, %v4213
    %v4223 = vextract.low.u32 %v4222
    %v4224 = vextract.high.u32 %v4222
    %v4225 = vmul.u32 %v4218, %v4209
    %v4226 = vadd.s32 %v4221, %v4223
    %vm4227 = vc.u32 %v4221, %v4223
    %v4228 = vadd.s32 %v4224, 1
    %v4229 = vsel %vm4227, %v4228, %v4224
    %v4230 = vadd.s32 %v4225, %v4229
    %v4231 = vadd.s32 %v4230, 536870912
    %v4232 = vshrl.u32 %v4231, 30
    %v4233 = vshll.u32 %v4232, 30
    %v4234 = vsub.s32 %v4230, %v4233
    %vm4235 = vcmp.lt.s32.totalorder %v4234, 0
    %v4236 = vsub.s32 0, %v4234
    %v4237 = vsel %vm4235, %v4236, %v4234
    %v4238 = vclz %v4237
    %v4239 = vsub.s32 %v4238, 2
    %vm4240 = vcmp.gt.s32.totalorder 0, %v4239
    %v4241 = vsel %vm4240, 0, %v4239
    %v4242 = vsub.s32 32, %v4241
    %v4243 = vshll.u32 %v4234, %v4241
    %v4244 = vshrl.u32 %v4226, %v4242
    %v4245 = vor.u32 %v4243, %v4244
    %v4246 = vsub.s32 4294967266, %v4241
    %v4247 = vadd.s32 %v4246, 127
    %v4248 = vshll.u32 %v4247, 23
    %v4249 = vor.u32 4788187, %v4248
    %v4250 = vand.u32 2147483647, %v4249
    %v4252 = vcvt.s32.f32 %v4245
    %v4253 = vmul.f32 %v4252, %v4250
    %v4254 = vxor.u32 %v4253, 2147483648
    %v4255 = vsel %vm4172, %v4254, %v4253
    %v4256 = vsub.s32 4, %v4232
    %v4257 = vsel %vm4172, %v4256, %v4232
    %v4258 = vsel %vm4171, %v620, %v4255
    %v4259 = vsel %vm4171, 0, %v4257
    %v4260 = vcosq.f32.pop %v4258
    %v4261 = vsinq.f32.pop %v4258
    %vm4262 = vweird.f32 %v620
    %v4263 = vadd.s32 %v4259, 3
    %v4264 = vand.u32 %v4263, 3
    %vm4265 = vcmp.lt.s32.totalorder %v4264, 2
    %vm4266 = vcmp.eq.s32.totalorder %v4264, 0
    %v4267 = vxor.u32 %v4261, 2147483648
    %v4268 = vsel %vm4266, %v4260, %v4267
    %vm4269 = vcmp.eq.s32.totalorder %v4264, 2
    %v4270 = vxor.u32 %v4260, 2147483648
    %v4271 = vsel %vm4269, %v4270, %v4261
    %v4272 = vsel %vm4265, %v4268, %v4271
    %v4273 = vsel %vm4262, nan, %v4272
    %v4274 = vand.u32 2147483647, %v621
    %vm4275 = vcmp.le.f32.partialorder %v4274, 0.7853982
    %vm4276 = vcmp.lt.s32.totalorder %v621, 0
    %v4277 = vand.u32 %v621, 2139095040
    %v4278 = vshrl.u32 %v4277, 23
    %v4279 = vsub.s32 %v4278, 127
    %v4280 = vand.u32 2147483647, %v621
    %v4281 = vand.u32 %v4280, 8388607
    %v4282 = vor.u32 %v4281, 8388608
    %v4283 = vsub.s32 0, %v4282
    %v4284 = vadd.s32 %v4279, 1
    %vm4285 = vcmp.gt.s32.totalorder %v4284, 0
    %v4286 = vsel %vm4285, %v4284, 0
    %v4287 = vshrl.u32 %v4286, 5
    %v4288 = vand.u32 %v4286, 31
    %v4289 = vsub.s32 32, %v4288
    %v4290 = vshrl.u32 683565275, %v4289
    %v4291 = vshll.u32 683565275, %v4288
    %v4292 = vshrl.u32 2475754826, %v4289
    %v4293 = vor.u32 %v4291, %v4292
    %v4294 = vshll.u32 2475754826, %v4288
    %v4295 = vshrl.u32 2131351028, %v4289
    %v4296 = vor.u32 %v4294, %v4295
    %v4297 = vshll.u32 2131351028, %v4288
    %v4298 = vshrl.u32 2102212464, %v4289
    %v4299 = vor.u32 %v4297, %v4298
    %v4300 = vshll.u32 2102212464, %v4288
    %v4301 = vshrl.u32 920167782, %v4289
    %v4302 = vor.u32 %v4300, %v4301
    %v4303 = vshll.u32 920167782, %v4288
    %v4304 = vshrl.u32 1326507024, %v4289
    %v4305 = vor.u32 %v4303, %v4304
    %vm4306 = vcmp.lt.s32.totalorder %v4287, 1
    %vm4307 = vcmp.lt.s32.totalorder %v4287, 2
    %vm4308 = vcmp.lt.s32.totalorder %v4287, 3
    %vm4309 = vcmp.lt.s32.totalorder %v4287, 4
    %v4310 = vsel %vm4306, %v4290, %v4293
    %v4311 = vsel %vm4309, %v4299, 2102212464
    %v4312 = vsel %vm4308, %v4296, %v4311
    %v4313 = vsel %vm4307, %v4310, %v4312
    %v4314 = vsel %vm4306, %v4293, %v4296
    %v4315 = vsel %vm4309, %v4302, 920167782
    %v4316 = vsel %vm4308, %v4299, %v4315
    %v4317 = vsel %vm4307, %v4314, %v4316
    %v4318 = vsel %vm4306, %v4296, %v4299
    %v4319 = vsel %vm4309, %v4305, 1326507024
    %v4320 = vsel %vm4308, %v4302, %v4319
    %v4321 = vsel %vm4307, %v4318, %v4320
    %v4322 = vshll.u32 %v4282, 8
    %v4323 = vmul.u32.u64.compose %v4322, %v4321
    %v4324 = vextract.low.u32 %v4323
    %v4325 = vextract.high.u32 %v4323
    %v4326 = vmul.u32.u64.compose %v4322, %v4317
    %v4327 = vextract.low.u32 %v4326
    %v4328 = vextract.high.u32 %v4326
    %v4329 = vmul.u32 %v4322, %v4313
    %v4330 = vadd.s32 %v4325, %v4327
    %vm4331 = vc.u32 %v4325, %v4327
    %v4332 = vadd.s32 %v4328, 1
    %v4333 = vsel %vm4331, %v4332, %v4328
    %v4334 = vadd.s32 %v4329, %v4333
    %v4335 = vadd.s32 %v4334, 536870912
    %v4336 = vshrl.u32 %v4335, 30
    %v4337 = vshll.u32 %v4336, 30
    %v4338 = vsub.s32 %v4334, %v4337
    %vm4339 = vcmp.lt.s32.totalorder %v4338, 0
    %v4340 = vsub.s32 0, %v4338
    %v4341 = vsel %vm4339, %v4340, %v4338
    %v4342 = vclz %v4341
    %v4343 = vsub.s32 %v4342, 2
    %vm4344 = vcmp.gt.s32.totalorder 0, %v4343
    %v4345 = vsel %vm4344, 0, %v4343
    %v4346 = vsub.s32 32, %v4345
    %v4347 = vshll.u32 %v4338, %v4345
    %v4348 = vshrl.u32 %v4330, %v4346
    %v4349 = vor.u32 %v4347, %v4348
    %v4350 = vsub.s32 4294967266, %v4345
    %v4351 = vadd.s32 %v4350, 127
    %v4352 = vshll.u32 %v4351, 23
    %v4353 = vor.u32 4788187, %v4352
    %v4354 = vand.u32 2147483647, %v4353
    %v4356 = vcvt.s32.f32 %v4349
    %v4357 = vmul.f32 %v4356, %v4354
    %v4358 = vxor.u32 %v4357, 2147483648
    %v4359 = vsel %vm4276, %v4358, %v4357
    %v4360 = vsub.s32 4, %v4336
    %v4361 = vsel %vm4276, %v4360, %v4336
    %v4362 = vsel %vm4275, %v621, %v4359
    %v4363 = vsel %vm4275, 0, %v4361
    %v4364 = vcosq.f32.pop %v4362
    %v4365 = vsinq.f32.pop %v4362
    %vm4366 = vweird.f32 %v621
    %v4367 = vadd.s32 %v4363, 3
    %v4368 = vand.u32 %v4367, 3
    %vm4369 = vcmp.lt.s32.totalorder %v4368, 2
    %vm4370 = vcmp.eq.s32.totalorder %v4368, 0
    %v4371 = vxor.u32 %v4365, 2147483648
    %v4372 = vsel %vm4370, %v4364, %v4371
    %vm4373 = vcmp.eq.s32.totalorder %v4368, 2
    %v4374 = vxor.u32 %v4364, 2147483648
    %v4375 = vsel %vm4373, %v4374, %v4365
    %v4376 = vsel %vm4369, %v4372, %v4375
    %v4377 = vsel %vm4366, nan, %v4376
    %v4378 = vand.u32 2147483647, %v622
    %vm4379 = vcmp.le.f32.partialorder %v4378, 0.7853982
    %vm4380 = vcmp.lt.s32.totalorder %v622, 0
    %v4381 = vand.u32 %v622, 2139095040
    %v4382 = vshrl.u32 %v4381, 23
    %v4383 = vsub.s32 %v4382, 127
    %v4384 = vand.u32 2147483647, %v622
    %v4385 = vand.u32 %v4384, 8388607
    %v4386 = vor.u32 %v4385, 8388608
    %v4387 = vsub.s32 0, %v4386
    %v4388 = vadd.s32 %v4383, 1
    %vm4389 = vcmp.gt.s32.totalorder %v4388, 0
    %v4390 = vsel %vm4389, %v4388, 0
    %v4391 = vshrl.u32 %v4390, 5
    %v4392 = vand.u32 %v4390, 31
    %v4393 = vsub.s32 32, %v4392
    %v4394 = vshrl.u32 683565275, %v4393
    %v4395 = vshll.u32 683565275, %v4392
    %v4396 = vshrl.u32 2475754826, %v4393
    %v4397 = vor.u32 %v4395, %v4396
    %v4398 = vshll.u32 2475754826, %v4392
    %v4399 = vshrl.u32 2131351028, %v4393
    %v4400 = vor.u32 %v4398, %v4399
    %v4401 = vshll.u32 2131351028, %v4392
    %v4402 = vshrl.u32 2102212464, %v4393
    %v4403 = vor.u32 %v4401, %v4402
    %v4404 = vshll.u32 2102212464, %v4392
    %v4405 = vshrl.u32 920167782, %v4393
    %v4406 = vor.u32 %v4404, %v4405
    %v4407 = vshll.u32 920167782, %v4392
    %v4408 = vshrl.u32 1326507024, %v4393
    %v4409 = vor.u32 %v4407, %v4408
    %vm4410 = vcmp.lt.s32.totalorder %v4391, 1
    %vm4411 = vcmp.lt.s32.totalorder %v4391, 2
    %vm4412 = vcmp.lt.s32.totalorder %v4391, 3
    %vm4413 = vcmp.lt.s32.totalorder %v4391, 4
    %v4414 = vsel %vm4410, %v4394, %v4397
    %v4415 = vsel %vm4413, %v4403, 2102212464
    %v4416 = vsel %vm4412, %v4400, %v4415
    %v4417 = vsel %vm4411, %v4414, %v4416
    %v4418 = vsel %vm4410, %v4397, %v4400
    %v4419 = vsel %vm4413, %v4406, 920167782
    %v4420 = vsel %vm4412, %v4403, %v4419
    %v4421 = vsel %vm4411, %v4418, %v4420
    %v4422 = vsel %vm4410, %v4400, %v4403
    %v4423 = vsel %vm4413, %v4409, 1326507024
    %v4424 = vsel %vm4412, %v4406, %v4423
    %v4425 = vsel %vm4411, %v4422, %v4424
    %v4426 = vshll.u32 %v4386, 8
    %v4427 = vmul.u32.u64.compose %v4426, %v4425
    %v4428 = vextract.low.u32 %v4427
    %v4429 = vextract.high.u32 %v4427
    %v4430 = vmul.u32.u64.compose %v4426, %v4421
    %v4431 = vextract.low.u32 %v4430
    %v4432 = vextract.high.u32 %v4430
    %v4433 = vmul.u32 %v4426, %v4417
    %v4434 = vadd.s32 %v4429, %v4431
    %vm4435 = vc.u32 %v4429, %v4431
    %v4436 = vadd.s32 %v4432, 1
    %v4437 = vsel %vm4435, %v4436, %v4432
    %v4438 = vadd.s32 %v4433, %v4437
    %v4439 = vadd.s32 %v4438, 536870912
    %v4440 = vshrl.u32 %v4439, 30
    %v4441 = vshll.u32 %v4440, 30
    %v4442 = vsub.s32 %v4438, %v4441
    %vm4443 = vcmp.lt.s32.totalorder %v4442, 0
    %v4444 = vsub.s32 0, %v4442
    %v4445 = vsel %vm4443, %v4444, %v4442
    %v4446 = vclz %v4445
    %v4447 = vsub.s32 %v4446, 2
    %vm4448 = vcmp.gt.s32.totalorder 0, %v4447
    %v4449 = vsel %vm4448, 0, %v4447
    %v4450 = vsub.s32 32, %v4449
    %v4451 = vshll.u32 %v4442, %v4449
    %v4452 = vshrl.u32 %v4434, %v4450
    %v4453 = vor.u32 %v4451, %v4452
    %v4454 = vsub.s32 4294967266, %v4449
    %v4455 = vadd.s32 %v4454, 127
    %v4456 = vshll.u32 %v4455, 23
    %v4457 = vor.u32 4788187, %v4456
    %v4458 = vand.u32 2147483647, %v4457
    %v4460 = vcvt.s32.f32 %v4453
    %v4461 = vmul.f32 %v4460, %v4458
    %v4462 = vxor.u32 %v4461, 2147483648
    %v4463 = vsel %vm4380, %v4462, %v4461
    %v4464 = vsub.s32 4, %v4440
    %v4465 = vsel %vm4380, %v4464, %v4440
    %v4466 = vsel %vm4379, %v622, %v4463
    %v4467 = vsel %vm4379, 0, %v4465
    %v4468 = vcosq.f32.pop %v4466
    %v4469 = vsinq.f32.pop %v4466
    %vm4470 = vweird.f32 %v622
    %v4471 = vadd.s32 %v4467, 3
    %v4472 = vand.u32 %v4471, 3
    %vm4473 = vcmp.lt.s32.totalorder %v4472, 2
    %vm4474 = vcmp.eq.s32.totalorder %v4472, 0
    %v4475 = vxor.u32 %v4469, 2147483648
    %v4476 = vsel %vm4474, %v4468, %v4475
    %vm4477 = vcmp.eq.s32.totalorder %v4472, 2
    %v4478 = vxor.u32 %v4468, 2147483648
    %v4479 = vsel %vm4477, %v4478, %v4469
    %v4480 = vsel %vm4473, %v4476, %v4479
    %v4481 = vsel %vm4470, nan, %v4480
    %v4482 = vand.u32 2147483647, %v623
    %vm4483 = vcmp.le.f32.partialorder %v4482, 0.7853982
    %vm4484 = vcmp.lt.s32.totalorder %v623, 0
    %v4485 = vand.u32 %v623, 2139095040
    %v4486 = vshrl.u32 %v4485, 23
    %v4487 = vsub.s32 %v4486, 127
    %v4488 = vand.u32 2147483647, %v623
    %v4489 = vand.u32 %v4488, 8388607
    %v4490 = vor.u32 %v4489, 8388608
    %v4491 = vsub.s32 0, %v4490
    %v4492 = vadd.s32 %v4487, 1
    %vm4493 = vcmp.gt.s32.totalorder %v4492, 0
    %v4494 = vsel %vm4493, %v4492, 0
    %v4495 = vshrl.u32 %v4494, 5
    %v4496 = vand.u32 %v4494, 31
    %v4497 = vsub.s32 32, %v4496
    %v4498 = vshrl.u32 683565275, %v4497
    %v4499 = vshll.u32 683565275, %v4496
    %v4500 = vshrl.u32 2475754826, %v4497
    %v4501 = vor.u32 %v4499, %v4500
    %v4502 = vshll.u32 2475754826, %v4496
    %v4503 = vshrl.u32 2131351028, %v4497
    %v4504 = vor.u32 %v4502, %v4503
    %v4505 = vshll.u32 2131351028, %v4496
    %v4506 = vshrl.u32 2102212464, %v4497
    %v4507 = vor.u32 %v4505, %v4506
    %v4508 = vshll.u32 2102212464, %v4496
    %v4509 = vshrl.u32 920167782, %v4497
    %v4510 = vor.u32 %v4508, %v4509
    %v4511 = vshll.u32 920167782, %v4496
    %v4512 = vshrl.u32 1326507024, %v4497
    %v4513 = vor.u32 %v4511, %v4512
    %vm4514 = vcmp.lt.s32.totalorder %v4495, 1
    %vm4515 = vcmp.lt.s32.totalorder %v4495, 2
    %vm4516 = vcmp.lt.s32.totalorder %v4495, 3
    %vm4517 = vcmp.lt.s32.totalorder %v4495, 4
    %v4518 = vsel %vm4514, %v4498, %v4501
    %v4519 = vsel %vm4517, %v4507, 2102212464
    %v4520 = vsel %vm4516, %v4504, %v4519
    %v4521 = vsel %vm4515, %v4518, %v4520
    %v4522 = vsel %vm4514, %v4501, %v4504
    %v4523 = vsel %vm4517, %v4510, 920167782
    %v4524 = vsel %vm4516, %v4507, %v4523
    %v4525 = vsel %vm4515, %v4522, %v4524
    %v4526 = vsel %vm4514, %v4504, %v4507
    %v4527 = vsel %vm4517, %v4513, 1326507024
    %v4528 = vsel %vm4516, %v4510, %v4527
    %v4529 = vsel %vm4515, %v4526, %v4528
    %v4530 = vshll.u32 %v4490, 8
    %v4531 = vmul.u32.u64.compose %v4530, %v4529
    %v4532 = vextract.low.u32 %v4531
    %v4533 = vextract.high.u32 %v4531
    %v4534 = vmul.u32.u64.compose %v4530, %v4525
    %v4535 = vextract.low.u32 %v4534
    %v4536 = vextract.high.u32 %v4534
    %v4537 = vmul.u32 %v4530, %v4521
    %v4538 = vadd.s32 %v4533, %v4535
    %vm4539 = vc.u32 %v4533, %v4535
    %v4540 = vadd.s32 %v4536, 1
    %v4541 = vsel %vm4539, %v4540, %v4536
    %v4542 = vadd.s32 %v4537, %v4541
    %v4543 = vadd.s32 %v4542, 536870912
    %v4544 = vshrl.u32 %v4543, 30
    %v4545 = vshll.u32 %v4544, 30
    %v4546 = vsub.s32 %v4542, %v4545
    %vm4547 = vcmp.lt.s32.totalorder %v4546, 0
    %v4548 = vsub.s32 0, %v4546
    %v4549 = vsel %vm4547, %v4548, %v4546
    %v4550 = vclz %v4549
    %v4551 = vsub.s32 %v4550, 2
    %vm4552 = vcmp.gt.s32.totalorder 0, %v4551
    %v4553 = vsel %vm4552, 0, %v4551
    %v4554 = vsub.s32 32, %v4553
    %v4555 = vshll.u32 %v4546, %v4553
    %v4556 = vshrl.u32 %v4538, %v4554
    %v4557 = vor.u32 %v4555, %v4556
    %v4558 = vsub.s32 4294967266, %v4553
    %v4559 = vadd.s32 %v4558, 127
    %v4560 = vshll.u32 %v4559, 23
    %v4561 = vor.u32 4788187, %v4560
    %v4562 = vand.u32 2147483647, %v4561
    %v4564 = vcvt.s32.f32 %v4557
    %v4565 = vmul.f32 %v4564, %v4562
    %v4566 = vxor.u32 %v4565, 2147483648
    %v4567 = vsel %vm4484, %v4566, %v4565
    %v4568 = vsub.s32 4, %v4544
    %v4569 = vsel %vm4484, %v4568, %v4544
    %v4570 = vsel %vm4483, %v623, %v4567
    %v4571 = vsel %vm4483, 0, %v4569
    %v4572 = vcosq.f32.pop %v4570
    %v4573 = vsinq.f32.pop %v4570
    %vm4574 = vweird.f32 %v623
    %v4575 = vadd.s32 %v4571, 3
    %v4576 = vand.u32 %v4575, 3
    %vm4577 = vcmp.lt.s32.totalorder %v4576, 2
    %vm4578 = vcmp.eq.s32.totalorder %v4576, 0
    %v4579 = vxor.u32 %v4573, 2147483648
    %v4580 = vsel %vm4578, %v4572, %v4579
    %vm4581 = vcmp.eq.s32.totalorder %v4576, 2
    %v4582 = vxor.u32 %v4572, 2147483648
    %v4583 = vsel %vm4581, %v4582, %v4573
    %v4584 = vsel %vm4577, %v4580, %v4583
    %v4585 = vsel %vm4574, nan, %v4584
    %v4586 = vand.u32 2147483647, %v624
    %vm4587 = vcmp.le.f32.partialorder %v4586, 0.7853982
    %vm4588 = vcmp.lt.s32.totalorder %v624, 0
    %v4589 = vand.u32 %v624, 2139095040
    %v4590 = vshrl.u32 %v4589, 23
    %v4591 = vsub.s32 %v4590, 127
    %v4592 = vand.u32 2147483647, %v624
    %v4593 = vand.u32 %v4592, 8388607
    %v4594 = vor.u32 %v4593, 8388608
    %v4595 = vsub.s32 0, %v4594
    %v4596 = vadd.s32 %v4591, 1
    %vm4597 = vcmp.gt.s32.totalorder %v4596, 0
    %v4598 = vsel %vm4597, %v4596, 0
    %v4599 = vshrl.u32 %v4598, 5
    %v4600 = vand.u32 %v4598, 31
    %v4601 = vsub.s32 32, %v4600
    %v4602 = vshrl.u32 683565275, %v4601
    %v4603 = vshll.u32 683565275, %v4600
    %v4604 = vshrl.u32 2475754826, %v4601
    %v4605 = vor.u32 %v4603, %v4604
    %v4606 = vshll.u32 2475754826, %v4600
    %v4607 = vshrl.u32 2131351028, %v4601
    %v4608 = vor.u32 %v4606, %v4607
    %v4609 = vshll.u32 2131351028, %v4600
    %v4610 = vshrl.u32 2102212464, %v4601
    %v4611 = vor.u32 %v4609, %v4610
    %v4612 = vshll.u32 2102212464, %v4600
    %v4613 = vshrl.u32 920167782, %v4601
    %v4614 = vor.u32 %v4612, %v4613
    %v4615 = vshll.u32 920167782, %v4600
    %v4616 = vshrl.u32 1326507024, %v4601
    %v4617 = vor.u32 %v4615, %v4616
    %vm4618 = vcmp.lt.s32.totalorder %v4599, 1
    %vm4619 = vcmp.lt.s32.totalorder %v4599, 2
    %vm4620 = vcmp.lt.s32.totalorder %v4599, 3
    %vm4621 = vcmp.lt.s32.totalorder %v4599, 4
    %v4622 = vsel %vm4618, %v4602, %v4605
    %v4623 = vsel %vm4621, %v4611, 2102212464
    %v4624 = vsel %vm4620, %v4608, %v4623
    %v4625 = vsel %vm4619, %v4622, %v4624
    %v4626 = vsel %vm4618, %v4605, %v4608
    %v4627 = vsel %vm4621, %v4614, 920167782
    %v4628 = vsel %vm4620, %v4611, %v4627
    %v4629 = vsel %vm4619, %v4626, %v4628
    %v4630 = vsel %vm4618, %v4608, %v4611
    %v4631 = vsel %vm4621, %v4617, 1326507024
    %v4632 = vsel %vm4620, %v4614, %v4631
    %v4633 = vsel %vm4619, %v4630, %v4632
    %v4634 = vshll.u32 %v4594, 8
    %v4635 = vmul.u32.u64.compose %v4634, %v4633
    %v4636 = vextract.low.u32 %v4635
    %v4637 = vextract.high.u32 %v4635
    %v4638 = vmul.u32.u64.compose %v4634, %v4629
    %v4639 = vextract.low.u32 %v4638
    %v4640 = vextract.high.u32 %v4638
    %v4641 = vmul.u32 %v4634, %v4625
    %v4642 = vadd.s32 %v4637, %v4639
    %vm4643 = vc.u32 %v4637, %v4639
    %v4644 = vadd.s32 %v4640, 1
    %v4645 = vsel %vm4643, %v4644, %v4640
    %v4646 = vadd.s32 %v4641, %v4645
    %v4647 = vadd.s32 %v4646, 536870912
    %v4648 = vshrl.u32 %v4647, 30
    %v4649 = vshll.u32 %v4648, 30
    %v4650 = vsub.s32 %v4646, %v4649
    %vm4651 = vcmp.lt.s32.totalorder %v4650, 0
    %v4652 = vsub.s32 0, %v4650
    %v4653 = vsel %vm4651, %v4652, %v4650
    %v4654 = vclz %v4653
    %v4655 = vsub.s32 %v4654, 2
    %vm4656 = vcmp.gt.s32.totalorder 0, %v4655
    %v4657 = vsel %vm4656, 0, %v4655
    %v4658 = vsub.s32 32, %v4657
    %v4659 = vshll.u32 %v4650, %v4657
    %v4660 = vshrl.u32 %v4642, %v4658
    %v4661 = vor.u32 %v4659, %v4660
    %v4662 = vsub.s32 4294967266, %v4657
    %v4663 = vadd.s32 %v4662, 127
    %v4664 = vshll.u32 %v4663, 23
    %v4665 = vor.u32 4788187, %v4664
    %v4666 = vand.u32 2147483647, %v4665
    %v4668 = vcvt.s32.f32 %v4661
    %v4669 = vmul.f32 %v4668, %v4666
    %v4670 = vxor.u32 %v4669, 2147483648
    %v4671 = vsel %vm4588, %v4670, %v4669
    %v4672 = vsub.s32 4, %v4648
    %v4673 = vsel %vm4588, %v4672, %v4648
    %v4674 = vsel %vm4587, %v624, %v4671
    %v4675 = vsel %vm4587, 0, %v4673
    %v4676 = vcosq.f32.pop %v4674
    %v4677 = vsinq.f32.pop %v4674
    %vm4678 = vweird.f32 %v624
    %v4679 = vadd.s32 %v4675, 3
    %v4680 = vand.u32 %v4679, 3
    %vm4681 = vcmp.lt.s32.totalorder %v4680, 2
    %vm4682 = vcmp.eq.s32.totalorder %v4680, 0
    %v4683 = vxor.u32 %v4677, 2147483648
    %v4684 = vsel %vm4682, %v4676, %v4683
    %vm4685 = vcmp.eq.s32.totalorder %v4680, 2
    %v4686 = vxor.u32 %v4676, 2147483648
    %v4687 = vsel %vm4685, %v4686, %v4677
    %v4688 = vsel %vm4681, %v4684, %v4687
    %v4689 = vsel %vm4678, nan, %v4688
    %v4690 = vand.u32 2147483647, %v625
    %vm4691 = vcmp.le.f32.partialorder %v4690, 0.7853982
    %vm4692 = vcmp.lt.s32.totalorder %v625, 0
    %v4693 = vand.u32 %v625, 2139095040
    %v4694 = vshrl.u32 %v4693, 23
    %v4695 = vsub.s32 %v4694, 127
    %v4696 = vand.u32 2147483647, %v625
    %v4697 = vand.u32 %v4696, 8388607
    %v4698 = vor.u32 %v4697, 8388608
    %v4699 = vsub.s32 0, %v4698
    %v4700 = vadd.s32 %v4695, 1
    %vm4701 = vcmp.gt.s32.totalorder %v4700, 0
    %v4702 = vsel %vm4701, %v4700, 0
    %v4703 = vshrl.u32 %v4702, 5
    %v4704 = vand.u32 %v4702, 31
    %v4705 = vsub.s32 32, %v4704
    %v4706 = vshrl.u32 683565275, %v4705
    %v4707 = vshll.u32 683565275, %v4704
    %v4708 = vshrl.u32 2475754826, %v4705
    %v4709 = vor.u32 %v4707, %v4708
    %v4710 = vshll.u32 2475754826, %v4704
    %v4711 = vshrl.u32 2131351028, %v4705
    %v4712 = vor.u32 %v4710, %v4711
    %v4713 = vshll.u32 2131351028, %v4704
    %v4714 = vshrl.u32 2102212464, %v4705
    %v4715 = vor.u32 %v4713, %v4714
    %v4716 = vshll.u32 2102212464, %v4704
    %v4717 = vshrl.u32 920167782, %v4705
    %v4718 = vor.u32 %v4716, %v4717
    %v4719 = vshll.u32 920167782, %v4704
    %v4720 = vshrl.u32 1326507024, %v4705
    %v4721 = vor.u32 %v4719, %v4720
    %vm4722 = vcmp.lt.s32.totalorder %v4703, 1
    %vm4723 = vcmp.lt.s32.totalorder %v4703, 2
    %vm4724 = vcmp.lt.s32.totalorder %v4703, 3
    %vm4725 = vcmp.lt.s32.totalorder %v4703, 4
    %v4726 = vsel %vm4722, %v4706, %v4709
    %v4727 = vsel %vm4725, %v4715, 2102212464
    %v4728 = vsel %vm4724, %v4712, %v4727
    %v4729 = vsel %vm4723, %v4726, %v4728
    %v4730 = vsel %vm4722, %v4709, %v4712
    %v4731 = vsel %vm4725, %v4718, 920167782
    %v4732 = vsel %vm4724, %v4715, %v4731
    %v4733 = vsel %vm4723, %v4730, %v4732
    %v4734 = vsel %vm4722, %v4712, %v4715
    %v4735 = vsel %vm4725, %v4721, 1326507024
    %v4736 = vsel %vm4724, %v4718, %v4735
    %v4737 = vsel %vm4723, %v4734, %v4736
    %v4738 = vshll.u32 %v4698, 8
    %v4739 = vmul.u32.u64.compose %v4738, %v4737
    %v4740 = vextract.low.u32 %v4739
    %v4741 = vextract.high.u32 %v4739
    %v4742 = vmul.u32.u64.compose %v4738, %v4733
    %v4743 = vextract.low.u32 %v4742
    %v4744 = vextract.high.u32 %v4742
    %v4745 = vmul.u32 %v4738, %v4729
    %v4746 = vadd.s32 %v4741, %v4743
    %vm4747 = vc.u32 %v4741, %v4743
    %v4748 = vadd.s32 %v4744, 1
    %v4749 = vsel %vm4747, %v4748, %v4744
    %v4750 = vadd.s32 %v4745, %v4749
    %v4751 = vadd.s32 %v4750, 536870912
    %v4752 = vshrl.u32 %v4751, 30
    %v4753 = vshll.u32 %v4752, 30
    %v4754 = vsub.s32 %v4750, %v4753
    %vm4755 = vcmp.lt.s32.totalorder %v4754, 0
    %v4756 = vsub.s32 0, %v4754
    %v4757 = vsel %vm4755, %v4756, %v4754
    %v4758 = vclz %v4757
    %v4759 = vsub.s32 %v4758, 2
    %vm4760 = vcmp.gt.s32.totalorder 0, %v4759
    %v4761 = vsel %vm4760, 0, %v4759
    %v4762 = vsub.s32 32, %v4761
    %v4763 = vshll.u32 %v4754, %v4761
    %v4764 = vshrl.u32 %v4746, %v4762
    %v4765 = vor.u32 %v4763, %v4764
    %v4766 = vsub.s32 4294967266, %v4761
    %v4767 = vadd.s32 %v4766, 127
    %v4768 = vshll.u32 %v4767, 23
    %v4769 = vor.u32 4788187, %v4768
    %v4770 = vand.u32 2147483647, %v4769
    %v4772 = vcvt.s32.f32 %v4765
    %v4773 = vmul.f32 %v4772, %v4770
    %v4774 = vxor.u32 %v4773, 2147483648
    %v4775 = vsel %vm4692, %v4774, %v4773
    %v4776 = vsub.s32 4, %v4752
    %v4777 = vsel %vm4692, %v4776, %v4752
    %v4778 = vsel %vm4691, %v625, %v4775
    %v4779 = vsel %vm4691, 0, %v4777
    %v4780 = vcosq.f32.pop %v4778
    %v4781 = vsinq.f32.pop %v4778
    %vm4782 = vweird.f32 %v625
    %v4783 = vadd.s32 %v4779, 3
    %v4784 = vand.u32 %v4783, 3
    %vm4785 = vcmp.lt.s32.totalorder %v4784, 2
    %vm4786 = vcmp.eq.s32.totalorder %v4784, 0
    %v4787 = vxor.u32 %v4781, 2147483648
    %v4788 = vsel %vm4786, %v4780, %v4787
    %vm4789 = vcmp.eq.s32.totalorder %v4784, 2
    %v4790 = vxor.u32 %v4780, 2147483648
    %v4791 = vsel %vm4789, %v4790, %v4781
    %v4792 = vsel %vm4785, %v4788, %v4791
    %v4793 = vsel %vm4782, nan, %v4792
    %v4794 = vand.u32 2147483647, %v626
    %vm4795 = vcmp.le.f32.partialorder %v4794, 0.7853982
    %vm4796 = vcmp.lt.s32.totalorder %v626, 0
    %v4797 = vand.u32 %v626, 2139095040
    %v4798 = vshrl.u32 %v4797, 23
    %v4799 = vsub.s32 %v4798, 127
    %v4800 = vand.u32 2147483647, %v626
    %v4801 = vand.u32 %v4800, 8388607
    %v4802 = vor.u32 %v4801, 8388608
    %v4803 = vsub.s32 0, %v4802
    %v4804 = vadd.s32 %v4799, 1
    %vm4805 = vcmp.gt.s32.totalorder %v4804, 0
    %v4806 = vsel %vm4805, %v4804, 0
    %v4807 = vshrl.u32 %v4806, 5
    %v4808 = vand.u32 %v4806, 31
    %v4809 = vsub.s32 32, %v4808
    %v4810 = vshrl.u32 683565275, %v4809
    %v4811 = vshll.u32 683565275, %v4808
    %v4812 = vshrl.u32 2475754826, %v4809
    %v4813 = vor.u32 %v4811, %v4812
    %v4814 = vshll.u32 2475754826, %v4808
    %v4815 = vshrl.u32 2131351028, %v4809
    %v4816 = vor.u32 %v4814, %v4815
    %v4817 = vshll.u32 2131351028, %v4808
    %v4818 = vshrl.u32 2102212464, %v4809
    %v4819 = vor.u32 %v4817, %v4818
    %v4820 = vshll.u32 2102212464, %v4808
    %v4821 = vshrl.u32 920167782, %v4809
    %v4822 = vor.u32 %v4820, %v4821
    %v4823 = vshll.u32 920167782, %v4808
    %v4824 = vshrl.u32 1326507024, %v4809
    %v4825 = vor.u32 %v4823, %v4824
    %vm4826 = vcmp.lt.s32.totalorder %v4807, 1
    %vm4827 = vcmp.lt.s32.totalorder %v4807, 2
    %vm4828 = vcmp.lt.s32.totalorder %v4807, 3
    %vm4829 = vcmp.lt.s32.totalorder %v4807, 4
    %v4830 = vsel %vm4826, %v4810, %v4813
    %v4831 = vsel %vm4829, %v4819, 2102212464
    %v4832 = vsel %vm4828, %v4816, %v4831
    %v4833 = vsel %vm4827, %v4830, %v4832
    %v4834 = vsel %vm4826, %v4813, %v4816
    %v4835 = vsel %vm4829, %v4822, 920167782
    %v4836 = vsel %vm4828, %v4819, %v4835
    %v4837 = vsel %vm4827, %v4834, %v4836
    %v4838 = vsel %vm4826, %v4816, %v4819
    %v4839 = vsel %vm4829, %v4825, 1326507024
    %v4840 = vsel %vm4828, %v4822, %v4839
    %v4841 = vsel %vm4827, %v4838, %v4840
    %v4842 = vshll.u32 %v4802, 8
    %v4843 = vmul.u32.u64.compose %v4842, %v4841
    %v4844 = vextract.low.u32 %v4843
    %v4845 = vextract.high.u32 %v4843
    %v4846 = vmul.u32.u64.compose %v4842, %v4837
    %v4847 = vextract.low.u32 %v4846
    %v4848 = vextract.high.u32 %v4846
    %v4849 = vmul.u32 %v4842, %v4833
    %v4850 = vadd.s32 %v4845, %v4847
    %vm4851 = vc.u32 %v4845, %v4847
    %v4852 = vadd.s32 %v4848, 1
    %v4853 = vsel %vm4851, %v4852, %v4848
    %v4854 = vadd.s32 %v4849, %v4853
    %v4855 = vadd.s32 %v4854, 536870912
    %v4856 = vshrl.u32 %v4855, 30
    %v4857 = vshll.u32 %v4856, 30
    %v4858 = vsub.s32 %v4854, %v4857
    %vm4859 = vcmp.lt.s32.totalorder %v4858, 0
    %v4860 = vsub.s32 0, %v4858
    %v4861 = vsel %vm4859, %v4860, %v4858
    %v4862 = vclz %v4861
    %v4863 = vsub.s32 %v4862, 2
    %vm4864 = vcmp.gt.s32.totalorder 0, %v4863
    %v4865 = vsel %vm4864, 0, %v4863
    %v4866 = vsub.s32 32, %v4865
    %v4867 = vshll.u32 %v4858, %v4865
    %v4868 = vshrl.u32 %v4850, %v4866
    %v4869 = vor.u32 %v4867, %v4868
    %v4870 = vsub.s32 4294967266, %v4865
    %v4871 = vadd.s32 %v4870, 127
    %v4872 = vshll.u32 %v4871, 23
    %v4873 = vor.u32 4788187, %v4872
    %v4874 = vand.u32 2147483647, %v4873
    %v4876 = vcvt.s32.f32 %v4869
    %v4877 = vmul.f32 %v4876, %v4874
    %v4878 = vxor.u32 %v4877, 2147483648
    %v4879 = vsel %vm4796, %v4878, %v4877
    %v4880 = vsub.s32 4, %v4856
    %v4881 = vsel %vm4796, %v4880, %v4856
    %v4882 = vsel %vm4795, %v626, %v4879
    %v4883 = vsel %vm4795, 0, %v4881
    %v4884 = vcosq.f32.pop %v4882
    %v4885 = vsinq.f32.pop %v4882
    %vm4886 = vweird.f32 %v626
    %v4887 = vadd.s32 %v4883, 3
    %v4888 = vand.u32 %v4887, 3
    %vm4889 = vcmp.lt.s32.totalorder %v4888, 2
    %vm4890 = vcmp.eq.s32.totalorder %v4888, 0
    %v4891 = vxor.u32 %v4885, 2147483648
    %v4892 = vsel %vm4890, %v4884, %v4891
    %vm4893 = vcmp.eq.s32.totalorder %v4888, 2
    %v4894 = vxor.u32 %v4884, 2147483648
    %v4895 = vsel %vm4893, %v4894, %v4885
    %v4896 = vsel %vm4889, %v4892, %v4895
    %v4897 = vsel %vm4886, nan, %v4896
    %v4898 = vand.u32 2147483647, %v627
    %vm4899 = vcmp.le.f32.partialorder %v4898, 0.7853982
    %vm4900 = vcmp.lt.s32.totalorder %v627, 0
    %v4901 = vand.u32 %v627, 2139095040
    %v4902 = vshrl.u32 %v4901, 23
    %v4903 = vsub.s32 %v4902, 127
    %v4904 = vand.u32 2147483647, %v627
    %v4905 = vand.u32 %v4904, 8388607
    %v4906 = vor.u32 %v4905, 8388608
    %v4907 = vsub.s32 0, %v4906
    %v4908 = vadd.s32 %v4903, 1
    %vm4909 = vcmp.gt.s32.totalorder %v4908, 0
    %v4910 = vsel %vm4909, %v4908, 0
    %v4911 = vshrl.u32 %v4910, 5
    %v4912 = vand.u32 %v4910, 31
    %v4913 = vsub.s32 32, %v4912
    %v4914 = vshrl.u32 683565275, %v4913
    %v4915 = vshll.u32 683565275, %v4912
    %v4916 = vshrl.u32 2475754826, %v4913
    %v4917 = vor.u32 %v4915, %v4916
    %v4918 = vshll.u32 2475754826, %v4912
    %v4919 = vshrl.u32 2131351028, %v4913
    %v4920 = vor.u32 %v4918, %v4919
    %v4921 = vshll.u32 2131351028, %v4912
    %v4922 = vshrl.u32 2102212464, %v4913
    %v4923 = vor.u32 %v4921, %v4922
    %v4924 = vshll.u32 2102212464, %v4912
    %v4925 = vshrl.u32 920167782, %v4913
    %v4926 = vor.u32 %v4924, %v4925
    %v4927 = vshll.u32 920167782, %v4912
    %v4928 = vshrl.u32 1326507024, %v4913
    %v4929 = vor.u32 %v4927, %v4928
    %vm4930 = vcmp.lt.s32.totalorder %v4911, 1
    %vm4931 = vcmp.lt.s32.totalorder %v4911, 2
    %vm4932 = vcmp.lt.s32.totalorder %v4911, 3
    %vm4933 = vcmp.lt.s32.totalorder %v4911, 4
    %v4934 = vsel %vm4930, %v4914, %v4917
    %v4935 = vsel %vm4933, %v4923, 2102212464
    %v4936 = vsel %vm4932, %v4920, %v4935
    %v4937 = vsel %vm4931, %v4934, %v4936
    %v4938 = vsel %vm4930, %v4917, %v4920
    %v4939 = vsel %vm4933, %v4926, 920167782
    %v4940 = vsel %vm4932, %v4923, %v4939
    %v4941 = vsel %vm4931, %v4938, %v4940
    %v4942 = vsel %vm4930, %v4920, %v4923
    %v4943 = vsel %vm4933, %v4929, 1326507024
    %v4944 = vsel %vm4932, %v4926, %v4943
    %v4945 = vsel %vm4931, %v4942, %v4944
    %v4946 = vshll.u32 %v4906, 8
    %v4947 = vmul.u32.u64.compose %v4946, %v4945
    %v4948 = vextract.low.u32 %v4947
    %v4949 = vextract.high.u32 %v4947
    %v4950 = vmul.u32.u64.compose %v4946, %v4941
    %v4951 = vextract.low.u32 %v4950
    %v4952 = vextract.high.u32 %v4950
    %v4953 = vmul.u32 %v4946, %v4937
    %v4954 = vadd.s32 %v4949, %v4951
    %vm4955 = vc.u32 %v4949, %v4951
    %v4956 = vadd.s32 %v4952, 1
    %v4957 = vsel %vm4955, %v4956, %v4952
    %v4958 = vadd.s32 %v4953, %v4957
    %v4959 = vadd.s32 %v4958, 536870912
    %v4960 = vshrl.u32 %v4959, 30
    %v4961 = vshll.u32 %v4960, 30
    %v4962 = vsub.s32 %v4958, %v4961
    %vm4963 = vcmp.lt.s32.totalorder %v4962, 0
    %v4964 = vsub.s32 0, %v4962
    %v4965 = vsel %vm4963, %v4964, %v4962
    %v4966 = vclz %v4965
    %v4967 = vsub.s32 %v4966, 2
    %vm4968 = vcmp.gt.s32.totalorder 0, %v4967
    %v4969 = vsel %vm4968, 0, %v4967
    %v4970 = vsub.s32 32, %v4969
    %v4971 = vshll.u32 %v4962, %v4969
    %v4972 = vshrl.u32 %v4954, %v4970
    %v4973 = vor.u32 %v4971, %v4972
    %v4974 = vsub.s32 4294967266, %v4969
    %v4975 = vadd.s32 %v4974, 127
    %v4976 = vshll.u32 %v4975, 23
    %v4977 = vor.u32 4788187, %v4976
    %v4978 = vand.u32 2147483647, %v4977
    %v4980 = vcvt.s32.f32 %v4973
    %v4981 = vmul.f32 %v4980, %v4978
    %v4982 = vxor.u32 %v4981, 2147483648
    %v4983 = vsel %vm4900, %v4982, %v4981
    %v4984 = vsub.s32 4, %v4960
    %v4985 = vsel %vm4900, %v4984, %v4960
    %v4986 = vsel %vm4899, %v627, %v4983
    %v4987 = vsel %vm4899, 0, %v4985
    %v4988 = vcosq.f32.pop %v4986
    %v4989 = vsinq.f32.pop %v4986
    %vm4990 = vweird.f32 %v627
    %v4991 = vadd.s32 %v4987, 3
    %v4992 = vand.u32 %v4991, 3
    %vm4993 = vcmp.lt.s32.totalorder %v4992, 2
    %vm4994 = vcmp.eq.s32.totalorder %v4992, 0
    %v4995 = vxor.u32 %v4989, 2147483648
    %v4996 = vsel %vm4994, %v4988, %v4995
    %vm4997 = vcmp.eq.s32.totalorder %v4992, 2
    %v4998 = vxor.u32 %v4988, 2147483648
    %v4999 = vsel %vm4997, %v4998, %v4989
    %v5000 = vsel %vm4993, %v4996, %v4999
    %v5001 = vsel %vm4990, nan, %v5000
    %v5002 = vand.u32 2147483647, %v628
    %vm5003 = vcmp.le.f32.partialorder %v5002, 0.7853982
    %vm5004 = vcmp.lt.s32.totalorder %v628, 0
    %v5005 = vand.u32 %v628, 2139095040
    %v5006 = vshrl.u32 %v5005, 23
    %v5007 = vsub.s32 %v5006, 127
    %v5008 = vand.u32 2147483647, %v628
    %v5009 = vand.u32 %v5008, 8388607
    %v5010 = vor.u32 %v5009, 8388608
    %v5011 = vsub.s32 0, %v5010
    %v5012 = vadd.s32 %v5007, 1
    %vm5013 = vcmp.gt.s32.totalorder %v5012, 0
    %v5014 = vsel %vm5013, %v5012, 0
    %v5015 = vshrl.u32 %v5014, 5
    %v5016 = vand.u32 %v5014, 31
    %v5017 = vsub.s32 32, %v5016
    %v5018 = vshrl.u32 683565275, %v5017
    %v5019 = vshll.u32 683565275, %v5016
    %v5020 = vshrl.u32 2475754826, %v5017
    %v5021 = vor.u32 %v5019, %v5020
    %v5022 = vshll.u32 2475754826, %v5016
    %v5023 = vshrl.u32 2131351028, %v5017
    %v5024 = vor.u32 %v5022, %v5023
    %v5025 = vshll.u32 2131351028, %v5016
    %v5026 = vshrl.u32 2102212464, %v5017
    %v5027 = vor.u32 %v5025, %v5026
    %v5028 = vshll.u32 2102212464, %v5016
    %v5029 = vshrl.u32 920167782, %v5017
    %v5030 = vor.u32 %v5028, %v5029
    %v5031 = vshll.u32 920167782, %v5016
    %v5032 = vshrl.u32 1326507024, %v5017
    %v5033 = vor.u32 %v5031, %v5032
    %vm5034 = vcmp.lt.s32.totalorder %v5015, 1
    %vm5035 = vcmp.lt.s32.totalorder %v5015, 2
    %vm5036 = vcmp.lt.s32.totalorder %v5015, 3
    %vm5037 = vcmp.lt.s32.totalorder %v5015, 4
    %v5038 = vsel %vm5034, %v5018, %v5021
    %v5039 = vsel %vm5037, %v5027, 2102212464
    %v5040 = vsel %vm5036, %v5024, %v5039
    %v5041 = vsel %vm5035, %v5038, %v5040
    %v5042 = vsel %vm5034, %v5021, %v5024
    %v5043 = vsel %vm5037, %v5030, 920167782
    %v5044 = vsel %vm5036, %v5027, %v5043
    %v5045 = vsel %vm5035, %v5042, %v5044
    %v5046 = vsel %vm5034, %v5024, %v5027
    %v5047 = vsel %vm5037, %v5033, 1326507024
    %v5048 = vsel %vm5036, %v5030, %v5047
    %v5049 = vsel %vm5035, %v5046, %v5048
    %v5050 = vshll.u32 %v5010, 8
    %v5051 = vmul.u32.u64.compose %v5050, %v5049
    %v5052 = vextract.low.u32 %v5051
    %v5053 = vextract.high.u32 %v5051
    %v5054 = vmul.u32.u64.compose %v5050, %v5045
    %v5055 = vextract.low.u32 %v5054
    %v5056 = vextract.high.u32 %v5054
    %v5057 = vmul.u32 %v5050, %v5041
    %v5058 = vadd.s32 %v5053, %v5055
    %vm5059 = vc.u32 %v5053, %v5055
    %v5060 = vadd.s32 %v5056, 1
    %v5061 = vsel %vm5059, %v5060, %v5056
    %v5062 = vadd.s32 %v5057, %v5061
    %v5063 = vadd.s32 %v5062, 536870912
    %v5064 = vshrl.u32 %v5063, 30
    %v5065 = vshll.u32 %v5064, 30
    %v5066 = vsub.s32 %v5062, %v5065
    %vm5067 = vcmp.lt.s32.totalorder %v5066, 0
    %v5068 = vsub.s32 0, %v5066
    %v5069 = vsel %vm5067, %v5068, %v5066
    %v5070 = vclz %v5069
    %v5071 = vsub.s32 %v5070, 2
    %vm5072 = vcmp.gt.s32.totalorder 0, %v5071
    %v5073 = vsel %vm5072, 0, %v5071
    %v5074 = vsub.s32 32, %v5073
    %v5075 = vshll.u32 %v5066, %v5073
    %v5076 = vshrl.u32 %v5058, %v5074
    %v5077 = vor.u32 %v5075, %v5076
    %v5078 = vsub.s32 4294967266, %v5073
    %v5079 = vadd.s32 %v5078, 127
    %v5080 = vshll.u32 %v5079, 23
    %v5081 = vor.u32 4788187, %v5080
    %v5082 = vand.u32 2147483647, %v5081
    %v5084 = vcvt.s32.f32 %v5077
    %v5085 = vmul.f32 %v5084, %v5082
    %v5086 = vxor.u32 %v5085, 2147483648
    %v5087 = vsel %vm5004, %v5086, %v5085
    %v5088 = vsub.s32 4, %v5064
    %v5089 = vsel %vm5004, %v5088, %v5064
    %v5090 = vsel %vm5003, %v628, %v5087
    %v5091 = vsel %vm5003, 0, %v5089
    %v5092 = vcosq.f32.pop %v5090
    %v5093 = vsinq.f32.pop %v5090
    %vm5094 = vweird.f32 %v628
    %v5095 = vadd.s32 %v5091, 3
    %v5096 = vand.u32 %v5095, 3
    %vm5097 = vcmp.lt.s32.totalorder %v5096, 2
    %vm5098 = vcmp.eq.s32.totalorder %v5096, 0
    %v5099 = vxor.u32 %v5093, 2147483648
    %v5100 = vsel %vm5098, %v5092, %v5099
    %vm5101 = vcmp.eq.s32.totalorder %v5096, 2
    %v5102 = vxor.u32 %v5092, 2147483648
    %v5103 = vsel %vm5101, %v5102, %v5093
    %v5104 = vsel %vm5097, %v5100, %v5103
    %v5105 = vsel %vm5094, nan, %v5104
    %v5106 = vand.u32 2147483647, %v629
    %vm5107 = vcmp.le.f32.partialorder %v5106, 0.7853982
    %vm5108 = vcmp.lt.s32.totalorder %v629, 0
    %v5109 = vand.u32 %v629, 2139095040
    %v5110 = vshrl.u32 %v5109, 23
    %v5111 = vsub.s32 %v5110, 127
    %v5112 = vand.u32 2147483647, %v629
    %v5113 = vand.u32 %v5112, 8388607
    %v5114 = vor.u32 %v5113, 8388608
    %v5115 = vsub.s32 0, %v5114
    %v5116 = vadd.s32 %v5111, 1
    %vm5117 = vcmp.gt.s32.totalorder %v5116, 0
    %v5118 = vsel %vm5117, %v5116, 0
    %v5119 = vshrl.u32 %v5118, 5
    %v5120 = vand.u32 %v5118, 31
    %v5121 = vsub.s32 32, %v5120
    %v5122 = vshrl.u32 683565275, %v5121
    %v5123 = vshll.u32 683565275, %v5120
    %v5124 = vshrl.u32 2475754826, %v5121
    %v5125 = vor.u32 %v5123, %v5124
    %v5126 = vshll.u32 2475754826, %v5120
    %v5127 = vshrl.u32 2131351028, %v5121
    %v5128 = vor.u32 %v5126, %v5127
    %v5129 = vshll.u32 2131351028, %v5120
    %v5130 = vshrl.u32 2102212464, %v5121
    %v5131 = vor.u32 %v5129, %v5130
    %v5132 = vshll.u32 2102212464, %v5120
    %v5133 = vshrl.u32 920167782, %v5121
    %v5134 = vor.u32 %v5132, %v5133
    %v5135 = vshll.u32 920167782, %v5120
    %v5136 = vshrl.u32 1326507024, %v5121
    %v5137 = vor.u32 %v5135, %v5136
    %vm5138 = vcmp.lt.s32.totalorder %v5119, 1
    %vm5139 = vcmp.lt.s32.totalorder %v5119, 2
    %vm5140 = vcmp.lt.s32.totalorder %v5119, 3
    %vm5141 = vcmp.lt.s32.totalorder %v5119, 4
    %v5142 = vsel %vm5138, %v5122, %v5125
    %v5143 = vsel %vm5141, %v5131, 2102212464
    %v5144 = vsel %vm5140, %v5128, %v5143
    %v5145 = vsel %vm5139, %v5142, %v5144
    %v5146 = vsel %vm5138, %v5125, %v5128
    %v5147 = vsel %vm5141, %v5134, 920167782
    %v5148 = vsel %vm5140, %v5131, %v5147
    %v5149 = vsel %vm5139, %v5146, %v5148
    %v5150 = vsel %vm5138, %v5128, %v5131
    %v5151 = vsel %vm5141, %v5137, 1326507024
    %v5152 = vsel %vm5140, %v5134, %v5151
    %v5153 = vsel %vm5139, %v5150, %v5152
    %v5154 = vshll.u32 %v5114, 8
    %v5155 = vmul.u32.u64.compose %v5154, %v5153
    %v5156 = vextract.low.u32 %v5155
    %v5157 = vextract.high.u32 %v5155
    %v5158 = vmul.u32.u64.compose %v5154, %v5149
    %v5159 = vextract.low.u32 %v5158
    %v5160 = vextract.high.u32 %v5158
    %v5161 = vmul.u32 %v5154, %v5145
    %v5162 = vadd.s32 %v5157, %v5159
    %vm5163 = vc.u32 %v5157, %v5159
    %v5164 = vadd.s32 %v5160, 1
    %v5165 = vsel %vm5163, %v5164, %v5160
    %v5166 = vadd.s32 %v5161, %v5165
    %v5167 = vadd.s32 %v5166, 536870912
    %v5168 = vshrl.u32 %v5167, 30
    %v5169 = vshll.u32 %v5168, 30
    %v5170 = vsub.s32 %v5166, %v5169
    %vm5171 = vcmp.lt.s32.totalorder %v5170, 0
    %v5172 = vsub.s32 0, %v5170
    %v5173 = vsel %vm5171, %v5172, %v5170
    %v5174 = vclz %v5173
    %v5175 = vsub.s32 %v5174, 2
    %vm5176 = vcmp.gt.s32.totalorder 0, %v5175
    %v5177 = vsel %vm5176, 0, %v5175
    %v5178 = vsub.s32 32, %v5177
    %v5179 = vshll.u32 %v5170, %v5177
    %v5180 = vshrl.u32 %v5162, %v5178
    %v5181 = vor.u32 %v5179, %v5180
    %v5182 = vsub.s32 4294967266, %v5177
    %v5183 = vadd.s32 %v5182, 127
    %v5184 = vshll.u32 %v5183, 23
    %v5185 = vor.u32 4788187, %v5184
    %v5186 = vand.u32 2147483647, %v5185
    %v5188 = vcvt.s32.f32 %v5181
    %v5189 = vmul.f32 %v5188, %v5186
    %v5190 = vxor.u32 %v5189, 2147483648
    %v5191 = vsel %vm5108, %v5190, %v5189
    %v5192 = vsub.s32 4, %v5168
    %v5193 = vsel %vm5108, %v5192, %v5168
    %v5194 = vsel %vm5107, %v629, %v5191
    %v5195 = vsel %vm5107, 0, %v5193
    %v5196 = vcosq.f32.pop %v5194
    %v5197 = vsinq.f32.pop %v5194
    %vm5198 = vweird.f32 %v629
    %v5199 = vadd.s32 %v5195, 3
    %v5200 = vand.u32 %v5199, 3
    %vm5201 = vcmp.lt.s32.totalorder %v5200, 2
    %vm5202 = vcmp.eq.s32.totalorder %v5200, 0
    %v5203 = vxor.u32 %v5197, 2147483648
    %v5204 = vsel %vm5202, %v5196, %v5203
    %vm5205 = vcmp.eq.s32.totalorder %v5200, 2
    %v5206 = vxor.u32 %v5196, 2147483648
    %v5207 = vsel %vm5205, %v5206, %v5197
    %v5208 = vsel %vm5201, %v5204, %v5207
    %v5209 = vsel %vm5198, nan, %v5208
    %v5210 = vand.u32 2147483647, %v630
    %vm5211 = vcmp.le.f32.partialorder %v5210, 0.7853982
    %vm5212 = vcmp.lt.s32.totalorder %v630, 0
    %v5213 = vand.u32 %v630, 2139095040
    %v5214 = vshrl.u32 %v5213, 23
    %v5215 = vsub.s32 %v5214, 127
    %v5216 = vand.u32 2147483647, %v630
    %v5217 = vand.u32 %v5216, 8388607
    %v5218 = vor.u32 %v5217, 8388608
    %v5219 = vsub.s32 0, %v5218
    %v5220 = vadd.s32 %v5215, 1
    %vm5221 = vcmp.gt.s32.totalorder %v5220, 0
    %v5222 = vsel %vm5221, %v5220, 0
    %v5223 = vshrl.u32 %v5222, 5
    %v5224 = vand.u32 %v5222, 31
    %v5225 = vsub.s32 32, %v5224
    %v5226 = vshrl.u32 683565275, %v5225
    %v5227 = vshll.u32 683565275, %v5224
    %v5228 = vshrl.u32 2475754826, %v5225
    %v5229 = vor.u32 %v5227, %v5228
    %v5230 = vshll.u32 2475754826, %v5224
    %v5231 = vshrl.u32 2131351028, %v5225
    %v5232 = vor.u32 %v5230, %v5231
    %v5233 = vshll.u32 2131351028, %v5224
    %v5234 = vshrl.u32 2102212464, %v5225
    %v5235 = vor.u32 %v5233, %v5234
    %v5236 = vshll.u32 2102212464, %v5224
    %v5237 = vshrl.u32 920167782, %v5225
    %v5238 = vor.u32 %v5236, %v5237
    %v5239 = vshll.u32 920167782, %v5224
    %v5240 = vshrl.u32 1326507024, %v5225
    %v5241 = vor.u32 %v5239, %v5240
    %vm5242 = vcmp.lt.s32.totalorder %v5223, 1
    %vm5243 = vcmp.lt.s32.totalorder %v5223, 2
    %vm5244 = vcmp.lt.s32.totalorder %v5223, 3
    %vm5245 = vcmp.lt.s32.totalorder %v5223, 4
    %v5246 = vsel %vm5242, %v5226, %v5229
    %v5247 = vsel %vm5245, %v5235, 2102212464
    %v5248 = vsel %vm5244, %v5232, %v5247
    %v5249 = vsel %vm5243, %v5246, %v5248
    %v5250 = vsel %vm5242, %v5229, %v5232
    %v5251 = vsel %vm5245, %v5238, 920167782
    %v5252 = vsel %vm5244, %v5235, %v5251
    %v5253 = vsel %vm5243, %v5250, %v5252
    %v5254 = vsel %vm5242, %v5232, %v5235
    %v5255 = vsel %vm5245, %v5241, 1326507024
    %v5256 = vsel %vm5244, %v5238, %v5255
    %v5257 = vsel %vm5243, %v5254, %v5256
    %v5258 = vshll.u32 %v5218, 8
    %v5259 = vmul.u32.u64.compose %v5258, %v5257
    %v5260 = vextract.low.u32 %v5259
    %v5261 = vextract.high.u32 %v5259
    %v5262 = vmul.u32.u64.compose %v5258, %v5253
    %v5263 = vextract.low.u32 %v5262
    %v5264 = vextract.high.u32 %v5262
    %v5265 = vmul.u32 %v5258, %v5249
    %v5266 = vadd.s32 %v5261, %v5263
    %vm5267 = vc.u32 %v5261, %v5263
    %v5268 = vadd.s32 %v5264, 1
    %v5269 = vsel %vm5267, %v5268, %v5264
    %v5270 = vadd.s32 %v5265, %v5269
    %v5271 = vadd.s32 %v5270, 536870912
    %v5272 = vshrl.u32 %v5271, 30
    %v5273 = vshll.u32 %v5272, 30
    %v5274 = vsub.s32 %v5270, %v5273
    %vm5275 = vcmp.lt.s32.totalorder %v5274, 0
    %v5276 = vsub.s32 0, %v5274
    %v5277 = vsel %vm5275, %v5276, %v5274
    %v5278 = vclz %v5277
    %v5279 = vsub.s32 %v5278, 2
    %vm5280 = vcmp.gt.s32.totalorder 0, %v5279
    %v5281 = vsel %vm5280, 0, %v5279
    %v5282 = vsub.s32 32, %v5281
    %v5283 = vshll.u32 %v5274, %v5281
    %v5284 = vshrl.u32 %v5266, %v5282
    %v5285 = vor.u32 %v5283, %v5284
    %v5286 = vsub.s32 4294967266, %v5281
    %v5287 = vadd.s32 %v5286, 127
    %v5288 = vshll.u32 %v5287, 23
    %v5289 = vor.u32 4788187, %v5288
    %v5290 = vand.u32 2147483647, %v5289
    %v5292 = vcvt.s32.f32 %v5285
    %v5293 = vmul.f32 %v5292, %v5290
    %v5294 = vxor.u32 %v5293, 2147483648
    %v5295 = vsel %vm5212, %v5294, %v5293
    %v5296 = vsub.s32 4, %v5272
    %v5297 = vsel %vm5212, %v5296, %v5272
    %v5298 = vsel %vm5211, %v630, %v5295
    %v5299 = vsel %vm5211, 0, %v5297
    %v5300 = vcosq.f32.pop %v5298
    %v5301 = vsinq.f32.pop %v5298
    %vm5302 = vweird.f32 %v630
    %v5303 = vadd.s32 %v5299, 3
    %v5304 = vand.u32 %v5303, 3
    %vm5305 = vcmp.lt.s32.totalorder %v5304, 2
    %vm5306 = vcmp.eq.s32.totalorder %v5304, 0
    %v5307 = vxor.u32 %v5301, 2147483648
    %v5308 = vsel %vm5306, %v5300, %v5307
    %vm5309 = vcmp.eq.s32.totalorder %v5304, 2
    %v5310 = vxor.u32 %v5300, 2147483648
    %v5311 = vsel %vm5309, %v5310, %v5301
    %v5312 = vsel %vm5305, %v5308, %v5311
    %v5313 = vsel %vm5302, nan, %v5312
    %v5314 = vand.u32 2147483647, %v631
    %vm5315 = vcmp.le.f32.partialorder %v5314, 0.7853982
    %vm5316 = vcmp.lt.s32.totalorder %v631, 0
    %v5317 = vand.u32 %v631, 2139095040
    %v5318 = vshrl.u32 %v5317, 23
    %v5319 = vsub.s32 %v5318, 127
    %v5320 = vand.u32 2147483647, %v631
    %v5321 = vand.u32 %v5320, 8388607
    %v5322 = vor.u32 %v5321, 8388608
    %v5323 = vsub.s32 0, %v5322
    %v5324 = vadd.s32 %v5319, 1
    %vm5325 = vcmp.gt.s32.totalorder %v5324, 0
    %v5326 = vsel %vm5325, %v5324, 0
    %v5327 = vshrl.u32 %v5326, 5
    %v5328 = vand.u32 %v5326, 31
    %v5329 = vsub.s32 32, %v5328
    %v5330 = vshrl.u32 683565275, %v5329
    %v5331 = vshll.u32 683565275, %v5328
    %v5332 = vshrl.u32 2475754826, %v5329
    %v5333 = vor.u32 %v5331, %v5332
    %v5334 = vshll.u32 2475754826, %v5328
    %v5335 = vshrl.u32 2131351028, %v5329
    %v5336 = vor.u32 %v5334, %v5335
    %v5337 = vshll.u32 2131351028, %v5328
    %v5338 = vshrl.u32 2102212464, %v5329
    %v5339 = vor.u32 %v5337, %v5338
    %v5340 = vshll.u32 2102212464, %v5328
    %v5341 = vshrl.u32 920167782, %v5329
    %v5342 = vor.u32 %v5340, %v5341
    %v5343 = vshll.u32 920167782, %v5328
    %v5344 = vshrl.u32 1326507024, %v5329
    %v5345 = vor.u32 %v5343, %v5344
    %vm5346 = vcmp.lt.s32.totalorder %v5327, 1
    %vm5347 = vcmp.lt.s32.totalorder %v5327, 2
    %vm5348 = vcmp.lt.s32.totalorder %v5327, 3
    %vm5349 = vcmp.lt.s32.totalorder %v5327, 4
    %v5350 = vsel %vm5346, %v5330, %v5333
    %v5351 = vsel %vm5349, %v5339, 2102212464
    %v5352 = vsel %vm5348, %v5336, %v5351
    %v5353 = vsel %vm5347, %v5350, %v5352
    %v5354 = vsel %vm5346, %v5333, %v5336
    %v5355 = vsel %vm5349, %v5342, 920167782
    %v5356 = vsel %vm5348, %v5339, %v5355
    %v5357 = vsel %vm5347, %v5354, %v5356
    %v5358 = vsel %vm5346, %v5336, %v5339
    %v5359 = vsel %vm5349, %v5345, 1326507024
    %v5360 = vsel %vm5348, %v5342, %v5359
    %v5361 = vsel %vm5347, %v5358, %v5360
    %v5362 = vshll.u32 %v5322, 8
    %v5363 = vmul.u32.u64.compose %v5362, %v5361
    %v5364 = vextract.low.u32 %v5363
    %v5365 = vextract.high.u32 %v5363
    %v5366 = vmul.u32.u64.compose %v5362, %v5357
    %v5367 = vextract.low.u32 %v5366
    %v5368 = vextract.high.u32 %v5366
    %v5369 = vmul.u32 %v5362, %v5353
    %v5370 = vadd.s32 %v5365, %v5367
    %vm5371 = vc.u32 %v5365, %v5367
    %v5372 = vadd.s32 %v5368, 1
    %v5373 = vsel %vm5371, %v5372, %v5368
    %v5374 = vadd.s32 %v5369, %v5373
    %v5375 = vadd.s32 %v5374, 536870912
    %v5376 = vshrl.u32 %v5375, 30
    %v5377 = vshll.u32 %v5376, 30
    %v5378 = vsub.s32 %v5374, %v5377
    %vm5379 = vcmp.lt.s32.totalorder %v5378, 0
    %v5380 = vsub.s32 0, %v5378
    %v5381 = vsel %vm5379, %v5380, %v5378
    %v5382 = vclz %v5381
    %v5383 = vsub.s32 %v5382, 2
    %vm5384 = vcmp.gt.s32.totalorder 0, %v5383
    %v5385 = vsel %vm5384, 0, %v5383
    %v5386 = vsub.s32 32, %v5385
    %v5387 = vshll.u32 %v5378, %v5385
    %v5388 = vshrl.u32 %v5370, %v5386
    %v5389 = vor.u32 %v5387, %v5388
    %v5390 = vsub.s32 4294967266, %v5385
    %v5391 = vadd.s32 %v5390, 127
    %v5392 = vshll.u32 %v5391, 23
    %v5393 = vor.u32 4788187, %v5392
    %v5394 = vand.u32 2147483647, %v5393
    %v5396 = vcvt.s32.f32 %v5389
    %v5397 = vmul.f32 %v5396, %v5394
    %v5398 = vxor.u32 %v5397, 2147483648
    %v5399 = vsel %vm5316, %v5398, %v5397
    %v5400 = vsub.s32 4, %v5376
    %v5401 = vsel %vm5316, %v5400, %v5376
    %v5402 = vsel %vm5315, %v631, %v5399
    %v5403 = vsel %vm5315, 0, %v5401
    %v5404 = vcosq.f32.pop %v5402
    %v5405 = vsinq.f32.pop %v5402
    %vm5406 = vweird.f32 %v631
    %v5407 = vadd.s32 %v5403, 3
    %v5408 = vand.u32 %v5407, 3
    %vm5409 = vcmp.lt.s32.totalorder %v5408, 2
    %vm5410 = vcmp.eq.s32.totalorder %v5408, 0
    %v5411 = vxor.u32 %v5405, 2147483648
    %v5412 = vsel %vm5410, %v5404, %v5411
    %vm5413 = vcmp.eq.s32.totalorder %v5408, 2
    %v5414 = vxor.u32 %v5404, 2147483648
    %v5415 = vsel %vm5413, %v5414, %v5405
    %v5416 = vsel %vm5409, %v5412, %v5415
    %v5417 = vsel %vm5406, nan, %v5416
    %v5418 = vand.u32 2147483647, %v632
    %vm5419 = vcmp.le.f32.partialorder %v5418, 0.7853982
    %vm5420 = vcmp.lt.s32.totalorder %v632, 0
    %v5421 = vand.u32 %v632, 2139095040
    %v5422 = vshrl.u32 %v5421, 23
    %v5423 = vsub.s32 %v5422, 127
    %v5424 = vand.u32 2147483647, %v632
    %v5425 = vand.u32 %v5424, 8388607
    %v5426 = vor.u32 %v5425, 8388608
    %v5427 = vsub.s32 0, %v5426
    %v5428 = vadd.s32 %v5423, 1
    %vm5429 = vcmp.gt.s32.totalorder %v5428, 0
    %v5430 = vsel %vm5429, %v5428, 0
    %v5431 = vshrl.u32 %v5430, 5
    %v5432 = vand.u32 %v5430, 31
    %v5433 = vsub.s32 32, %v5432
    %v5434 = vshrl.u32 683565275, %v5433
    %v5435 = vshll.u32 683565275, %v5432
    %v5436 = vshrl.u32 2475754826, %v5433
    %v5437 = vor.u32 %v5435, %v5436
    %v5438 = vshll.u32 2475754826, %v5432
    %v5439 = vshrl.u32 2131351028, %v5433
    %v5440 = vor.u32 %v5438, %v5439
    %v5441 = vshll.u32 2131351028, %v5432
    %v5442 = vshrl.u32 2102212464, %v5433
    %v5443 = vor.u32 %v5441, %v5442
    %v5444 = vshll.u32 2102212464, %v5432
    %v5445 = vshrl.u32 920167782, %v5433
    %v5446 = vor.u32 %v5444, %v5445
    %v5447 = vshll.u32 920167782, %v5432
    %v5448 = vshrl.u32 1326507024, %v5433
    %v5449 = vor.u32 %v5447, %v5448
    %vm5450 = vcmp.lt.s32.totalorder %v5431, 1
    %vm5451 = vcmp.lt.s32.totalorder %v5431, 2
    %vm5452 = vcmp.lt.s32.totalorder %v5431, 3
    %vm5453 = vcmp.lt.s32.totalorder %v5431, 4
    %v5454 = vsel %vm5450, %v5434, %v5437
    %v5455 = vsel %vm5453, %v5443, 2102212464
    %v5456 = vsel %vm5452, %v5440, %v5455
    %v5457 = vsel %vm5451, %v5454, %v5456
    %v5458 = vsel %vm5450, %v5437, %v5440
    %v5459 = vsel %vm5453, %v5446, 920167782
    %v5460 = vsel %vm5452, %v5443, %v5459
    %v5461 = vsel %vm5451, %v5458, %v5460
    %v5462 = vsel %vm5450, %v5440, %v5443
    %v5463 = vsel %vm5453, %v5449, 1326507024
    %v5464 = vsel %vm5452, %v5446, %v5463
    %v5465 = vsel %vm5451, %v5462, %v5464
    %v5466 = vshll.u32 %v5426, 8
    %v5467 = vmul.u32.u64.compose %v5466, %v5465
    %v5468 = vextract.low.u32 %v5467
    %v5469 = vextract.high.u32 %v5467
    %v5470 = vmul.u32.u64.compose %v5466, %v5461
    %v5471 = vextract.low.u32 %v5470
    %v5472 = vextract.high.u32 %v5470
    %v5473 = vmul.u32 %v5466, %v5457
    %v5474 = vadd.s32 %v5469, %v5471
    %vm5475 = vc.u32 %v5469, %v5471
    %v5476 = vadd.s32 %v5472, 1
    %v5477 = vsel %vm5475, %v5476, %v5472
    %v5478 = vadd.s32 %v5473, %v5477
    %v5479 = vadd.s32 %v5478, 536870912
    %v5480 = vshrl.u32 %v5479, 30
    %v5481 = vshll.u32 %v5480, 30
    %v5482 = vsub.s32 %v5478, %v5481
    %vm5483 = vcmp.lt.s32.totalorder %v5482, 0
    %v5484 = vsub.s32 0, %v5482
    %v5485 = vsel %vm5483, %v5484, %v5482
    %v5486 = vclz %v5485
    %v5487 = vsub.s32 %v5486, 2
    %vm5488 = vcmp.gt.s32.totalorder 0, %v5487
    %v5489 = vsel %vm5488, 0, %v5487
    %v5490 = vsub.s32 32, %v5489
    %v5491 = vshll.u32 %v5482, %v5489
    %v5492 = vshrl.u32 %v5474, %v5490
    %v5493 = vor.u32 %v5491, %v5492
    %v5494 = vsub.s32 4294967266, %v5489
    %v5495 = vadd.s32 %v5494, 127
    %v5496 = vshll.u32 %v5495, 23
    %v5497 = vor.u32 4788187, %v5496
    %v5498 = vand.u32 2147483647, %v5497
    %v5500 = vcvt.s32.f32 %v5493
    %v5501 = vmul.f32 %v5500, %v5498
    %v5502 = vxor.u32 %v5501, 2147483648
    %v5503 = vsel %vm5420, %v5502, %v5501
    %v5504 = vsub.s32 4, %v5480
    %v5505 = vsel %vm5420, %v5504, %v5480
    %v5506 = vsel %vm5419, %v632, %v5503
    %v5507 = vsel %vm5419, 0, %v5505
    %v5508 = vcosq.f32.pop %v5506
    %v5509 = vsinq.f32.pop %v5506
    %vm5510 = vweird.f32 %v632
    %v5511 = vadd.s32 %v5507, 3
    %v5512 = vand.u32 %v5511, 3
    %vm5513 = vcmp.lt.s32.totalorder %v5512, 2
    %vm5514 = vcmp.eq.s32.totalorder %v5512, 0
    %v5515 = vxor.u32 %v5509, 2147483648
    %v5516 = vsel %vm5514, %v5508, %v5515
    %vm5517 = vcmp.eq.s32.totalorder %v5512, 2
    %v5518 = vxor.u32 %v5508, 2147483648
    %v5519 = vsel %vm5517, %v5518, %v5509
    %v5520 = vsel %vm5513, %v5516, %v5519
    %v5521 = vsel %vm5510, nan, %v5520
    %v5522 = vand.u32 2147483647, %v633
    %vm5523 = vcmp.le.f32.partialorder %v5522, 0.7853982
    %vm5524 = vcmp.lt.s32.totalorder %v633, 0
    %v5525 = vand.u32 %v633, 2139095040
    %v5526 = vshrl.u32 %v5525, 23
    %v5527 = vsub.s32 %v5526, 127
    %v5528 = vand.u32 2147483647, %v633
    %v5529 = vand.u32 %v5528, 8388607
    %v5530 = vor.u32 %v5529, 8388608
    %v5531 = vsub.s32 0, %v5530
    %v5532 = vadd.s32 %v5527, 1
    %vm5533 = vcmp.gt.s32.totalorder %v5532, 0
    %v5534 = vsel %vm5533, %v5532, 0
    %v5535 = vshrl.u32 %v5534, 5
    %v5536 = vand.u32 %v5534, 31
    %v5537 = vsub.s32 32, %v5536
    %v5538 = vshrl.u32 683565275, %v5537
    %v5539 = vshll.u32 683565275, %v5536
    %v5540 = vshrl.u32 2475754826, %v5537
    %v5541 = vor.u32 %v5539, %v5540
    %v5542 = vshll.u32 2475754826, %v5536
    %v5543 = vshrl.u32 2131351028, %v5537
    %v5544 = vor.u32 %v5542, %v5543
    %v5545 = vshll.u32 2131351028, %v5536
    %v5546 = vshrl.u32 2102212464, %v5537
    %v5547 = vor.u32 %v5545, %v5546
    %v5548 = vshll.u32 2102212464, %v5536
    %v5549 = vshrl.u32 920167782, %v5537
    %v5550 = vor.u32 %v5548, %v5549
    %v5551 = vshll.u32 920167782, %v5536
    %v5552 = vshrl.u32 1326507024, %v5537
    %v5553 = vor.u32 %v5551, %v5552
    %vm5554 = vcmp.lt.s32.totalorder %v5535, 1
    %vm5555 = vcmp.lt.s32.totalorder %v5535, 2
    %vm5556 = vcmp.lt.s32.totalorder %v5535, 3
    %vm5557 = vcmp.lt.s32.totalorder %v5535, 4
    %v5558 = vsel %vm5554, %v5538, %v5541
    %v5559 = vsel %vm5557, %v5547, 2102212464
    %v5560 = vsel %vm5556, %v5544, %v5559
    %v5561 = vsel %vm5555, %v5558, %v5560
    %v5562 = vsel %vm5554, %v5541, %v5544
    %v5563 = vsel %vm5557, %v5550, 920167782
    %v5564 = vsel %vm5556, %v5547, %v5563
    %v5565 = vsel %vm5555, %v5562, %v5564
    %v5566 = vsel %vm5554, %v5544, %v5547
    %v5567 = vsel %vm5557, %v5553, 1326507024
    %v5568 = vsel %vm5556, %v5550, %v5567
    %v5569 = vsel %vm5555, %v5566, %v5568
    %v5570 = vshll.u32 %v5530, 8
    %v5571 = vmul.u32.u64.compose %v5570, %v5569
    %v5572 = vextract.low.u32 %v5571
    %v5573 = vextract.high.u32 %v5571
    %v5574 = vmul.u32.u64.compose %v5570, %v5565
    %v5575 = vextract.low.u32 %v5574
    %v5576 = vextract.high.u32 %v5574
    %v5577 = vmul.u32 %v5570, %v5561
    %v5578 = vadd.s32 %v5573, %v5575
    %vm5579 = vc.u32 %v5573, %v5575
    %v5580 = vadd.s32 %v5576, 1
    %v5581 = vsel %vm5579, %v5580, %v5576
    %v5582 = vadd.s32 %v5577, %v5581
    %v5583 = vadd.s32 %v5582, 536870912
    %v5584 = vshrl.u32 %v5583, 30
    %v5585 = vshll.u32 %v5584, 30
    %v5586 = vsub.s32 %v5582, %v5585
    %vm5587 = vcmp.lt.s32.totalorder %v5586, 0
    %v5588 = vsub.s32 0, %v5586
    %v5589 = vsel %vm5587, %v5588, %v5586
    %v5590 = vclz %v5589
    %v5591 = vsub.s32 %v5590, 2
    %vm5592 = vcmp.gt.s32.totalorder 0, %v5591
    %v5593 = vsel %vm5592, 0, %v5591
    %v5594 = vsub.s32 32, %v5593
    %v5595 = vshll.u32 %v5586, %v5593
    %v5596 = vshrl.u32 %v5578, %v5594
    %v5597 = vor.u32 %v5595, %v5596
    %v5598 = vsub.s32 4294967266, %v5593
    %v5599 = vadd.s32 %v5598, 127
    %v5600 = vshll.u32 %v5599, 23
    %v5601 = vor.u32 4788187, %v5600
    %v5602 = vand.u32 2147483647, %v5601
    %v5604 = vcvt.s32.f32 %v5597
    %v5605 = vmul.f32 %v5604, %v5602
    %v5606 = vxor.u32 %v5605, 2147483648
    %v5607 = vsel %vm5524, %v5606, %v5605
    %v5608 = vsub.s32 4, %v5584
    %v5609 = vsel %vm5524, %v5608, %v5584
    %v5610 = vsel %vm5523, %v633, %v5607
    %v5611 = vsel %vm5523, 0, %v5609
    %v5612 = vcosq.f32.pop %v5610
    %v5613 = vsinq.f32.pop %v5610
    %vm5614 = vweird.f32 %v633
    %v5615 = vadd.s32 %v5611, 3
    %v5616 = vand.u32 %v5615, 3
    %vm5617 = vcmp.lt.s32.totalorder %v5616, 2
    %vm5618 = vcmp.eq.s32.totalorder %v5616, 0
    %v5619 = vxor.u32 %v5613, 2147483648
    %v5620 = vsel %vm5618, %v5612, %v5619
    %vm5621 = vcmp.eq.s32.totalorder %v5616, 2
    %v5622 = vxor.u32 %v5612, 2147483648
    %v5623 = vsel %vm5621, %v5622, %v5613
    %v5624 = vsel %vm5617, %v5620, %v5623
    %v5625 = vsel %vm5614, nan, %v5624
    %v5626 = vld [vmem:[#allocation4] sm:$0xff]
    %v5627 = vld [vmem:[#allocation4 + $0x8] sm:$0xff]
    %v5628 = vld [vmem:[#allocation4 + $0x10] sm:$0xff]
    %v5629 = vld [vmem:[#allocation4 + $0x18] sm:$0xff]
    %v5630 = vld [vmem:[#allocation4 + $0x20] sm:$0xff]
    %v5631 = vld [vmem:[#allocation4 + $0x28] sm:$0xff]
    %v5632 = vld [vmem:[#allocation4 + $0x30] sm:$0xff]
    %v5633 = vld [vmem:[#allocation4 + $0x38] sm:$0xff]
    %v5634 = vld [vmem:[#allocation4 + $0x40] sm:$0xff]
    %v5635 = vld [vmem:[#allocation4 + $0x48] sm:$0xff]
    %v5636 = vld [vmem:[#allocation4 + $0x50] sm:$0xff]
    %v5637 = vld [vmem:[#allocation4 + $0x58] sm:$0xff]
    %v5638 = vld [vmem:[#allocation4 + $0x60] sm:$0xff]
    %v5639 = vld [vmem:[#allocation4 + $0x68] sm:$0xff]
    %v5640 = vld [vmem:[#allocation4 + $0x70] sm:$0xff]
    %v5641 = vld [vmem:[#allocation4 + $0x78] sm:$0xff]
    %v5642 = vld [vmem:[#allocation4 + $0x80] sm:$0xff]
    %v5643 = vld [vmem:[#allocation4 + $0x88] sm:$0xff]
    %v5644 = vld [vmem:[#allocation4 + $0x90] sm:$0xff]
    %v5645 = vld [vmem:[#allocation4 + $0x98] sm:$0xff]
    %v5646 = vld [vmem:[#allocation4 + $0xa0] sm:$0xff]
    %v5647 = vld [vmem:[#allocation4 + $0xa8] sm:$0xff]
    %v5648 = vld [vmem:[#allocation4 + $0xb0] sm:$0xff]
    %v5649 = vld [vmem:[#allocation4 + $0xb8] sm:$0xff]
    %v5650 = vld [vmem:[#allocation4 + $0xc0] sm:$0xff]
    %v5651 = vld [vmem:[#allocation4 + $0xc8] sm:$0xff]
    %v5652 = vld [vmem:[#allocation4 + $0xd0] sm:$0xff]
    %v5653 = vld [vmem:[#allocation4 + $0xd8] sm:$0xff]
    %v5654 = vld [vmem:[#allocation4 + $0xe0] sm:$0xff]
    %v5655 = vld [vmem:[#allocation4 + $0xe8] sm:$0xff]
    %v5656 = vld [vmem:[#allocation4 + $0xf0] sm:$0xff]
    %v5657 = vld [vmem:[#allocation4 + $0xf8] sm:$0xff]
    %v5658 = vld [vmem:[#allocation4 + $0x100] sm:$0xff]
    %v5659 = vld [vmem:[#allocation4 + $0x108] sm:$0xff]
    %v5660 = vld [vmem:[#allocation4 + $0x110] sm:$0xff]
    %v5661 = vld [vmem:[#allocation4 + $0x118] sm:$0xff]
    %v5662 = vld [vmem:[#allocation4 + $0x120] sm:$0xff]
    %v5663 = vld [vmem:[#allocation4 + $0x128] sm:$0xff]
    %v5664 = vld [vmem:[#allocation4 + $0x130] sm:$0xff]
    %v5665 = vld [vmem:[#allocation4 + $0x138] sm:$0xff]
    %v5666 = vld [vmem:[#allocation4 + $0x140] sm:$0xff]
    %v5667 = vld [vmem:[#allocation4 + $0x148] sm:$0xff]
    %v5668 = vld [vmem:[#allocation4 + $0x150] sm:$0xff]
    %v5669 = vld [vmem:[#allocation4 + $0x158] sm:$0xff]
    %v5670 = vld [vmem:[#allocation4 + $0x160] sm:$0xff]
    %v5671 = vld [vmem:[#allocation4 + $0x168] sm:$0xff]
    %v5672 = vld [vmem:[#allocation4 + $0x170] sm:$0xff]
    %v5673 = vld [vmem:[#allocation4 + $0x178] sm:$0xff]
    %v5674 = vmul.f32 %v5626, 16.0
    %v5675 = vmul.f32 %v5627, 16.0
    %v5676 = vmul.f32 %v5628, 16.0
    %v5677 = vmul.f32 %v5629, 16.0
    %v5678 = vmul.f32 %v5630, 16.0
    %v5679 = vmul.f32 %v5631, 16.0
    %v5680 = vmul.f32 %v5632, 16.0
    %v5681 = vmul.f32 %v5633, 16.0
    %v5682 = vmul.f32 %v5634, 16.0
    %v5683 = vmul.f32 %v5635, 16.0
    %v5684 = vmul.f32 %v5636, 16.0
    %v5685 = vmul.f32 %v5637, 16.0
    %v5686 = vmul.f32 %v5638, 16.0
    %v5687 = vmul.f32 %v5639, 16.0
    %v5688 = vmul.f32 %v5640, 16.0
    %v5689 = vmul.f32 %v5641, 16.0
    %v5690 = vmul.f32 %v5642, 16.0
    %v5691 = vmul.f32 %v5643, 16.0
    %v5692 = vmul.f32 %v5644, 16.0
    %v5693 = vmul.f32 %v5645, 16.0
    %v5694 = vmul.f32 %v5646, 16.0
    %v5695 = vmul.f32 %v5647, 16.0
    %v5696 = vmul.f32 %v5648, 16.0
    %v5697 = vmul.f32 %v5649, 16.0
    %v5698 = vmul.f32 %v5650, 16.0
    %v5699 = vmul.f32 %v5651, 16.0
    %v5700 = vmul.f32 %v5652, 16.0
    %v5701 = vmul.f32 %v5653, 16.0
    %v5702 = vmul.f32 %v5654, 16.0
    %v5703 = vmul.f32 %v5655, 16.0
    %v5704 = vmul.f32 %v5656, 16.0
    %v5705 = vmul.f32 %v5657, 16.0
    %v5706 = vmul.f32 %v5658, 16.0
    %v5707 = vmul.f32 %v5659, 16.0
    %v5708 = vmul.f32 %v5660, 16.0
    %v5709 = vmul.f32 %v5661, 16.0
    %v5710 = vmul.f32 %v5662, 16.0
    %v5711 = vmul.f32 %v5663, 16.0
    %v5712 = vmul.f32 %v5664, 16.0
    %v5713 = vmul.f32 %v5665, 16.0
    %v5714 = vmul.f32 %v5666, 16.0
    %v5715 = vmul.f32 %v5667, 16.0
    %v5716 = vmul.f32 %v5668, 16.0
    %v5717 = vmul.f32 %v5669, 16.0
    %v5718 = vmul.f32 %v5670, 16.0
    %v5719 = vmul.f32 %v5671, 16.0
    %v5720 = vmul.f32 %v5672, 16.0
    %v5721 = vmul.f32 %v5673, 16.0
    %v5722 = vadd.f32 %v5674, %v737
    %v5723 = vadd.f32 %v5675, %v841
    %v5724 = vadd.f32 %v5676, %v945
    %v5725 = vadd.f32 %v5677, %v1049
    %v5726 = vadd.f32 %v5678, %v1153
    %v5727 = vadd.f32 %v5679, %v1257
    %v5728 = vadd.f32 %v5680, %v1361
    %v5729 = vadd.f32 %v5681, %v1465
    %v5730 = vadd.f32 %v5682, %v1569
    %v5731 = vadd.f32 %v5683, %v1673
    %v5732 = vadd.f32 %v5684, %v1777
    %v5733 = vadd.f32 %v5685, %v1881
    %v5734 = vadd.f32 %v5686, %v1985
    %v5735 = vadd.f32 %v5687, %v2089
    %v5736 = vadd.f32 %v5688, %v2193
    %v5737 = vadd.f32 %v5689, %v2297
    %v5738 = vadd.f32 %v5690, %v2401
    %v5739 = vadd.f32 %v5691, %v2505
    %v5740 = vadd.f32 %v5692, %v2609
    %v5741 = vadd.f32 %v5693, %v2713
    %v5742 = vadd.f32 %v5694, %v2817
    %v5743 = vadd.f32 %v5695, %v2921
    %v5744 = vadd.f32 %v5696, %v3025
    %v5745 = vadd.f32 %v5697, %v3129
    %v5746 = vadd.f32 %v5698, %v3233
    %v5747 = vadd.f32 %v5699, %v3337
    %v5748 = vadd.f32 %v5700, %v3441
    %v5749 = vadd.f32 %v5701, %v3545
    %v5750 = vadd.f32 %v5702, %v3649
    %v5751 = vadd.f32 %v5703, %v3753
    %v5752 = vadd.f32 %v5704, %v3857
    %v5753 = vadd.f32 %v5705, %v3961
    %v5754 = vadd.f32 %v5706, %v4065
    %v5755 = vadd.f32 %v5707, %v4169
    %v5756 = vadd.f32 %v5708, %v4273
    %v5757 = vadd.f32 %v5709, %v4377
    %v5758 = vadd.f32 %v5710, %v4481
    %v5759 = vadd.f32 %v5711, %v4585
    %v5760 = vadd.f32 %v5712, %v4689
    %v5761 = vadd.f32 %v5713, %v4793
    %v5762 = vadd.f32 %v5714, %v4897
    %v5763 = vadd.f32 %v5715, %v5001
    %v5764 = vadd.f32 %v5716, %v5105
    %v5765 = vadd.f32 %v5717, %v5209
    %v5766 = vadd.f32 %v5718, %v5313
    %v5767 = vadd.f32 %v5719, %v5417
    %v5768 = vadd.f32 %v5720, %v5521
    %v5769 = vadd.f32 %v5721, %v5625
    %5770 = vst [vmem:[#allocation7] sm:$0xff] %v5722
    %5771 = vst [vmem:[#allocation7 + $0x8] sm:$0xff] %v5723
    %5772 = vst [vmem:[#allocation7 + $0x10] sm:$0xff] %v5724
    %5773 = vst [vmem:[#allocation7 + $0x18] sm:$0xff] %v5725
    %5774 = vst [vmem:[#allocation7 + $0x20] sm:$0xff] %v5726
    %5775 = vst [vmem:[#allocation7 + $0x28] sm:$0xff] %v5727
    %5776 = vst [vmem:[#allocation7 + $0x30] sm:$0xff] %v5728
    %5777 = vst [vmem:[#allocation7 + $0x38] sm:$0xff] %v5729
    %5778 = vst [vmem:[#allocation7 + $0x40] sm:$0xff] %v5730
    %5779 = vst [vmem:[#allocation7 + $0x48] sm:$0xff] %v5731
    %5780 = vst [vmem:[#allocation7 + $0x50] sm:$0xff] %v5732
    %5781 = vst [vmem:[#allocation7 + $0x58] sm:$0xff] %v5733
    %5782 = vst [vmem:[#allocation7 + $0x60] sm:$0xff] %v5734
    %5783 = vst [vmem:[#allocation7 + $0x68] sm:$0xff] %v5735
    %5784 = vst [vmem:[#allocation7 + $0x70] sm:$0xff] %v5736
    %5785 = vst [vmem:[#allocation7 + $0x78] sm:$0xff] %v5737
    %5786 = vst [vmem:[#allocation7 + $0x80] sm:$0xff] %v5738
    %5787 = vst [vmem:[#allocation7 + $0x88] sm:$0xff] %v5739
    %5788 = vst [vmem:[#allocation7 + $0x90] sm:$0xff] %v5740
    %5789 = vst [vmem:[#allocation7 + $0x98] sm:$0xff] %v5741
    %5790 = vst [vmem:[#allocation7 + $0xa0] sm:$0xff] %v5742
    %5791 = vst [vmem:[#allocation7 + $0xa8] sm:$0xff] %v5743
    %5792 = vst [vmem:[#allocation7 + $0xb0] sm:$0xff] %v5744
    %5793 = vst [vmem:[#allocation7 + $0xb8] sm:$0xff] %v5745
    %5794 = vst [vmem:[#allocation7 + $0xc0] sm:$0xff] %v5746
    %5795 = vst [vmem:[#allocation7 + $0xc8] sm:$0xff] %v5747
    %5796 = vst [vmem:[#allocation7 + $0xd0] sm:$0xff] %v5748
    %5797 = vst [vmem:[#allocation7 + $0xd8] sm:$0xff] %v5749
    %5798 = vst [vmem:[#allocation7 + $0xe0] sm:$0xff] %v5750
    %5799 = vst [vmem:[#allocation7 + $0xe8] sm:$0xff] %v5751
    %5800 = vst [vmem:[#allocation7 + $0xf0] sm:$0xff] %v5752
    %5801 = vst [vmem:[#allocation7 + $0xf8] sm:$0xff] %v5753
    %5802 = vst [vmem:[#allocation7 + $0x100] sm:$0xff] %v5754
    %5803 = vst [vmem:[#allocation7 + $0x108] sm:$0xff] %v5755
    %5804 = vst [vmem:[#allocation7 + $0x110] sm:$0xff] %v5756
    %5805 = vst [vmem:[#allocation7 + $0x118] sm:$0xff] %v5757
    %5806 = vst [vmem:[#allocation7 + $0x120] sm:$0xff] %v5758
    %5807 = vst [vmem:[#allocation7 + $0x128] sm:$0xff] %v5759
    %5808 = vst [vmem:[#allocation7 + $0x130] sm:$0xff] %v5760
    %5809 = vst [vmem:[#allocation7 + $0x138] sm:$0xff] %v5761
    %5810 = vst [vmem:[#allocation7 + $0x140] sm:$0xff] %v5762
    %5811 = vst [vmem:[#allocation7 + $0x148] sm:$0xff] %v5763
    %5812 = vst [vmem:[#allocation7 + $0x150] sm:$0xff] %v5764
    %5813 = vst [vmem:[#allocation7 + $0x158] sm:$0xff] %v5765
    %5814 = vst [vmem:[#allocation7 + $0x160] sm:$0xff] %v5766
    %5815 = vst [vmem:[#allocation7 + $0x168] sm:$0xff] %v5767
    %5816 = vst [vmem:[#allocation7 + $0x170] sm:$0xff] %v5768
    %5817 = vst [vmem:[#allocation7 + $0x178] sm:$0xff] %v5769
    // Predicated region
    $region14: #{tpu_custom_call.1} parent=1 // pred_check
      _
    $region15: #{tpu_custom_call.1} parent=1 // pred_check_branch
      %5819 = sbr.rel (0) target = $region17
    $region16: #{tpu_custom_call.1} parent=1 // pred_region
      %s5821 = ssub.s32 6144, 6144
      %5822 = vsyncadd [#allocation6], %s5821
      %s5823 = sshll.u32 [#allocation7], 4
      %s5824 = int_to_ptr.vmem [resolvable:$true] %s5823
      %5829 = dma.vmem_to_hbm [thread:$0]  %s5824, 6144, %s3, [#allocation6], 256, 256, 16
    $region17: #{tpu_custom_call.1} parent=1 // pred_fallthru
      _
    // Predicated region
    $region18: #{tpu_custom_call.1} parent=1 // pred_check
      _
    $region19: #{tpu_custom_call.1} parent=1 // pred_check_branch
      %5831 = sbr.rel (0) target = $region21
    $region20: #{tpu_custom_call.1} parent=1 // pred_region
      %5832 = dma.done [#allocation6], 6144
    $region21: #{tpu_custom_call.1} parent=1 // pred_fallthru
      _
    %5833 = vsyncpa [#allocation5], 1
    %5834 = vsyncpa [#allocation6], 1

</llo_original>
